<compile_context>
chip_gen: v7x
topology: tpu7x:2x2x1
jax: 0.10.0
libtpu: 0.0.40
codegen_flags: <defaults>
</compile_context>

<pallas_src>
import functools

import jax
import jax.numpy as jnp
from jax.experimental import pallas as pl
from jax.experimental.pallas import tpu as pltpu

H1, H2, H3 = 512, 256, 512


def _round_up(x, m):
    return ((x + m - 1) // m) * m


def _device_kind():
    try:
        return jax.devices()[0].device_kind.lower()
    except Exception:
        return ""


_KIND = _device_kind()
# v5e has no bf16 VALU -> keep the elementwise (bias + LeakyReLU) path in f32
# there; v6e/v7x have native bf16 VPU so bf16 elementwise halves VALU work.
_ACT_DTYPE = jnp.float32 if "v5" in _KIND else jnp.bfloat16
# v7x has 2 TensorCores per chip; v5e/v6e have 1.
_NUM_TC = 2 if "v7" in _KIND else 1


def generator_kernel(x_ref,
                     w1_ref, b1_ref,
                     w2_ref, b2_ref,
                     w3_ref, b3_ref,
                     w4_ref, b4_ref,
                     o_ref,
                     *, act_dtype):
    """Fused 4-layer MLP for one batch tile.

    bf16 MXU operands, f32 accumulation; bias-add + LeakyReLU in `act_dtype`
    (bf16 on v6e/v7x, f32 on v5e). Final bias-add stays f32."""

    def act(h_f32, b_ref):
        h = h_f32.astype(act_dtype) + b_ref[...]
        # max-form LeakyReLU: 2 VALU ops/elem vs 3 for where(cmp, x, 0.2x).
        return jnp.maximum(h, h * jnp.asarray(0.2, act_dtype))

    x = x_ref[...]                                           # (tile_b, Dp) bf16

    h = act(jnp.dot(x, w1_ref[...], preferred_element_type=jnp.float32), b1_ref)
    h = act(jnp.dot(h.astype(jnp.bfloat16), w2_ref[...],
                    preferred_element_type=jnp.float32), b2_ref)
    h = act(jnp.dot(h.astype(jnp.bfloat16), w3_ref[...],
                    preferred_element_type=jnp.float32), b3_ref)
    h = jnp.dot(h.astype(jnp.bfloat16), w4_ref[...],
                preferred_element_type=jnp.float32)
    o_ref[...] = (h + b4_ref[...]).astype(o_ref.dtype)


def prepare_params(params, data_dim, act_dtype=_ACT_DTYPE):
    """One-time pad (feature dim -> multiple of 128) + dtype prep of the params.

    Do this ONCE outside the hot path: re-padding/re-casting ~1.5 MiB of f32
    params every call is comparable to the kernel's entire HBM traffic."""
    D = data_dim
    Dp = _round_up(D, 128)
    return {
        "w1": jnp.pad(params["w1"], ((0, Dp - D), (0, 0))).astype(jnp.bfloat16),
        "w2": params["w2"].astype(jnp.bfloat16),
        "w3": params["w3"].astype(jnp.bfloat16),
        "w4": jnp.pad(params["w4"], ((0, 0), (0, Dp - D))).astype(jnp.bfloat16),
        "b1": params["b1"].astype(act_dtype),
        "b2": params["b2"].astype(act_dtype),
        "b3": params["b3"].astype(act_dtype),
        "b4": jnp.pad(params["b4"], ((0, 0), (0, Dp - D))).astype(jnp.float32),
    }


def _pick_tile(batch, block_b):
    """Batch tile: multiple of 16 (bf16 (16,128) tiling), device-aware grid."""
    bp16 = _round_up(max(batch, 1), 16)
    tile = min(_round_up(max(block_b, 16), 16), bp16)
    if _NUM_TC >= 2:
        # v7x: a 1-step grid leaves half the chip idle -> split when possible.
        if bp16 // tile < 2 and bp16 >= 32:
            tile = max(16, _round_up(bp16 // 2, 16))
    elif bp16 <= 1024:
        # Single-TC chips (v5e/v6e): collapse small batches to one grid step
        # to remove the per-step pipeline overhead and extra x/out buffers.
        tile = bp16
    return tile


def _replicated_spec(shape):
    """Weight/bias block identical for every grid step (constant index_map)."""
    return pl.BlockSpec(shape, lambda i: (0,) * len(shape))


@functools.partial(jax.jit, static_argnames=("tile_b",))
def _generator_forward_impl(x, prep, tile_b):
    B, D = x.shape
    Dp = prep["w1"].shape[0]
    act_dtype = prep["b1"].dtype
    Bp = _round_up(_round_up(B, 16), tile_b)

    # Only the activations are padded/cast per call; params are pre-prepared.
    x_p = jnp.pad(x, ((0, Bp - B), (0, Dp - D))).astype(jnp.bfloat16)

    grid = (Bp // tile_b,)

    in_specs = [
        pl.BlockSpec((tile_b, Dp), lambda i: (i, 0)),        # x batch tile
        _replicated_spec(prep["w1"].shape),
        _replicated_spec(prep["b1"].shape),
        _replicated_spec(prep["w2"].shape),
        _replicated_spec(prep["b2"].shape),
        _replicated_spec(prep["w3"].shape),
        _replicated_spec(prep["b3"].shape),
        _replicated_spec(prep["w4"].shape),
        _replicated_spec(prep["b4"].shape),
    ]
    out_spec = pl.BlockSpec((tile_b, Dp), lambda i: (i, 0))

    flops = 2 * Bp * (Dp * H1 + H1 * H2 + H2 * H3 + H3 * Dp)
    weight_bytes = 2 * sum(prep[k].size for k in ("w1", "w2", "w3", "w4"))
    bias_bytes = sum(prep[k].size * prep[k].dtype.itemsize
                     for k in ("b1", "b2", "b3", "b4"))
    bytes_accessed = int(2 * Bp * Dp + 4 * Bp * Dp + weight_bytes + bias_bytes)

    out_padded = pl.pallas_call(
        functools.partial(generator_kernel, act_dtype=act_dtype),
        out_shape=jax.ShapeDtypeStruct((Bp, Dp), jnp.float32),
        grid_spec=pltpu.PrefetchScalarGridSpec(
            num_scalar_prefetch=0,
            grid=grid,
            in_specs=in_specs,
            out_specs=out_spec,
        ),
        compiler_params=pltpu.CompilerParams(
            dimension_semantics=("parallel",),   # megacore-shard batch tiles
            vmem_limit_bytes=32 * 1024 * 1024,
        ),
        cost_estimate=pl.CostEstimate(
            flops=int(flops),
            transcendentals=0,
            bytes_accessed=bytes_accessed,
        ),
    )(x_p, prep["w1"], prep["b1"], prep["w2"], prep["b2"],
      prep["w3"], prep["b3"], prep["w4"], prep["b4"])

    return out_padded[:B, :D]


# TODO(synk): the ngpu>1 nn.parallel.data_parallel branch has no in-kernel
# equivalent; multi-device replication belongs outside the kernel (pmap/shard_map).
def generator_forward(x, prepared_params, block_b=None):
    """Forward pass of the Generator MLP.

    `prepared_params` must come from `prepare_params` (padded, bf16 weights).
    Returns an async JAX array; callers block when they need the value."""
    if block_b is None:
        block_b = 512 if "v6" in _KIND else 256
    tile_b = _pick_tile(x.shape[0], block_b)
    return _generator_forward_impl(x, prepared_params, tile_b)


def init_params(key, data_dim):
    """nn.Linear-style U(-1/sqrt(fan_in), 1/sqrt(fan_in)) init.

    Weights stored as (in_features, out_features) = transpose of torch layout,
    so each layer is y = x @ W + b."""
    dims = [(data_dim, H1), (H1, H2), (H2, H3), (H3, data_dim)]
    params = {}
    for idx, (fan_in, fan_out) in enumerate(dims, start=1):
        key, kw, kb = jax.random.split(key, 3)
        bound = 1.0 / float(fan_in) ** 0.5
        params[f"w{idx}"] = jax.random.uniform(
            kw, (fan_in, fan_out), jnp.float32, minval=-bound, maxval=bound)
        params[f"b{idx}"] = jax.random.uniform(
            kb, (1, fan_out), jnp.float32, minval=-bound, maxval=bound)
    return params


def reference_forward(x, params):
    """Plain-JAX f32 reference of the same MLP."""
    h = x
    for idx in range(1, 5):
        h = h @ params[f"w{idx}"] + params[f"b{idx}"]
        if idx < 4:
            h = jnp.where(h > 0, h, 0.2 * h)
    return h


if __name__ == "__main__":
    key = jax.random.PRNGKey(0)
    key, kx = jax.random.split(key)

    # Small LINCS-like problem: feature dim NOT a multiple of 128 and batch NOT
    # a multiple of the tile -> exercises the pad-and-slice wrapper.
    DATA_DIM = 120
    B = 500

    x = jax.random.normal(kx, (B, DATA_DIM), jnp.float32)
    params = init_params(key, DATA_DIM)

    # One-time parameter preparation (pad + bf16 cast), outside the hot path.
    prep = jax.block_until_ready(prepare_params(params, DATA_DIM))

    out = generator_forward(x, prep)
    out = jax.block_until_ready(out)

    ref = reference_forward(x, params)
    assert out.shape == (B, DATA_DIM)
    # bf16 matmul operands (and bf16 elementwise on v6e/v7x) -> loosened
    # tolerance vs the f32 reference.
    max_err = float(jnp.max(jnp.abs(out - ref)))
    assert jnp.allclose(out, ref, atol=3e-2, rtol=3e-2), (
        f"mismatch vs reference (max abs err = {max_err})")
    print("KERNEL_OK")
</pallas_src>

<mosaic_0001>
module attributes {stable_mosaic.version = 11 : i64} {
  func.func @generator_kernel(%arg0: i32, %arg1: memref<512x128xbf16, #tpu.memory_space<vmem>>, %arg2: memref<128x512xbf16, #tpu.memory_space<vmem>>, %arg3: memref<1x512xbf16, #tpu.memory_space<vmem>>, %arg4: memref<512x256xbf16, #tpu.memory_space<vmem>>, %arg5: memref<1x256xbf16, #tpu.memory_space<vmem>>, %arg6: memref<256x512xbf16, #tpu.memory_space<vmem>>, %arg7: memref<1x512xbf16, #tpu.memory_space<vmem>>, %arg8: memref<512x128xbf16, #tpu.memory_space<vmem>>, %arg9: memref<1x128xf32, #tpu.memory_space<vmem>>, %arg10: memref<512x128xf32, #tpu.memory_space<vmem>>) attributes {dimension_semantics = [#tpu.dimension_semantics<parallel>], iteration_bounds = array<i64: 1>, scalar_prefetch = 0 : i64, scratch_operands = 0 : i64, tpu.core_type = #tpu.core_type<tc>, window_params = [{transform_indices = @transform_0, window_bounds = array<i64: 512, 128>}, {pipeline_mode = #tpu.pipeline_mode<synchronous>, transform_indices = @transform_1, window_bounds = array<i64: 128, 512>}, {pipeline_mode = #tpu.pipeline_mode<synchronous>, transform_indices = @transform_2, window_bounds = array<i64: 1, 512>}, {pipeline_mode = #tpu.pipeline_mode<synchronous>, transform_indices = @transform_3, window_bounds = array<i64: 512, 256>}, {pipeline_mode = #tpu.pipeline_mode<synchronous>, transform_indices = @transform_4, window_bounds = array<i64: 1, 256>}, {pipeline_mode = #tpu.pipeline_mode<synchronous>, transform_indices = @transform_5, window_bounds = array<i64: 256, 512>}, {pipeline_mode = #tpu.pipeline_mode<synchronous>, transform_indices = @transform_6, window_bounds = array<i64: 1, 512>}, {pipeline_mode = #tpu.pipeline_mode<synchronous>, transform_indices = @transform_7, window_bounds = array<i64: 512, 128>}, {pipeline_mode = #tpu.pipeline_mode<synchronous>, transform_indices = @transform_8, window_bounds = array<i64: 1, 128>}, {transform_indices = @transform_9, window_bounds = array<i64: 512, 128>}]} {
    %c0 = arith.constant 0 : index
    %c0_0 = arith.constant 0 : index
    %0 = vector.load %arg1[%c0, %c0_0] : memref<512x128xbf16, #tpu.memory_space<vmem>>, vector<512x128xbf16>
    %c0_1 = arith.constant 0 : index
    %c0_2 = arith.constant 0 : index
    %1 = vector.load %arg2[%c0_1, %c0_2] : memref<128x512xbf16, #tpu.memory_space<vmem>>, vector<128x512xbf16>
    %cst = arith.constant dense<0.000000e+00> : vector<512x512xf32>
    %2 = tpu.matmul %0, %1, %cst {dimension_numbers = #tpu.dot_dimension_numbers<[1], [0], [0], [1], [0, 0, 1, 1], [], []>} : vector<512x128xbf16>, vector<128x512xbf16>, vector<512x512xf32> -> vector<512x512xf32>
    %3 = arith.truncf %2 : vector<512x512xf32> to vector<512x512xbf16>
    %c0_3 = arith.constant 0 : index
    %c0_4 = arith.constant 0 : index
    %4 = vector.load %arg3[%c0_3, %c0_4] : memref<1x512xbf16, #tpu.memory_space<vmem>>, vector<1x512xbf16>
    %5 = vector.broadcast %4 : vector<1x512xbf16> to vector<512x512xbf16>
    %6 = arith.addf %3, %5 : vector<512x512xbf16>
    %cst_5 = arith.constant 2.001950e-01 : bf16
    %7 = vector.broadcast %cst_5 : bf16 to vector<512x512xbf16>
    %8 = arith.mulf %6, %7 : vector<512x512xbf16>
    %9 = arith.maximumf %6, %8 : vector<512x512xbf16>
    %c0_6 = arith.constant 0 : index
    %c0_7 = arith.constant 0 : index
    %10 = vector.load %arg4[%c0_6, %c0_7] : memref<512x256xbf16, #tpu.memory_space<vmem>>, vector<512x256xbf16>
    %cst_8 = arith.constant dense<0.000000e+00> : vector<512x256xf32>
    %11 = tpu.matmul %9, %10, %cst_8 {dimension_numbers = #tpu.dot_dimension_numbers<[1], [0], [0], [1], [0, 0, 1, 1], [], []>} : vector<512x512xbf16>, vector<512x256xbf16>, vector<512x256xf32> -> vector<512x256xf32>
    %12 = arith.truncf %11 : vector<512x256xf32> to vector<512x256xbf16>
    %c0_9 = arith.constant 0 : index
    %c0_10 = arith.constant 0 : index
    %13 = vector.load %arg5[%c0_9, %c0_10] : memref<1x256xbf16, #tpu.memory_space<vmem>>, vector<1x256xbf16>
    %14 = vector.broadcast %13 : vector<1x256xbf16> to vector<512x256xbf16>
    %15 = arith.addf %12, %14 : vector<512x256xbf16>
    %cst_11 = arith.constant 2.001950e-01 : bf16
    %16 = vector.broadcast %cst_11 : bf16 to vector<512x256xbf16>
    %17 = arith.mulf %15, %16 : vector<512x256xbf16>
    %18 = arith.maximumf %15, %17 : vector<512x256xbf16>
    %c0_12 = arith.constant 0 : index
    %c0_13 = arith.constant 0 : index
    %19 = vector.load %arg6[%c0_12, %c0_13] : memref<256x512xbf16, #tpu.memory_space<vmem>>, vector<256x512xbf16>
    %cst_14 = arith.constant dense<0.000000e+00> : vector<512x512xf32>
    %20 = tpu.matmul %18, %19, %cst_14 {dimension_numbers = #tpu.dot_dimension_numbers<[1], [0], [0], [1], [0, 0, 1, 1], [], []>} : vector<512x256xbf16>, vector<256x512xbf16>, vector<512x512xf32> -> vector<512x512xf32>
    %21 = arith.truncf %20 : vector<512x512xf32> to vector<512x512xbf16>
    %c0_15 = arith.constant 0 : index
    %c0_16 = arith.constant 0 : index
    %22 = vector.load %arg7[%c0_15, %c0_16] : memref<1x512xbf16, #tpu.memory_space<vmem>>, vector<1x512xbf16>
    %23 = vector.broadcast %22 : vector<1x512xbf16> to vector<512x512xbf16>
    %24 = arith.addf %21, %23 : vector<512x512xbf16>
    %cst_17 = arith.constant 2.001950e-01 : bf16
    %25 = vector.broadcast %cst_17 : bf16 to vector<512x512xbf16>
    %26 = arith.mulf %24, %25 : vector<512x512xbf16>
    %27 = arith.maximumf %24, %26 : vector<512x512xbf16>
    %c0_18 = arith.constant 0 : index
    %c0_19 = arith.constant 0 : index
    %28 = vector.load %arg8[%c0_18, %c0_19] : memref<512x128xbf16, #tpu.memory_space<vmem>>, vector<512x128xbf16>
    %cst_20 = arith.constant dense<0.000000e+00> : vector<512x128xf32>
    %29 = tpu.matmul %27, %28, %cst_20 {dimension_numbers = #tpu.dot_dimension_numbers<[1], [0], [0], [1], [0, 0, 1, 1], [], []>} : vector<512x512xbf16>, vector<512x128xbf16>, vector<512x128xf32> -> vector<512x128xf32>
    %c0_21 = arith.constant 0 : index
    %c0_22 = arith.constant 0 : index
    %30 = vector.load %arg9[%c0_21, %c0_22] : memref<1x128xf32, #tpu.memory_space<vmem>>, vector<1x128xf32>
    %31 = vector.broadcast %30 : vector<1x128xf32> to vector<512x128xf32>
    %32 = arith.addf %29, %31 : vector<512x128xf32>
    %c0_23 = arith.constant 0 : index
    %c0_24 = arith.constant 0 : index
    %33 = vector.load %arg10[%c0_23, %c0_24] : memref<512x128xf32, #tpu.memory_space<vmem>>, vector<512x128xf32>
    tpu.vector_store %arg10[%c0_23, %c0_24], %32 {strides = array<i32>} : memref<512x128xf32, #tpu.memory_space<vmem>>, vector<512x128xf32>,
    return
  }
  func.func @transform_0(%arg0: i32) -> (i32, i32) {
    %c0_i32 = arith.constant 0 : i32
    %c0_i32_0 = arith.constant 0 : i32
    return %arg0, %c0_i32 : i32, i32
  }
  func.func @transform_1(%arg0: i32) -> (i32, i32) {
    %c0_i32 = arith.constant 0 : i32
    %c0_i32_0 = arith.constant 0 : i32
    %c0_i32_1 = arith.constant 0 : i32
    return %c0_i32, %c0_i32_0 : i32, i32
  }
  func.func @transform_2(%arg0: i32) -> (i32, i32) {
    %c0_i32 = arith.constant 0 : i32
    %c0_i32_0 = arith.constant 0 : i32
    %c0_i32_1 = arith.constant 0 : i32
    return %c0_i32, %c0_i32_0 : i32, i32
  }
  func.func @transform_3(%arg0: i32) -> (i32, i32) {
    %c0_i32 = arith.constant 0 : i32
    %c0_i32_0 = arith.constant 0 : i32
    %c0_i32_1 = arith.constant 0 : i32
    return %c0_i32, %c0_i32_0 : i32, i32
  }
  func.func @transform_4(%arg0: i32) -> (i32, i32) {
    %c0_i32 = arith.constant 0 : i32
    %c0_i32_0 = arith.constant 0 : i32
    %c0_i32_1 = arith.constant 0 : i32
    return %c0_i32, %c0_i32_0 : i32, i32
  }
  func.func @transform_5(%arg0: i32) -> (i32, i32) {
    %c0_i32 = arith.constant 0 : i32
    %c0_i32_0 = arith.constant 0 : i32
    %c0_i32_1 = arith.constant 0 : i32
    return %c0_i32, %c0_i32_0 : i32, i32
  }
  func.func @transform_6(%arg0: i32) -> (i32, i32) {
    %c0_i32 = arith.constant 0 : i32
    %c0_i32_0 = arith.constant 0 : i32
    %c0_i32_1 = arith.constant 0 : i32
    return %c0_i32, %c0_i32_0 : i32, i32
  }
  func.func @transform_7(%arg0: i32) -> (i32, i32) {
    %c0_i32 = arith.constant 0 : i32
    %c0_i32_0 = arith.constant 0 : i32
    %c0_i32_1 = arith.constant 0 : i32
    return %c0_i32, %c0_i32_0 : i32, i32
  }
  func.func @transform_8(%arg0: i32) -> (i32, i32) {
    %c0_i32 = arith.constant 0 : i32
    %c0_i32_0 = arith.constant 0 : i32
    %c0_i32_1 = arith.constant 0 : i32
    return %c0_i32, %c0_i32_0 : i32, i32
  }
  func.func @transform_9(%arg0: i32) -> (i32, i32) {
    %c0_i32 = arith.constant 0 : i32
    %c0_i32_0 = arith.constant 0 : i32
    return %arg0, %c0_i32 : i32, i32
  }
}

</mosaic_0001>

<llo_original>
// kernel: _generator_forward_impl.1
$region0: #{_generator_forward_impl.1}
  #allocation0 [shape = 'u32[]', space=smem, size = 0x4, offset = 0x4, fixed_abs, tag = 'smem constant byte address 0x4 - core index']
  #allocation1 [shape = 'u32[144,128]{1,0:T(1,128)}', space=vmem, size = 0x12000, scoped, tag = 'internal scratch']
  %s0 = inlined_call_operand.vmem [shape: bf16[512,128], index: 0, kind: input, shape index: {}]
  %s1 = inlined_call_operand.vmem [shape: bf16[128,512], index: 1, kind: input, shape index: {}]
  %s2 = inlined_call_operand.vmem [shape: bf16[1,512], index: 2, kind: input, shape index: {}]
  %s3 = inlined_call_operand.vmem [shape: bf16[512,256], index: 3, kind: input, shape index: {}]
  %s4 = inlined_call_operand.vmem [shape: bf16[1,256], index: 4, kind: input, shape index: {}]
  %s5 = inlined_call_operand.vmem [shape: bf16[256,512], index: 5, kind: input, shape index: {}]
  %s6 = inlined_call_operand.vmem [shape: bf16[1,512], index: 6, kind: input, shape index: {}]
  %s7 = inlined_call_operand.vmem [shape: bf16[512,128], index: 7, kind: input, shape index: {}]
  %s8 = inlined_call_operand.vmem [shape: f32[1,128], index: 8, kind: input, shape index: {}]
  %s9 = inlined_call_operand.vmem [shape: f32[512,128], index: 9, kind: output, shape index: {}]
  %s10 = sld [smem:[#allocation0]]
  $region46: #{_generator_forward_impl.1} parent=0
    _
  %s12 = ssub.s32 1, %s10
  %s13 = scalar_select 0, %s12, %s10
  // Predicated region
  $region2: #{_generator_forward_impl.1} parent=0 // pred_check
    _
  $region3: #{_generator_forward_impl.1} parent=0 // pred_check_branch
    %15 = sbr.rel (0) target = $region5
  $region4: #{_generator_forward_impl.1} parent=0 // pred_region
    _
  $region5: #{_generator_forward_impl.1} parent=0 // pred_fallthru
    _
  // Predicated region
  $region6: #{_generator_forward_impl.1} parent=0 // pred_check
    _
  $region7: #{_generator_forward_impl.1} parent=0 // pred_check_branch
    %17 = sbr.rel (0) target = $region9
  $region8: #{_generator_forward_impl.1} parent=0 // pred_region
    _
  $region9: #{_generator_forward_impl.1} parent=0 // pred_fallthru
    _
  // Predicated region
  $region10: #{_generator_forward_impl.1} parent=0 // pred_check
    _
  $region11: #{_generator_forward_impl.1} parent=0 // pred_check_branch
    %19 = sbr.rel (0) target = $region13
  $region12: #{_generator_forward_impl.1} parent=0 // pred_region
    _
  $region13: #{_generator_forward_impl.1} parent=0 // pred_fallthru
    _
  // Predicated region
  $region14: #{_generator_forward_impl.1} parent=0 // pred_check
    _
  $region15: #{_generator_forward_impl.1} parent=0 // pred_check_branch
    %21 = sbr.rel (0) target = $region17
  $region16: #{_generator_forward_impl.1} parent=0 // pred_region
    _
  $region17: #{_generator_forward_impl.1} parent=0 // pred_fallthru
    _
  // Predicated region
  $region18: #{_generator_forward_impl.1} parent=0 // pred_check
    _
  $region19: #{_generator_forward_impl.1} parent=0 // pred_check_branch
    %23 = sbr.rel (0) target = $region21
  $region20: #{_generator_forward_impl.1} parent=0 // pred_region
    _
  $region21: #{_generator_forward_impl.1} parent=0 // pred_fallthru
    _
  // Predicated region
  $region22: #{_generator_forward_impl.1} parent=0 // pred_check
    _
  $region23: #{_generator_forward_impl.1} parent=0 // pred_check_branch
    %25 = sbr.rel (0) target = $region25
  $region24: #{_generator_forward_impl.1} parent=0 // pred_region
    _
  $region25: #{_generator_forward_impl.1} parent=0 // pred_fallthru
    _
  // Predicated region
  $region26: #{_generator_forward_impl.1} parent=0 // pred_check
    _
  $region27: #{_generator_forward_impl.1} parent=0 // pred_check_branch
    %27 = sbr.rel (0) target = $region29
  $region28: #{_generator_forward_impl.1} parent=0 // pred_region
    _
  $region29: #{_generator_forward_impl.1} parent=0 // pred_fallthru
    _
  // Predicated region
  $region30: #{_generator_forward_impl.1} parent=0 // pred_check
    _
  $region31: #{_generator_forward_impl.1} parent=0 // pred_check_branch
    %29 = sbr.rel (0) target = $region33
  $region32: #{_generator_forward_impl.1} parent=0 // pred_region
    _
  $region33: #{_generator_forward_impl.1} parent=0 // pred_fallthru
    _
  // Predicated region
  $region34: #{_generator_forward_impl.1} parent=0 // pred_check
    _
  $region35: #{_generator_forward_impl.1} parent=0 // pred_check_branch
    %31 = sbr.rel (0) target = $region37
  $region36: #{_generator_forward_impl.1} parent=0 // pred_region
    _
  $region37: #{_generator_forward_impl.1} parent=0 // pred_fallthru
    _
  %v34 = vld [vmem:[%s0] sm:$0xf]
  %v35 = vld [vmem:[%s0 + $0x4] sm:$0xf]
  %v36 = vld [vmem:[%s0 + $0x8] sm:$0xf]
  %v37 = vld [vmem:[%s0 + $0xc] sm:$0xf]
  %v38 = vld [vmem:[%s0 + $0x10] sm:$0xf]
  %v39 = vld [vmem:[%s0 + $0x14] sm:$0xf]
  %v40 = vld [vmem:[%s0 + $0x18] sm:$0xf]
  %v41 = vld [vmem:[%s0 + $0x1c] sm:$0xf]
  %v42 = vld [vmem:[%s0 + $0x20] sm:$0xf]
  %v43 = vld [vmem:[%s0 + $0x24] sm:$0xf]
  %v44 = vld [vmem:[%s0 + $0x28] sm:$0xf]
  %v45 = vld [vmem:[%s0 + $0x2c] sm:$0xf]
  %v46 = vld [vmem:[%s0 + $0x30] sm:$0xf]
  %v47 = vld [vmem:[%s0 + $0x34] sm:$0xf]
  %v48 = vld [vmem:[%s0 + $0x38] sm:$0xf]
  %v49 = vld [vmem:[%s0 + $0x3c] sm:$0xf]
  %v50 = vld [vmem:[%s0 + $0x40] sm:$0xf]
  %v51 = vld [vmem:[%s0 + $0x44] sm:$0xf]
  %v52 = vld [vmem:[%s0 + $0x48] sm:$0xf]
  %v53 = vld [vmem:[%s0 + $0x4c] sm:$0xf]
  %v54 = vld [vmem:[%s0 + $0x50] sm:$0xf]
  %v55 = vld [vmem:[%s0 + $0x54] sm:$0xf]
  %v56 = vld [vmem:[%s0 + $0x58] sm:$0xf]
  %v57 = vld [vmem:[%s0 + $0x5c] sm:$0xf]
  %v58 = vld [vmem:[%s0 + $0x60] sm:$0xf]
  %v59 = vld [vmem:[%s0 + $0x64] sm:$0xf]
  %v60 = vld [vmem:[%s0 + $0x68] sm:$0xf]
  %v61 = vld [vmem:[%s0 + $0x6c] sm:$0xf]
  %v62 = vld [vmem:[%s0 + $0x70] sm:$0xf]
  %v63 = vld [vmem:[%s0 + $0x74] sm:$0xf]
  %v64 = vld [vmem:[%s0 + $0x78] sm:$0xf]
  %v65 = vld [vmem:[%s0 + $0x7c] sm:$0xf]
  %v66 = vld [vmem:[%s0 + $0x80] sm:$0xf]
  %v67 = vld [vmem:[%s0 + $0x84] sm:$0xf]
  %v68 = vld [vmem:[%s0 + $0x88] sm:$0xf]
  %v69 = vld [vmem:[%s0 + $0x8c] sm:$0xf]
  %v70 = vld [vmem:[%s0 + $0x90] sm:$0xf]
  %v71 = vld [vmem:[%s0 + $0x94] sm:$0xf]
  %v72 = vld [vmem:[%s0 + $0x98] sm:$0xf]
  %v73 = vld [vmem:[%s0 + $0x9c] sm:$0xf]
  %v74 = vld [vmem:[%s0 + $0xa0] sm:$0xf]
  %v75 = vld [vmem:[%s0 + $0xa4] sm:$0xf]
  %v76 = vld [vmem:[%s0 + $0xa8] sm:$0xf]
  %v77 = vld [vmem:[%s0 + $0xac] sm:$0xf]
  %v78 = vld [vmem:[%s0 + $0xb0] sm:$0xf]
  %v79 = vld [vmem:[%s0 + $0xb4] sm:$0xf]
  %v80 = vld [vmem:[%s0 + $0xb8] sm:$0xf]
  %v81 = vld [vmem:[%s0 + $0xbc] sm:$0xf]
  %v82 = vld [vmem:[%s0 + $0xc0] sm:$0xf]
  %v83 = vld [vmem:[%s0 + $0xc4] sm:$0xf]
  %v84 = vld [vmem:[%s0 + $0xc8] sm:$0xf]
  %v85 = vld [vmem:[%s0 + $0xcc] sm:$0xf]
  %v86 = vld [vmem:[%s0 + $0xd0] sm:$0xf]
  %v87 = vld [vmem:[%s0 + $0xd4] sm:$0xf]
  %v88 = vld [vmem:[%s0 + $0xd8] sm:$0xf]
  %v89 = vld [vmem:[%s0 + $0xdc] sm:$0xf]
  %v90 = vld [vmem:[%s0 + $0xe0] sm:$0xf]
  %v91 = vld [vmem:[%s0 + $0xe4] sm:$0xf]
  %v92 = vld [vmem:[%s0 + $0xe8] sm:$0xf]
  %v93 = vld [vmem:[%s0 + $0xec] sm:$0xf]
  %v94 = vld [vmem:[%s0 + $0xf0] sm:$0xf]
  %v95 = vld [vmem:[%s0 + $0xf4] sm:$0xf]
  %v96 = vld [vmem:[%s0 + $0xf8] sm:$0xf]
  %v97 = vld [vmem:[%s0 + $0xfc] sm:$0xf]
  %v98 = vld [vmem:[%s1] sm:$0xff]
  %v99 = vld [vmem:[%s1 + $0x8] sm:$0xff]
  %v100 = vld [vmem:[%s1 + $0x10] sm:$0xff]
  %v101 = vld [vmem:[%s1 + $0x18] sm:$0xff]
  %v102 = vld [vmem:[%s1 + $0x20] sm:$0xff]
  %v103 = vld [vmem:[%s1 + $0x28] sm:$0xff]
  %v104 = vld [vmem:[%s1 + $0x30] sm:$0xff]
  %v105 = vld [vmem:[%s1 + $0x38] sm:$0xff]
  %v106 = vld [vmem:[%s1 + $0x40] sm:$0xff]
  %v107 = vld [vmem:[%s1 + $0x48] sm:$0xff]
  %v108 = vld [vmem:[%s1 + $0x50] sm:$0xff]
  %v109 = vld [vmem:[%s1 + $0x58] sm:$0xff]
  %v110 = vld [vmem:[%s1 + $0x60] sm:$0xff]
  %v111 = vld [vmem:[%s1 + $0x68] sm:$0xff]
  %v112 = vld [vmem:[%s1 + $0x70] sm:$0xff]
  %v113 = vld [vmem:[%s1 + $0x78] sm:$0xff]
  %v114 = vld [vmem:[%s1 + $0x80] sm:$0xff]
  %v115 = vld [vmem:[%s1 + $0x88] sm:$0xff]
  %v116 = vld [vmem:[%s1 + $0x90] sm:$0xff]
  %v117 = vld [vmem:[%s1 + $0x98] sm:$0xff]
  %v118 = vld [vmem:[%s1 + $0xa0] sm:$0xff]
  %v119 = vld [vmem:[%s1 + $0xa8] sm:$0xff]
  %v120 = vld [vmem:[%s1 + $0xb0] sm:$0xff]
  %v121 = vld [vmem:[%s1 + $0xb8] sm:$0xff]
  %v122 = vld [vmem:[%s1 + $0xc0] sm:$0xff]
  %v123 = vld [vmem:[%s1 + $0xc8] sm:$0xff]
  %v124 = vld [vmem:[%s1 + $0xd0] sm:$0xff]
  %v125 = vld [vmem:[%s1 + $0xd8] sm:$0xff]
  %v126 = vld [vmem:[%s1 + $0xe0] sm:$0xff]
  %v127 = vld [vmem:[%s1 + $0xe8] sm:$0xff]
  %v128 = vld [vmem:[%s1 + $0xf0] sm:$0xff]
  %v129 = vld [vmem:[%s1 + $0xf8] sm:$0xff]
  %v194 = vunpack.c.l.b16 %v34
  %v195 = vunpack.c.l.b16 %v35
  %v196 = vunpack.c.l.b16 %v36
  %v197 = vunpack.c.l.b16 %v37
  %v198 = vunpack.c.l.b16 %v38
  %v199 = vunpack.c.l.b16 %v39
  %v200 = vunpack.c.l.b16 %v40
  %v201 = vunpack.c.l.b16 %v41
  %v202 = vunpack.c.l.b16 %v42
  %v203 = vunpack.c.l.b16 %v43
  %v204 = vunpack.c.l.b16 %v44
  %v205 = vunpack.c.l.b16 %v45
  %v206 = vunpack.c.l.b16 %v46
  %v207 = vunpack.c.l.b16 %v47
  %v208 = vunpack.c.l.b16 %v48
  %v209 = vunpack.c.l.b16 %v49
  %v210 = vunpack.c.l.b16 %v50
  %v211 = vunpack.c.l.b16 %v51
  %v212 = vunpack.c.l.b16 %v52
  %v213 = vunpack.c.l.b16 %v53
  %v214 = vunpack.c.l.b16 %v54
  %v215 = vunpack.c.l.b16 %v55
  %v216 = vunpack.c.l.b16 %v56
  %v217 = vunpack.c.l.b16 %v57
  %v218 = vunpack.c.l.b16 %v58
  %v219 = vunpack.c.l.b16 %v59
  %v220 = vunpack.c.l.b16 %v60
  %v221 = vunpack.c.l.b16 %v61
  %v222 = vunpack.c.l.b16 %v62
  %v223 = vunpack.c.l.b16 %v63
  %v224 = vunpack.c.l.b16 %v64
  %v225 = vunpack.c.l.b16 %v65
  %v226 = vunpack.c.l.b16 %v66
  %v227 = vunpack.c.l.b16 %v67
  %v228 = vunpack.c.l.b16 %v68
  %v229 = vunpack.c.l.b16 %v69
  %v230 = vunpack.c.l.b16 %v70
  %v231 = vunpack.c.l.b16 %v71
  %v232 = vunpack.c.l.b16 %v72
  %v233 = vunpack.c.l.b16 %v73
  %v234 = vunpack.c.l.b16 %v74
  %v235 = vunpack.c.l.b16 %v75
  %v236 = vunpack.c.l.b16 %v76
  %v237 = vunpack.c.l.b16 %v77
  %v238 = vunpack.c.l.b16 %v78
  %v239 = vunpack.c.l.b16 %v79
  %v240 = vunpack.c.l.b16 %v80
  %v241 = vunpack.c.l.b16 %v81
  %v242 = vunpack.c.l.b16 %v82
  %v243 = vunpack.c.l.b16 %v83
  %v244 = vunpack.c.l.b16 %v84
  %v245 = vunpack.c.l.b16 %v85
  %v246 = vunpack.c.l.b16 %v86
  %v247 = vunpack.c.l.b16 %v87
  %v248 = vunpack.c.l.b16 %v88
  %v249 = vunpack.c.l.b16 %v89
  %v250 = vunpack.c.l.b16 %v90
  %v251 = vunpack.c.l.b16 %v91
  %v252 = vunpack.c.l.b16 %v92
  %v253 = vunpack.c.l.b16 %v93
  %v254 = vunpack.c.l.b16 %v94
  %v255 = vunpack.c.l.b16 %v95
  %v256 = vunpack.c.l.b16 %v96
  %v257 = vunpack.c.l.b16 %v97
  %v258 = vpack.c.b16 %v195, %v194
  %v259 = vpack.c.b16 %v197, %v196
  %v260 = vpack.c.b16 %v199, %v198
  %v261 = vpack.c.b16 %v201, %v200
  %v262 = vpack.c.b16 %v203, %v202
  %v263 = vpack.c.b16 %v205, %v204
  %v264 = vpack.c.b16 %v207, %v206
  %v265 = vpack.c.b16 %v209, %v208
  %v266 = vpack.c.b16 %v211, %v210
  %v267 = vpack.c.b16 %v213, %v212
  %v268 = vpack.c.b16 %v215, %v214
  %v269 = vpack.c.b16 %v217, %v216
  %v270 = vpack.c.b16 %v219, %v218
  %v271 = vpack.c.b16 %v221, %v220
  %v272 = vpack.c.b16 %v223, %v222
  %v273 = vpack.c.b16 %v225, %v224
  %v274 = vpack.c.b16 %v227, %v226
  %v275 = vpack.c.b16 %v229, %v228
  %v276 = vpack.c.b16 %v231, %v230
  %v277 = vpack.c.b16 %v233, %v232
  %v278 = vpack.c.b16 %v235, %v234
  %v279 = vpack.c.b16 %v237, %v236
  %v280 = vpack.c.b16 %v239, %v238
  %v281 = vpack.c.b16 %v241, %v240
  %v282 = vpack.c.b16 %v243, %v242
  %v283 = vpack.c.b16 %v245, %v244
  %v284 = vpack.c.b16 %v247, %v246
  %v285 = vpack.c.b16 %v249, %v248
  %v286 = vpack.c.b16 %v251, %v250
  %v287 = vpack.c.b16 %v253, %v252
  %v288 = vpack.c.b16 %v255, %v254
  %v289 = vpack.c.b16 %v257, %v256
  %v354 = vunpack.c.l.b16 %v98
  %v355 = vunpack.c.h.b16 %v98
  %v356 = vunpack.c.l.b16 %v99
  %v357 = vunpack.c.h.b16 %v99
  %v358 = vunpack.c.l.b16 %v100
  %v359 = vunpack.c.h.b16 %v100
  %v360 = vunpack.c.l.b16 %v101
  %v361 = vunpack.c.h.b16 %v101
  %v362 = vunpack.c.l.b16 %v102
  %v363 = vunpack.c.h.b16 %v102
  %v364 = vunpack.c.l.b16 %v103
  %v365 = vunpack.c.h.b16 %v103
  %v366 = vunpack.c.l.b16 %v104
  %v367 = vunpack.c.h.b16 %v104
  %v368 = vunpack.c.l.b16 %v105
  %v369 = vunpack.c.h.b16 %v105
  %v370 = vunpack.c.l.b16 %v106
  %v371 = vunpack.c.h.b16 %v106
  %v372 = vunpack.c.l.b16 %v107
  %v373 = vunpack.c.h.b16 %v107
  %v374 = vunpack.c.l.b16 %v108
  %v375 = vunpack.c.h.b16 %v108
  %v376 = vunpack.c.l.b16 %v109
  %v377 = vunpack.c.h.b16 %v109
  %v378 = vunpack.c.l.b16 %v110
  %v379 = vunpack.c.h.b16 %v110
  %v380 = vunpack.c.l.b16 %v111
  %v381 = vunpack.c.h.b16 %v111
  %v382 = vunpack.c.l.b16 %v112
  %v383 = vunpack.c.h.b16 %v112
  %v384 = vunpack.c.l.b16 %v113
  %v385 = vunpack.c.h.b16 %v113
  %v386 = vunpack.c.l.b16 %v114
  %v387 = vunpack.c.h.b16 %v114
  %v388 = vunpack.c.l.b16 %v115
  %v389 = vunpack.c.h.b16 %v115
  %v390 = vunpack.c.l.b16 %v116
  %v391 = vunpack.c.h.b16 %v116
  %v392 = vunpack.c.l.b16 %v117
  %v393 = vunpack.c.h.b16 %v117
  %v394 = vunpack.c.l.b16 %v118
  %v395 = vunpack.c.h.b16 %v118
  %v396 = vunpack.c.l.b16 %v119
  %v397 = vunpack.c.h.b16 %v119
  %v398 = vunpack.c.l.b16 %v120
  %v399 = vunpack.c.h.b16 %v120
  %v400 = vunpack.c.l.b16 %v121
  %v401 = vunpack.c.h.b16 %v121
  %v402 = vunpack.c.l.b16 %v122
  %v403 = vunpack.c.h.b16 %v122
  %v404 = vunpack.c.l.b16 %v123
  %v405 = vunpack.c.h.b16 %v123
  %v406 = vunpack.c.l.b16 %v124
  %v407 = vunpack.c.h.b16 %v124
  %v408 = vunpack.c.l.b16 %v125
  %v409 = vunpack.c.h.b16 %v125
  %v410 = vunpack.c.l.b16 %v126
  %v411 = vunpack.c.h.b16 %v126
  %v412 = vunpack.c.l.b16 %v127
  %v413 = vunpack.c.h.b16 %v127
  %v414 = vunpack.c.l.b16 %v128
  %v415 = vunpack.c.h.b16 %v128
  %v416 = vunpack.c.l.b16 %v129
  %v417 = vunpack.c.h.b16 %v129
  %v418 = vpack.c.b16 %v358, %v354
  %v419 = vpack.c.b16 %v359, %v355
  %v420 = vpack.c.b16 %v360, %v356
  %v421 = vpack.c.b16 %v361, %v357
  %v422 = vpack.c.b16 %v366, %v362
  %v423 = vpack.c.b16 %v367, %v363
  %v424 = vpack.c.b16 %v368, %v364
  %v425 = vpack.c.b16 %v369, %v365
  %v426 = vpack.c.b16 %v374, %v370
  %v427 = vpack.c.b16 %v375, %v371
  %v428 = vpack.c.b16 %v376, %v372
  %v429 = vpack.c.b16 %v377, %v373
  %v430 = vpack.c.b16 %v382, %v378
  %v431 = vpack.c.b16 %v383, %v379
  %v432 = vpack.c.b16 %v384, %v380
  %v433 = vpack.c.b16 %v385, %v381
  %v434 = vpack.c.b16 %v390, %v386
  %v435 = vpack.c.b16 %v391, %v387
  %v436 = vpack.c.b16 %v392, %v388
  %v437 = vpack.c.b16 %v393, %v389
  %v438 = vpack.c.b16 %v398, %v394
  %v439 = vpack.c.b16 %v399, %v395
  %v440 = vpack.c.b16 %v400, %v396
  %v441 = vpack.c.b16 %v401, %v397
  %v442 = vpack.c.b16 %v406, %v402
  %v443 = vpack.c.b16 %v407, %v403
  %v444 = vpack.c.b16 %v408, %v404
  %v445 = vpack.c.b16 %v409, %v405
  %v446 = vpack.c.b16 %v414, %v410
  %v447 = vpack.c.b16 %v415, %v411
  %v448 = vpack.c.b16 %v416, %v412
  %v449 = vpack.c.b16 %v417, %v413
  %482 = vmatprep.subr.bf16.mxu0 %v419
  %483 = vmatpush1.bf16.msra.mxu0 %v418
  %484 = vmatprep.subr.bf16.mxu0 %v423
  %485 = vmatpush1.bf16.msra.mxu0 %v422
  %486 = vmatprep.subr.bf16.mxu0 %v427
  %487 = vmatpush1.bf16.msra.mxu0 %v426
  %488 = vmatprep.subr.bf16.mxu0 %v431
  %489 = vmatpush1.bf16.msra.mxu0 %v430
  %490 = vmatprep.subr.bf16.mxu0 %v435
  %491 = vmatpush1.bf16.msra.mxu0 %v434
  %492 = vmatprep.subr.bf16.mxu0 %v439
  %493 = vmatpush1.bf16.msra.mxu0 %v438
  %494 = vmatprep.subr.bf16.mxu0 %v443
  %495 = vmatpush1.bf16.msra.mxu0 %v442
  %496 = vmatprep.subr.bf16.mxu0 %v447
  %497 = vmatpush1.bf16.msra.mxu0 %v446
  %498 = vmatprep.subr.bf16.mxu0 0
  %499 = vmatpush1.bf16.msra.mxu0 0
  %500 = vmatprep.subr.bf16.mxu0 0
  %501 = vmatpush1.bf16.msra.mxu0 0
  %502 = vmatprep.subr.bf16.mxu0 0
  %503 = vmatpush1.bf16.msra.mxu0 0
  %504 = vmatprep.subr.bf16.mxu0 0
  %505 = vmatpush1.bf16.msra.mxu0 0
  %506 = vmatprep.subr.bf16.mxu0 0
  %507 = vmatpush1.bf16.msra.mxu0 0
  %508 = vmatprep.subr.bf16.mxu0 0
  %509 = vmatpush1.bf16.msra.mxu0 0
  %510 = vmatprep.subr.bf16.mxu0 0
  %511 = vmatpush1.bf16.msra.mxu0 0
  %512 = vmatprep.subr.bf16.mxu0 0
  %513 = vmatpush1.bf16.msra.mxu0 0
  %514 = vmatprep.mubr.bf16.mxu0 0
  %515 = vmatmul.mubr.bf16.gmra.mrb[0].mxu0 %v258
  %v516 = vpop.f32.mrb[0].mxu0
  %v517 = vadd.f32 0.0, %v516
  %v518 = vpop.f32.mrb[0].mxu0
  %v519 = vadd.f32 0.0, %v518
  %v520 = vpop.f32.mrb[0].mxu0
  %v521 = vadd.f32 0.0, %v520
  %v522 = vpop.f32.mrb[0].mxu0
  %v523 = vadd.f32 0.0, %v522
  %524 = vmatprep.mubr.bf16.mxu0 0
  %525 = vmatmul.mubr.bf16.gmra.mrb[0].mxu0 %v259
  %v526 = vpop.f32.mrb[0].mxu0
  %v527 = vadd.f32 0.0, %v526
  %v528 = vpop.f32.mrb[0].mxu0
  %v529 = vadd.f32 0.0, %v528
  %v530 = vpop.f32.mrb[0].mxu0
  %v531 = vadd.f32 0.0, %v530
  %v532 = vpop.f32.mrb[0].mxu0
  %v533 = vadd.f32 0.0, %v532
  %534 = vmatprep.mubr.bf16.mxu0 0
  %535 = vmatmul.mubr.bf16.gmra.mrb[0].mxu0 %v260
  %v536 = vpop.f32.mrb[0].mxu0
  %v537 = vadd.f32 0.0, %v536
  %v538 = vpop.f32.mrb[0].mxu0
  %v539 = vadd.f32 0.0, %v538
  %v540 = vpop.f32.mrb[0].mxu0
  %v541 = vadd.f32 0.0, %v540
  %v542 = vpop.f32.mrb[0].mxu0
  %v543 = vadd.f32 0.0, %v542
  %544 = vmatprep.mubr.bf16.mxu0 0
  %545 = vmatmul.mubr.bf16.gmra.mrb[0].mxu0 %v261
  %v546 = vpop.f32.mrb[0].mxu0
  %v547 = vadd.f32 0.0, %v546
  %v548 = vpop.f32.mrb[0].mxu0
  %v549 = vadd.f32 0.0, %v548
  %v550 = vpop.f32.mrb[0].mxu0
  %v551 = vadd.f32 0.0, %v550
  %v552 = vpop.f32.mrb[0].mxu0
  %v553 = vadd.f32 0.0, %v552
  %554 = vmatprep.mubr.bf16.mxu0 0
  %555 = vmatmul.mubr.bf16.gmra.mrb[0].mxu0 %v262
  %v556 = vpop.f32.mrb[0].mxu0
  %v557 = vadd.f32 0.0, %v556
  %v558 = vpop.f32.mrb[0].mxu0
  %v559 = vadd.f32 0.0, %v558
  %v560 = vpop.f32.mrb[0].mxu0
  %v561 = vadd.f32 0.0, %v560
  %v562 = vpop.f32.mrb[0].mxu0
  %v563 = vadd.f32 0.0, %v562
  %564 = vmatprep.mubr.bf16.mxu0 0
  %565 = vmatmul.mubr.bf16.gmra.mrb[0].mxu0 %v263
  %v566 = vpop.f32.mrb[0].mxu0
  %v567 = vadd.f32 0.0, %v566
  %v568 = vpop.f32.mrb[0].mxu0
  %v569 = vadd.f32 0.0, %v568
  %v570 = vpop.f32.mrb[0].mxu0
  %v571 = vadd.f32 0.0, %v570
  %v572 = vpop.f32.mrb[0].mxu0
  %v573 = vadd.f32 0.0, %v572
  %574 = vmatprep.mubr.bf16.mxu0 0
  %575 = vmatmul.mubr.bf16.gmra.mrb[0].mxu0 %v264
  %v576 = vpop.f32.mrb[0].mxu0
  %v577 = vadd.f32 0.0, %v576
  %v578 = vpop.f32.mrb[0].mxu0
  %v579 = vadd.f32 0.0, %v578
  %v580 = vpop.f32.mrb[0].mxu0
  %v581 = vadd.f32 0.0, %v580
  %v582 = vpop.f32.mrb[0].mxu0
  %v583 = vadd.f32 0.0, %v582
  %584 = vmatprep.mubr.bf16.mxu0 0
  %585 = vmatmul.mubr.bf16.gmra.mrb[0].mxu0 %v265
  %v586 = vpop.f32.mrb[0].mxu0
  %v587 = vadd.f32 0.0, %v586
  %v588 = vpop.f32.mrb[0].mxu0
  %v589 = vadd.f32 0.0, %v588
  %v590 = vpop.f32.mrb[0].mxu0
  %v591 = vadd.f32 0.0, %v590
  %v592 = vpop.f32.mrb[0].mxu0
  %v593 = vadd.f32 0.0, %v592
  %594 = vmatprep.mubr.bf16.mxu0 0
  %595 = vmatmul.mubr.bf16.gmra.mrb[0].mxu0 %v266
  %v596 = vpop.f32.mrb[0].mxu0
  %v597 = vadd.f32 0.0, %v596
  %v598 = vpop.f32.mrb[0].mxu0
  %v599 = vadd.f32 0.0, %v598
  %v600 = vpop.f32.mrb[0].mxu0
  %v601 = vadd.f32 0.0, %v600
  %v602 = vpop.f32.mrb[0].mxu0
  %v603 = vadd.f32 0.0, %v602
  %604 = vmatprep.mubr.bf16.mxu0 0
  %605 = vmatmul.mubr.bf16.gmra.mrb[0].mxu0 %v267
  %v606 = vpop.f32.mrb[0].mxu0
  %v607 = vadd.f32 0.0, %v606
  %v608 = vpop.f32.mrb[0].mxu0
  %v609 = vadd.f32 0.0, %v608
  %v610 = vpop.f32.mrb[0].mxu0
  %v611 = vadd.f32 0.0, %v610
  %v612 = vpop.f32.mrb[0].mxu0
  %v613 = vadd.f32 0.0, %v612
  %614 = vmatprep.mubr.bf16.mxu0 0
  %615 = vmatmul.mubr.bf16.gmra.mrb[0].mxu0 %v268
  %v616 = vpop.f32.mrb[0].mxu0
  %v617 = vadd.f32 0.0, %v616
  %v618 = vpop.f32.mrb[0].mxu0
  %v619 = vadd.f32 0.0, %v618
  %v620 = vpop.f32.mrb[0].mxu0
  %v621 = vadd.f32 0.0, %v620
  %v622 = vpop.f32.mrb[0].mxu0
  %v623 = vadd.f32 0.0, %v622
  %624 = vmatprep.mubr.bf16.mxu0 0
  %625 = vmatmul.mubr.bf16.gmra.mrb[0].mxu0 %v269
  %v626 = vpop.f32.mrb[0].mxu0
  %v627 = vadd.f32 0.0, %v626
  %v628 = vpop.f32.mrb[0].mxu0
  %v629 = vadd.f32 0.0, %v628
  %v630 = vpop.f32.mrb[0].mxu0
  %v631 = vadd.f32 0.0, %v630
  %v632 = vpop.f32.mrb[0].mxu0
  %v633 = vadd.f32 0.0, %v632
  %634 = vmatprep.mubr.bf16.mxu0 0
  %635 = vmatmul.mubr.bf16.gmra.mrb[0].mxu0 %v270
  %v636 = vpop.f32.mrb[0].mxu0
  %v637 = vadd.f32 0.0, %v636
  %v638 = vpop.f32.mrb[0].mxu0
  %v639 = vadd.f32 0.0, %v638
  %v640 = vpop.f32.mrb[0].mxu0
  %v641 = vadd.f32 0.0, %v640
  %v642 = vpop.f32.mrb[0].mxu0
  %v643 = vadd.f32 0.0, %v642
  %644 = vmatprep.mubr.bf16.mxu0 0
  %645 = vmatmul.mubr.bf16.gmra.mrb[0].mxu0 %v271
  %v646 = vpop.f32.mrb[0].mxu0
  %v647 = vadd.f32 0.0, %v646
  %v648 = vpop.f32.mrb[0].mxu0
  %v649 = vadd.f32 0.0, %v648
  %v650 = vpop.f32.mrb[0].mxu0
  %v651 = vadd.f32 0.0, %v650
  %v652 = vpop.f32.mrb[0].mxu0
  %v653 = vadd.f32 0.0, %v652
  %654 = vmatprep.mubr.bf16.mxu0 0
  %655 = vmatmul.mubr.bf16.gmra.mrb[0].mxu0 %v272
  %v656 = vpop.f32.mrb[0].mxu0
  %v657 = vadd.f32 0.0, %v656
  %v658 = vpop.f32.mrb[0].mxu0
  %v659 = vadd.f32 0.0, %v658
  %v660 = vpop.f32.mrb[0].mxu0
  %v661 = vadd.f32 0.0, %v660
  %v662 = vpop.f32.mrb[0].mxu0
  %v663 = vadd.f32 0.0, %v662
  %664 = vmatprep.mubr.bf16.mxu0 0
  %665 = vmatmul.mubr.bf16.gmra.mrb[0].mxu0 %v273
  %v666 = vpop.f32.mrb[0].mxu0
  %v667 = vadd.f32 0.0, %v666
  %v668 = vpop.f32.mrb[0].mxu0
  %v669 = vadd.f32 0.0, %v668
  %v670 = vpop.f32.mrb[0].mxu0
  %v671 = vadd.f32 0.0, %v670
  %v672 = vpop.f32.mrb[0].mxu0
  %v673 = vadd.f32 0.0, %v672
  %674 = vmatprep.mubr.bf16.mxu0 0
  %675 = vmatmul.mubr.bf16.gmra.mrb[0].mxu0 %v274
  %v676 = vpop.f32.mrb[0].mxu0
  %v677 = vadd.f32 0.0, %v676
  %v678 = vpop.f32.mrb[0].mxu0
  %v679 = vadd.f32 0.0, %v678
  %v680 = vpop.f32.mrb[0].mxu0
  %v681 = vadd.f32 0.0, %v680
  %v682 = vpop.f32.mrb[0].mxu0
  %v683 = vadd.f32 0.0, %v682
  %684 = vmatprep.mubr.bf16.mxu0 0
  %685 = vmatmul.mubr.bf16.gmra.mrb[0].mxu0 %v275
  %v686 = vpop.f32.mrb[0].mxu0
  %v687 = vadd.f32 0.0, %v686
  %v688 = vpop.f32.mrb[0].mxu0
  %v689 = vadd.f32 0.0, %v688
  %v690 = vpop.f32.mrb[0].mxu0
  %v691 = vadd.f32 0.0, %v690
  %v692 = vpop.f32.mrb[0].mxu0
  %v693 = vadd.f32 0.0, %v692
  %694 = vmatprep.mubr.bf16.mxu0 0
  %695 = vmatmul.mubr.bf16.gmra.mrb[0].mxu0 %v276
  %v696 = vpop.f32.mrb[0].mxu0
  %v697 = vadd.f32 0.0, %v696
  %v698 = vpop.f32.mrb[0].mxu0
  %v699 = vadd.f32 0.0, %v698
  %v700 = vpop.f32.mrb[0].mxu0
  %v701 = vadd.f32 0.0, %v700
  %v702 = vpop.f32.mrb[0].mxu0
  %v703 = vadd.f32 0.0, %v702
  %704 = vmatprep.mubr.bf16.mxu0 0
  %705 = vmatmul.mubr.bf16.gmra.mrb[0].mxu0 %v277
  %v706 = vpop.f32.mrb[0].mxu0
  %v707 = vadd.f32 0.0, %v706
  %v708 = vpop.f32.mrb[0].mxu0
  %v709 = vadd.f32 0.0, %v708
  %v710 = vpop.f32.mrb[0].mxu0
  %v711 = vadd.f32 0.0, %v710
  %v712 = vpop.f32.mrb[0].mxu0
  %v713 = vadd.f32 0.0, %v712
  %714 = vmatprep.mubr.bf16.mxu0 0
  %715 = vmatmul.mubr.bf16.gmra.mrb[0].mxu0 %v278
  %v716 = vpop.f32.mrb[0].mxu0
  %v717 = vadd.f32 0.0, %v716
  %v718 = vpop.f32.mrb[0].mxu0
  %v719 = vadd.f32 0.0, %v718
  %v720 = vpop.f32.mrb[0].mxu0
  %v721 = vadd.f32 0.0, %v720
  %v722 = vpop.f32.mrb[0].mxu0
  %v723 = vadd.f32 0.0, %v722
  %724 = vmatprep.mubr.bf16.mxu0 0
  %725 = vmatmul.mubr.bf16.gmra.mrb[0].mxu0 %v279
  %v726 = vpop.f32.mrb[0].mxu0
  %v727 = vadd.f32 0.0, %v726
  %v728 = vpop.f32.mrb[0].mxu0
  %v729 = vadd.f32 0.0, %v728
  %v730 = vpop.f32.mrb[0].mxu0
  %v731 = vadd.f32 0.0, %v730
  %v732 = vpop.f32.mrb[0].mxu0
  %v733 = vadd.f32 0.0, %v732
  %734 = vmatprep.mubr.bf16.mxu0 0
  %735 = vmatmul.mubr.bf16.gmra.mrb[0].mxu0 %v280
  %v736 = vpop.f32.mrb[0].mxu0
  %v737 = vadd.f32 0.0, %v736
  %v738 = vpop.f32.mrb[0].mxu0
  %v739 = vadd.f32 0.0, %v738
  %v740 = vpop.f32.mrb[0].mxu0
  %v741 = vadd.f32 0.0, %v740
  %v742 = vpop.f32.mrb[0].mxu0
  %v743 = vadd.f32 0.0, %v742
  %744 = vmatprep.mubr.bf16.mxu0 0
  %745 = vmatmul.mubr.bf16.gmra.mrb[0].mxu0 %v281
  %v746 = vpop.f32.mrb[0].mxu0
  %v747 = vadd.f32 0.0, %v746
  %v748 = vpop.f32.mrb[0].mxu0
  %v749 = vadd.f32 0.0, %v748
  %v750 = vpop.f32.mrb[0].mxu0
  %v751 = vadd.f32 0.0, %v750
  %v752 = vpop.f32.mrb[0].mxu0
  %v753 = vadd.f32 0.0, %v752
  %754 = vmatprep.mubr.bf16.mxu0 0
  %755 = vmatmul.mubr.bf16.gmra.mrb[0].mxu0 %v282
  %v756 = vpop.f32.mrb[0].mxu0
  %v757 = vadd.f32 0.0, %v756
  %v758 = vpop.f32.mrb[0].mxu0
  %v759 = vadd.f32 0.0, %v758
  %v760 = vpop.f32.mrb[0].mxu0
  %v761 = vadd.f32 0.0, %v760
  %v762 = vpop.f32.mrb[0].mxu0
  %v763 = vadd.f32 0.0, %v762
  %764 = vmatprep.mubr.bf16.mxu0 0
  %765 = vmatmul.mubr.bf16.gmra.mrb[0].mxu0 %v283
  %v766 = vpop.f32.mrb[0].mxu0
  %v767 = vadd.f32 0.0, %v766
  %v768 = vpop.f32.mrb[0].mxu0
  %v769 = vadd.f32 0.0, %v768
  %v770 = vpop.f32.mrb[0].mxu0
  %v771 = vadd.f32 0.0, %v770
  %v772 = vpop.f32.mrb[0].mxu0
  %v773 = vadd.f32 0.0, %v772
  %774 = vmatprep.mubr.bf16.mxu0 0
  %775 = vmatmul.mubr.bf16.gmra.mrb[0].mxu0 %v284
  %v776 = vpop.f32.mrb[0].mxu0
  %v777 = vadd.f32 0.0, %v776
  %v778 = vpop.f32.mrb[0].mxu0
  %v779 = vadd.f32 0.0, %v778
  %v780 = vpop.f32.mrb[0].mxu0
  %v781 = vadd.f32 0.0, %v780
  %v782 = vpop.f32.mrb[0].mxu0
  %v783 = vadd.f32 0.0, %v782
  %784 = vmatprep.mubr.bf16.mxu0 0
  %785 = vmatmul.mubr.bf16.gmra.mrb[0].mxu0 %v285
  %v786 = vpop.f32.mrb[0].mxu0
  %v787 = vadd.f32 0.0, %v786
  %v788 = vpop.f32.mrb[0].mxu0
  %v789 = vadd.f32 0.0, %v788
  %v790 = vpop.f32.mrb[0].mxu0
  %v791 = vadd.f32 0.0, %v790
  %v792 = vpop.f32.mrb[0].mxu0
  %v793 = vadd.f32 0.0, %v792
  %794 = vmatprep.mubr.bf16.mxu0 0
  %795 = vmatmul.mubr.bf16.gmra.mrb[0].mxu0 %v286
  %v796 = vpop.f32.mrb[0].mxu0
  %v797 = vadd.f32 0.0, %v796
  %v798 = vpop.f32.mrb[0].mxu0
  %v799 = vadd.f32 0.0, %v798
  %v800 = vpop.f32.mrb[0].mxu0
  %v801 = vadd.f32 0.0, %v800
  %v802 = vpop.f32.mrb[0].mxu0
  %v803 = vadd.f32 0.0, %v802
  %804 = vmatprep.mubr.bf16.mxu0 0
  %805 = vmatmul.mubr.bf16.gmra.mrb[0].mxu0 %v287
  %v806 = vpop.f32.mrb[0].mxu0
  %v807 = vadd.f32 0.0, %v806
  %v808 = vpop.f32.mrb[0].mxu0
  %v809 = vadd.f32 0.0, %v808
  %v810 = vpop.f32.mrb[0].mxu0
  %v811 = vadd.f32 0.0, %v810
  %v812 = vpop.f32.mrb[0].mxu0
  %v813 = vadd.f32 0.0, %v812
  %814 = vmatprep.mubr.bf16.mxu0 0
  %815 = vmatmul.mubr.bf16.gmra.mrb[0].mxu0 %v288
  %v816 = vpop.f32.mrb[0].mxu0
  %v817 = vadd.f32 0.0, %v816
  %v818 = vpop.f32.mrb[0].mxu0
  %v819 = vadd.f32 0.0, %v818
  %v820 = vpop.f32.mrb[0].mxu0
  %v821 = vadd.f32 0.0, %v820
  %v822 = vpop.f32.mrb[0].mxu0
  %v823 = vadd.f32 0.0, %v822
  %824 = vmatprep.mubr.bf16.mxu0 0
  %825 = vmatmul.mubr.bf16.gmra.mrb[0].mxu0 %v289
  %v826 = vpop.f32.mrb[0].mxu0
  %v827 = vadd.f32 0.0, %v826
  %v828 = vpop.f32.mrb[0].mxu0
  %v829 = vadd.f32 0.0, %v828
  %v830 = vpop.f32.mrb[0].mxu0
  %v831 = vadd.f32 0.0, %v830
  %v832 = vpop.f32.mrb[0].mxu0
  %v833 = vadd.f32 0.0, %v832
  %834 = vdwg.mxu0
  %835 = vmatprep.subr.bf16.mxu0 %v421
  %836 = vmatpush1.bf16.msra.mxu0 %v420
  %837 = vmatprep.subr.bf16.mxu0 %v425
  %838 = vmatpush1.bf16.msra.mxu0 %v424
  %839 = vmatprep.subr.bf16.mxu0 %v429
  %840 = vmatpush1.bf16.msra.mxu0 %v428
  %841 = vmatprep.subr.bf16.mxu0 %v433
  %842 = vmatpush1.bf16.msra.mxu0 %v432
  %843 = vmatprep.subr.bf16.mxu0 %v437
  %844 = vmatpush1.bf16.msra.mxu0 %v436
  %845 = vmatprep.subr.bf16.mxu0 %v441
  %846 = vmatpush1.bf16.msra.mxu0 %v440
  %847 = vmatprep.subr.bf16.mxu0 %v445
  %848 = vmatpush1.bf16.msra.mxu0 %v444
  %849 = vmatprep.subr.bf16.mxu0 %v449
  %850 = vmatpush1.bf16.msra.mxu0 %v448
  %851 = vmatprep.subr.bf16.mxu0 0
  %852 = vmatpush1.bf16.msra.mxu0 0
  %853 = vmatprep.subr.bf16.mxu0 0
  %854 = vmatpush1.bf16.msra.mxu0 0
  %855 = vmatprep.subr.bf16.mxu0 0
  %856 = vmatpush1.bf16.msra.mxu0 0
  %857 = vmatprep.subr.bf16.mxu0 0
  %858 = vmatpush1.bf16.msra.mxu0 0
  %859 = vmatprep.subr.bf16.mxu0 0
  %860 = vmatpush1.bf16.msra.mxu0 0
  %861 = vmatprep.subr.bf16.mxu0 0
  %862 = vmatpush1.bf16.msra.mxu0 0
  %863 = vmatprep.subr.bf16.mxu0 0
  %864 = vmatpush1.bf16.msra.mxu0 0
  %865 = vmatprep.subr.bf16.mxu0 0
  %866 = vmatpush1.bf16.msra.mxu0 0
  %867 = vmatprep.mubr.bf16.mxu0 0
  %868 = vmatmul.mubr.bf16.gmra.mrb[0].mxu0 %v258
  %v869 = vpop.f32.mrb[0].mxu0
  %v870 = vadd.f32 0.0, %v869
  %v871 = vpop.f32.mrb[0].mxu0
  %v872 = vadd.f32 0.0, %v871
  %v873 = vpop.f32.mrb[0].mxu0
  %v874 = vadd.f32 0.0, %v873
  %v875 = vpop.f32.mrb[0].mxu0
  %v876 = vadd.f32 0.0, %v875
  %877 = vmatprep.mubr.bf16.mxu0 0
  %878 = vmatmul.mubr.bf16.gmra.mrb[0].mxu0 %v259
  %v879 = vpop.f32.mrb[0].mxu0
  %v880 = vadd.f32 0.0, %v879
  %v881 = vpop.f32.mrb[0].mxu0
  %v882 = vadd.f32 0.0, %v881
  %v883 = vpop.f32.mrb[0].mxu0
  %v884 = vadd.f32 0.0, %v883
  %v885 = vpop.f32.mrb[0].mxu0
  %v886 = vadd.f32 0.0, %v885
  %887 = vmatprep.mubr.bf16.mxu0 0
  %888 = vmatmul.mubr.bf16.gmra.mrb[0].mxu0 %v260
  %v889 = vpop.f32.mrb[0].mxu0
  %v890 = vadd.f32 0.0, %v889
  %v891 = vpop.f32.mrb[0].mxu0
  %v892 = vadd.f32 0.0, %v891
  %v893 = vpop.f32.mrb[0].mxu0
  %v894 = vadd.f32 0.0, %v893
  %v895 = vpop.f32.mrb[0].mxu0
  %v896 = vadd.f32 0.0, %v895
  %897 = vmatprep.mubr.bf16.mxu0 0
  %898 = vmatmul.mubr.bf16.gmra.mrb[0].mxu0 %v261
  %v899 = vpop.f32.mrb[0].mxu0
  %v900 = vadd.f32 0.0, %v899
  %v901 = vpop.f32.mrb[0].mxu0
  %v902 = vadd.f32 0.0, %v901
  %v903 = vpop.f32.mrb[0].mxu0
  %v904 = vadd.f32 0.0, %v903
  %v905 = vpop.f32.mrb[0].mxu0
  %v906 = vadd.f32 0.0, %v905
  %907 = vmatprep.mubr.bf16.mxu0 0
  %908 = vmatmul.mubr.bf16.gmra.mrb[0].mxu0 %v262
  %v909 = vpop.f32.mrb[0].mxu0
  %v910 = vadd.f32 0.0, %v909
  %v911 = vpop.f32.mrb[0].mxu0
  %v912 = vadd.f32 0.0, %v911
  %v913 = vpop.f32.mrb[0].mxu0
  %v914 = vadd.f32 0.0, %v913
  %v915 = vpop.f32.mrb[0].mxu0
  %v916 = vadd.f32 0.0, %v915
  %917 = vmatprep.mubr.bf16.mxu0 0
  %918 = vmatmul.mubr.bf16.gmra.mrb[0].mxu0 %v263
  %v919 = vpop.f32.mrb[0].mxu0
  %v920 = vadd.f32 0.0, %v919
  %v921 = vpop.f32.mrb[0].mxu0
  %v922 = vadd.f32 0.0, %v921
  %v923 = vpop.f32.mrb[0].mxu0
  %v924 = vadd.f32 0.0, %v923
  %v925 = vpop.f32.mrb[0].mxu0
  %v926 = vadd.f32 0.0, %v925
  %927 = vmatprep.mubr.bf16.mxu0 0
  %928 = vmatmul.mubr.bf16.gmra.mrb[0].mxu0 %v264
  %v929 = vpop.f32.mrb[0].mxu0
  %v930 = vadd.f32 0.0, %v929
  %v931 = vpop.f32.mrb[0].mxu0
  %v932 = vadd.f32 0.0, %v931
  %v933 = vpop.f32.mrb[0].mxu0
  %v934 = vadd.f32 0.0, %v933
  %v935 = vpop.f32.mrb[0].mxu0
  %v936 = vadd.f32 0.0, %v935
  %937 = vmatprep.mubr.bf16.mxu0 0
  %938 = vmatmul.mubr.bf16.gmra.mrb[0].mxu0 %v265
  %v939 = vpop.f32.mrb[0].mxu0
  %v940 = vadd.f32 0.0, %v939
  %v941 = vpop.f32.mrb[0].mxu0
  %v942 = vadd.f32 0.0, %v941
  %v943 = vpop.f32.mrb[0].mxu0
  %v944 = vadd.f32 0.0, %v943
  %v945 = vpop.f32.mrb[0].mxu0
  %v946 = vadd.f32 0.0, %v945
  %947 = vmatprep.mubr.bf16.mxu0 0
  %948 = vmatmul.mubr.bf16.gmra.mrb[0].mxu0 %v266
  %v949 = vpop.f32.mrb[0].mxu0
  %v950 = vadd.f32 0.0, %v949
  %v951 = vpop.f32.mrb[0].mxu0
  %v952 = vadd.f32 0.0, %v951
  %v953 = vpop.f32.mrb[0].mxu0
  %v954 = vadd.f32 0.0, %v953
  %v955 = vpop.f32.mrb[0].mxu0
  %v956 = vadd.f32 0.0, %v955
  %957 = vmatprep.mubr.bf16.mxu0 0
  %958 = vmatmul.mubr.bf16.gmra.mrb[0].mxu0 %v267
  %v959 = vpop.f32.mrb[0].mxu0
  %v960 = vadd.f32 0.0, %v959
  %v961 = vpop.f32.mrb[0].mxu0
  %v962 = vadd.f32 0.0, %v961
  %v963 = vpop.f32.mrb[0].mxu0
  %v964 = vadd.f32 0.0, %v963
  %v965 = vpop.f32.mrb[0].mxu0
  %v966 = vadd.f32 0.0, %v965
  %967 = vmatprep.mubr.bf16.mxu0 0
  %968 = vmatmul.mubr.bf16.gmra.mrb[0].mxu0 %v268
  %v969 = vpop.f32.mrb[0].mxu0
  %v970 = vadd.f32 0.0, %v969
  %v971 = vpop.f32.mrb[0].mxu0
  %v972 = vadd.f32 0.0, %v971
  %v973 = vpop.f32.mrb[0].mxu0
  %v974 = vadd.f32 0.0, %v973
  %v975 = vpop.f32.mrb[0].mxu0
  %v976 = vadd.f32 0.0, %v975
  %977 = vmatprep.mubr.bf16.mxu0 0
  %978 = vmatmul.mubr.bf16.gmra.mrb[0].mxu0 %v269
  %v979 = vpop.f32.mrb[0].mxu0
  %v980 = vadd.f32 0.0, %v979
  %v981 = vpop.f32.mrb[0].mxu0
  %v982 = vadd.f32 0.0, %v981
  %v983 = vpop.f32.mrb[0].mxu0
  %v984 = vadd.f32 0.0, %v983
  %v985 = vpop.f32.mrb[0].mxu0
  %v986 = vadd.f32 0.0, %v985
  %987 = vmatprep.mubr.bf16.mxu0 0
  %988 = vmatmul.mubr.bf16.gmra.mrb[0].mxu0 %v270
  %v989 = vpop.f32.mrb[0].mxu0
  %v990 = vadd.f32 0.0, %v989
  %v991 = vpop.f32.mrb[0].mxu0
  %v992 = vadd.f32 0.0, %v991
  %v993 = vpop.f32.mrb[0].mxu0
  %v994 = vadd.f32 0.0, %v993
  %v995 = vpop.f32.mrb[0].mxu0
  %v996 = vadd.f32 0.0, %v995
  %997 = vmatprep.mubr.bf16.mxu0 0
  %998 = vmatmul.mubr.bf16.gmra.mrb[0].mxu0 %v271
  %v999 = vpop.f32.mrb[0].mxu0
  %v1000 = vadd.f32 0.0, %v999
  %v1001 = vpop.f32.mrb[0].mxu0
  %v1002 = vadd.f32 0.0, %v1001
  %v1003 = vpop.f32.mrb[0].mxu0
  %v1004 = vadd.f32 0.0, %v1003
  %v1005 = vpop.f32.mrb[0].mxu0
  %v1006 = vadd.f32 0.0, %v1005
  %1007 = vmatprep.mubr.bf16.mxu0 0
  %1008 = vmatmul.mubr.bf16.gmra.mrb[0].mxu0 %v272
  %v1009 = vpop.f32.mrb[0].mxu0
  %v1010 = vadd.f32 0.0, %v1009
  %v1011 = vpop.f32.mrb[0].mxu0
  %v1012 = vadd.f32 0.0, %v1011
  %v1013 = vpop.f32.mrb[0].mxu0
  %v1014 = vadd.f32 0.0, %v1013
  %v1015 = vpop.f32.mrb[0].mxu0
  %v1016 = vadd.f32 0.0, %v1015
  %1017 = vmatprep.mubr.bf16.mxu0 0
  %1018 = vmatmul.mubr.bf16.gmra.mrb[0].mxu0 %v273
  %v1019 = vpop.f32.mrb[0].mxu0
  %v1020 = vadd.f32 0.0, %v1019
  %v1021 = vpop.f32.mrb[0].mxu0
  %v1022 = vadd.f32 0.0, %v1021
  %v1023 = vpop.f32.mrb[0].mxu0
  %v1024 = vadd.f32 0.0, %v1023
  %v1025 = vpop.f32.mrb[0].mxu0
  %v1026 = vadd.f32 0.0, %v1025
  %1027 = vmatprep.mubr.bf16.mxu0 0
  %1028 = vmatmul.mubr.bf16.gmra.mrb[0].mxu0 %v274
  %v1029 = vpop.f32.mrb[0].mxu0
  %v1030 = vadd.f32 0.0, %v1029
  %v1031 = vpop.f32.mrb[0].mxu0
  %v1032 = vadd.f32 0.0, %v1031
  %v1033 = vpop.f32.mrb[0].mxu0
  %v1034 = vadd.f32 0.0, %v1033
  %v1035 = vpop.f32.mrb[0].mxu0
  %v1036 = vadd.f32 0.0, %v1035
  %1037 = vmatprep.mubr.bf16.mxu0 0
  %1038 = vmatmul.mubr.bf16.gmra.mrb[0].mxu0 %v275
  %v1039 = vpop.f32.mrb[0].mxu0
  %v1040 = vadd.f32 0.0, %v1039
  %v1041 = vpop.f32.mrb[0].mxu0
  %v1042 = vadd.f32 0.0, %v1041
  %v1043 = vpop.f32.mrb[0].mxu0
  %v1044 = vadd.f32 0.0, %v1043
  %v1045 = vpop.f32.mrb[0].mxu0
  %v1046 = vadd.f32 0.0, %v1045
  %1047 = vmatprep.mubr.bf16.mxu0 0
  %1048 = vmatmul.mubr.bf16.gmra.mrb[0].mxu0 %v276
  %v1049 = vpop.f32.mrb[0].mxu0
  %v1050 = vadd.f32 0.0, %v1049
  %v1051 = vpop.f32.mrb[0].mxu0
  %v1052 = vadd.f32 0.0, %v1051
  %v1053 = vpop.f32.mrb[0].mxu0
  %v1054 = vadd.f32 0.0, %v1053
  %v1055 = vpop.f32.mrb[0].mxu0
  %v1056 = vadd.f32 0.0, %v1055
  %1057 = vmatprep.mubr.bf16.mxu0 0
  %1058 = vmatmul.mubr.bf16.gmra.mrb[0].mxu0 %v277
  %v1059 = vpop.f32.mrb[0].mxu0
  %v1060 = vadd.f32 0.0, %v1059
  %v1061 = vpop.f32.mrb[0].mxu0
  %v1062 = vadd.f32 0.0, %v1061
  %v1063 = vpop.f32.mrb[0].mxu0
  %v1064 = vadd.f32 0.0, %v1063
  %v1065 = vpop.f32.mrb[0].mxu0
  %v1066 = vadd.f32 0.0, %v1065
  %1067 = vmatprep.mubr.bf16.mxu0 0
  %1068 = vmatmul.mubr.bf16.gmra.mrb[0].mxu0 %v278
  %v1069 = vpop.f32.mrb[0].mxu0
  %v1070 = vadd.f32 0.0, %v1069
  %v1071 = vpop.f32.mrb[0].mxu0
  %v1072 = vadd.f32 0.0, %v1071
  %v1073 = vpop.f32.mrb[0].mxu0
  %v1074 = vadd.f32 0.0, %v1073
  %v1075 = vpop.f32.mrb[0].mxu0
  %v1076 = vadd.f32 0.0, %v1075
  %1077 = vmatprep.mubr.bf16.mxu0 0
  %1078 = vmatmul.mubr.bf16.gmra.mrb[0].mxu0 %v279
  %v1079 = vpop.f32.mrb[0].mxu0
  %v1080 = vadd.f32 0.0, %v1079
  %v1081 = vpop.f32.mrb[0].mxu0
  %v1082 = vadd.f32 0.0, %v1081
  %v1083 = vpop.f32.mrb[0].mxu0
  %v1084 = vadd.f32 0.0, %v1083
  %v1085 = vpop.f32.mrb[0].mxu0
  %v1086 = vadd.f32 0.0, %v1085
  %1087 = vmatprep.mubr.bf16.mxu0 0
  %1088 = vmatmul.mubr.bf16.gmra.mrb[0].mxu0 %v280
  %v1089 = vpop.f32.mrb[0].mxu0
  %v1090 = vadd.f32 0.0, %v1089
  %v1091 = vpop.f32.mrb[0].mxu0
  %v1092 = vadd.f32 0.0, %v1091
  %v1093 = vpop.f32.mrb[0].mxu0
  %v1094 = vadd.f32 0.0, %v1093
  %v1095 = vpop.f32.mrb[0].mxu0
  %v1096 = vadd.f32 0.0, %v1095
  %1097 = vmatprep.mubr.bf16.mxu0 0
  %1098 = vmatmul.mubr.bf16.gmra.mrb[0].mxu0 %v281
  %v1099 = vpop.f32.mrb[0].mxu0
  %v1100 = vadd.f32 0.0, %v1099
  %v1101 = vpop.f32.mrb[0].mxu0
  %v1102 = vadd.f32 0.0, %v1101
  %v1103 = vpop.f32.mrb[0].mxu0
  %v1104 = vadd.f32 0.0, %v1103
  %v1105 = vpop.f32.mrb[0].mxu0
  %v1106 = vadd.f32 0.0, %v1105
  %1107 = vmatprep.mubr.bf16.mxu0 0
  %1108 = vmatmul.mubr.bf16.gmra.mrb[0].mxu0 %v282
  %v1109 = vpop.f32.mrb[0].mxu0
  %v1110 = vadd.f32 0.0, %v1109
  %v1111 = vpop.f32.mrb[0].mxu0
  %v1112 = vadd.f32 0.0, %v1111
  %v1113 = vpop.f32.mrb[0].mxu0
  %v1114 = vadd.f32 0.0, %v1113
  %v1115 = vpop.f32.mrb[0].mxu0
  %v1116 = vadd.f32 0.0, %v1115
  %1117 = vmatprep.mubr.bf16.mxu0 0
  %1118 = vmatmul.mubr.bf16.gmra.mrb[0].mxu0 %v283
  %v1119 = vpop.f32.mrb[0].mxu0
  %v1120 = vadd.f32 0.0, %v1119
  %v1121 = vpop.f32.mrb[0].mxu0
  %v1122 = vadd.f32 0.0, %v1121
  %v1123 = vpop.f32.mrb[0].mxu0
  %v1124 = vadd.f32 0.0, %v1123
  %v1125 = vpop.f32.mrb[0].mxu0
  %v1126 = vadd.f32 0.0, %v1125
  %1127 = vmatprep.mubr.bf16.mxu0 0
  %1128 = vmatmul.mubr.bf16.gmra.mrb[0].mxu0 %v284
  %v1129 = vpop.f32.mrb[0].mxu0
  %v1130 = vadd.f32 0.0, %v1129
  %v1131 = vpop.f32.mrb[0].mxu0
  %v1132 = vadd.f32 0.0, %v1131
  %v1133 = vpop.f32.mrb[0].mxu0
  %v1134 = vadd.f32 0.0, %v1133
  %v1135 = vpop.f32.mrb[0].mxu0
  %v1136 = vadd.f32 0.0, %v1135
  %1137 = vmatprep.mubr.bf16.mxu0 0
  %1138 = vmatmul.mubr.bf16.gmra.mrb[0].mxu0 %v285
  %v1139 = vpop.f32.mrb[0].mxu0
  %v1140 = vadd.f32 0.0, %v1139
  %v1141 = vpop.f32.mrb[0].mxu0
  %v1142 = vadd.f32 0.0, %v1141
  %v1143 = vpop.f32.mrb[0].mxu0
  %v1144 = vadd.f32 0.0, %v1143
  %v1145 = vpop.f32.mrb[0].mxu0
  %v1146 = vadd.f32 0.0, %v1145
  %1147 = vmatprep.mubr.bf16.mxu0 0
  %1148 = vmatmul.mubr.bf16.gmra.mrb[0].mxu0 %v286
  %v1149 = vpop.f32.mrb[0].mxu0
  %v1150 = vadd.f32 0.0, %v1149
  %v1151 = vpop.f32.mrb[0].mxu0
  %v1152 = vadd.f32 0.0, %v1151
  %v1153 = vpop.f32.mrb[0].mxu0
  %v1154 = vadd.f32 0.0, %v1153
  %v1155 = vpop.f32.mrb[0].mxu0
  %v1156 = vadd.f32 0.0, %v1155
  %1157 = vmatprep.mubr.bf16.mxu0 0
  %1158 = vmatmul.mubr.bf16.gmra.mrb[0].mxu0 %v287
  %v1159 = vpop.f32.mrb[0].mxu0
  %v1160 = vadd.f32 0.0, %v1159
  %v1161 = vpop.f32.mrb[0].mxu0
  %v1162 = vadd.f32 0.0, %v1161
  %v1163 = vpop.f32.mrb[0].mxu0
  %v1164 = vadd.f32 0.0, %v1163
  %v1165 = vpop.f32.mrb[0].mxu0
  %v1166 = vadd.f32 0.0, %v1165
  %1167 = vmatprep.mubr.bf16.mxu0 0
  %1168 = vmatmul.mubr.bf16.gmra.mrb[0].mxu0 %v288
  %v1169 = vpop.f32.mrb[0].mxu0
  %v1170 = vadd.f32 0.0, %v1169
  %v1171 = vpop.f32.mrb[0].mxu0
  %v1172 = vadd.f32 0.0, %v1171
  %v1173 = vpop.f32.mrb[0].mxu0
  %v1174 = vadd.f32 0.0, %v1173
  %v1175 = vpop.f32.mrb[0].mxu0
  %v1176 = vadd.f32 0.0, %v1175
  %1177 = vmatprep.mubr.bf16.mxu0 0
  %1178 = vmatmul.mubr.bf16.gmra.mrb[0].mxu0 %v289
  %v1179 = vpop.f32.mrb[0].mxu0
  %v1180 = vadd.f32 0.0, %v1179
  %v1181 = vpop.f32.mrb[0].mxu0
  %v1182 = vadd.f32 0.0, %v1181
  %v1183 = vpop.f32.mrb[0].mxu0
  %v1184 = vadd.f32 0.0, %v1183
  %v1185 = vpop.f32.mrb[0].mxu0
  %v1186 = vadd.f32 0.0, %v1185
  %1187 = vdwg.mxu0
  %v1188 = vpack.c.bf16 %v521, %v517
  %v1189 = vpack.c.bf16 %v523, %v519
  %v1190 = vpack.c.bf16 %v874, %v870
  %v1191 = vpack.c.bf16 %v876, %v872
  %v1192 = vpack.c.bf16 %v531, %v527
  %v1193 = vpack.c.bf16 %v533, %v529
  %v1194 = vpack.c.bf16 %v884, %v880
  %v1195 = vpack.c.bf16 %v886, %v882
  %v1196 = vpack.c.bf16 %v541, %v537
  %v1197 = vpack.c.bf16 %v543, %v539
  %v1198 = vpack.c.bf16 %v894, %v890
  %v1199 = vpack.c.bf16 %v896, %v892
  %v1200 = vpack.c.bf16 %v551, %v547
  %v1201 = vpack.c.bf16 %v553, %v549
  %v1202 = vpack.c.bf16 %v904, %v900
  %v1203 = vpack.c.bf16 %v906, %v902
  %v1204 = vpack.c.bf16 %v561, %v557
  %v1205 = vpack.c.bf16 %v563, %v559
  %v1206 = vpack.c.bf16 %v914, %v910
  %v1207 = vpack.c.bf16 %v916, %v912
  %v1208 = vpack.c.bf16 %v571, %v567
  %v1209 = vpack.c.bf16 %v573, %v569
  %v1210 = vpack.c.bf16 %v924, %v920
  %v1211 = vpack.c.bf16 %v926, %v922
  %v1212 = vpack.c.bf16 %v581, %v577
  %v1213 = vpack.c.bf16 %v583, %v579
  %v1214 = vpack.c.bf16 %v934, %v930
  %v1215 = vpack.c.bf16 %v936, %v932
  %v1216 = vpack.c.bf16 %v591, %v587
  %v1217 = vpack.c.bf16 %v593, %v589
  %v1218 = vpack.c.bf16 %v944, %v940
  %v1219 = vpack.c.bf16 %v946, %v942
  %v1220 = vpack.c.bf16 %v601, %v597
  %v1221 = vpack.c.bf16 %v603, %v599
  %v1222 = vpack.c.bf16 %v954, %v950
  %v1223 = vpack.c.bf16 %v956, %v952
  %v1224 = vpack.c.bf16 %v611, %v607
  %v1225 = vpack.c.bf16 %v613, %v609
  %v1226 = vpack.c.bf16 %v964, %v960
  %v1227 = vpack.c.bf16 %v966, %v962
  %v1228 = vpack.c.bf16 %v621, %v617
  %v1229 = vpack.c.bf16 %v623, %v619
  %v1230 = vpack.c.bf16 %v974, %v970
  %v1231 = vpack.c.bf16 %v976, %v972
  %v1232 = vpack.c.bf16 %v631, %v627
  %v1233 = vpack.c.bf16 %v633, %v629
  %v1234 = vpack.c.bf16 %v984, %v980
  %v1235 = vpack.c.bf16 %v986, %v982
  %v1236 = vpack.c.bf16 %v641, %v637
  %v1237 = vpack.c.bf16 %v643, %v639
  %v1238 = vpack.c.bf16 %v994, %v990
  %v1239 = vpack.c.bf16 %v996, %v992
  %v1240 = vpack.c.bf16 %v651, %v647
  %v1241 = vpack.c.bf16 %v653, %v649
  %v1242 = vpack.c.bf16 %v1004, %v1000
  %v1243 = vpack.c.bf16 %v1006, %v1002
  %v1244 = vpack.c.bf16 %v661, %v657
  %v1245 = vpack.c.bf16 %v663, %v659
  %v1246 = vpack.c.bf16 %v1014, %v1010
  %v1247 = vpack.c.bf16 %v1016, %v1012
  %v1248 = vpack.c.bf16 %v671, %v667
  %v1249 = vpack.c.bf16 %v673, %v669
  %v1250 = vpack.c.bf16 %v1024, %v1020
  %v1251 = vpack.c.bf16 %v1026, %v1022
  %v1252 = vpack.c.bf16 %v681, %v677
  %v1253 = vpack.c.bf16 %v683, %v679
  %v1254 = vpack.c.bf16 %v1034, %v1030
  %v1255 = vpack.c.bf16 %v1036, %v1032
  %v1256 = vpack.c.bf16 %v691, %v687
  %v1257 = vpack.c.bf16 %v693, %v689
  %v1258 = vpack.c.bf16 %v1044, %v1040
  %v1259 = vpack.c.bf16 %v1046, %v1042
  %v1260 = vpack.c.bf16 %v701, %v697
  %v1261 = vpack.c.bf16 %v703, %v699
  %v1262 = vpack.c.bf16 %v1054, %v1050
  %v1263 = vpack.c.bf16 %v1056, %v1052
  %v1264 = vpack.c.bf16 %v711, %v707
  %v1265 = vpack.c.bf16 %v713, %v709
  %v1266 = vpack.c.bf16 %v1064, %v1060
  %v1267 = vpack.c.bf16 %v1066, %v1062
  %v1268 = vpack.c.bf16 %v721, %v717
  %v1269 = vpack.c.bf16 %v723, %v719
  %v1270 = vpack.c.bf16 %v1074, %v1070
  %v1271 = vpack.c.bf16 %v1076, %v1072
  %v1272 = vpack.c.bf16 %v731, %v727
  %v1273 = vpack.c.bf16 %v733, %v729
  %v1274 = vpack.c.bf16 %v1084, %v1080
  %v1275 = vpack.c.bf16 %v1086, %v1082
  %v1276 = vpack.c.bf16 %v741, %v737
  %v1277 = vpack.c.bf16 %v743, %v739
  %v1278 = vpack.c.bf16 %v1094, %v1090
  %v1279 = vpack.c.bf16 %v1096, %v1092
  %v1280 = vpack.c.bf16 %v751, %v747
  %v1281 = vpack.c.bf16 %v753, %v749
  %v1282 = vpack.c.bf16 %v1104, %v1100
  %v1283 = vpack.c.bf16 %v1106, %v1102
  %v1284 = vpack.c.bf16 %v761, %v757
  %v1285 = vpack.c.bf16 %v763, %v759
  %v1286 = vpack.c.bf16 %v1114, %v1110
  %v1287 = vpack.c.bf16 %v1116, %v1112
  %v1288 = vpack.c.bf16 %v771, %v767
  %v1289 = vpack.c.bf16 %v773, %v769
  %v1290 = vpack.c.bf16 %v1124, %v1120
  %v1291 = vpack.c.bf16 %v1126, %v1122
  %v1292 = vpack.c.bf16 %v781, %v777
  %v1293 = vpack.c.bf16 %v783, %v779
  %v1294 = vpack.c.bf16 %v1134, %v1130
  %v1295 = vpack.c.bf16 %v1136, %v1132
  %v1296 = vpack.c.bf16 %v791, %v787
  %v1297 = vpack.c.bf16 %v793, %v789
  %v1298 = vpack.c.bf16 %v1144, %v1140
  %v1299 = vpack.c.bf16 %v1146, %v1142
  %v1300 = vpack.c.bf16 %v801, %v797
  %v1301 = vpack.c.bf16 %v803, %v799
  %v1302 = vpack.c.bf16 %v1154, %v1150
  %v1303 = vpack.c.bf16 %v1156, %v1152
  %v1304 = vpack.c.bf16 %v811, %v807
  %v1305 = vpack.c.bf16 %v813, %v809
  %v1306 = vpack.c.bf16 %v1164, %v1160
  %v1307 = vpack.c.bf16 %v1166, %v1162
  %v1308 = vpack.c.bf16 %v821, %v817
  %v1309 = vpack.c.bf16 %v823, %v819
  %v1310 = vpack.c.bf16 %v1174, %v1170
  %v1311 = vpack.c.bf16 %v1176, %v1172
  %v1312 = vpack.c.bf16 %v831, %v827
  %v1313 = vpack.c.bf16 %v833, %v829
  %v1314 = vpack.c.bf16 %v1184, %v1180
  %v1315 = vpack.c.bf16 %v1186, %v1182
  %v1316 = vld [vmem:[%s2] sm:$0xf]
  %v1319 = vunpack.c.l.s4 1966171168
  %v1320 = vunpack.c.0.s8 %v1319
  %v1321 = vlaneseq
  %v1322 = vshrl.u32 %v1321, 7
  %v1323 = vsub.s32 %v1320, %v1322
  %v1324 = vrot.slane %v1316, %v1323
  %v1325 = vcombine.high %v1324, %v1324
  %v1327 = vunpack.c.l.s4 1966171168
  %v1328 = vunpack.c.0.s8 %v1327
  %v1329 = vlaneseq
  %v1330 = vshrl.u32 %v1329, 7
  %v1331 = vsub.s32 %v1328, %v1330
  %v1332 = vrot.slane %v1324, %v1331
  %v1334 = vunpack.c.l.s4 1966171168
  %v1335 = vunpack.c.0.s8 %v1334
  %v1336 = vlaneseq
  %v1337 = vshrl.u32 %v1336, 7
  %v1338 = vsub.s32 %v1335, %v1337
  %v1339 = vrot.slane %v1325, %v1338
  %v1340 = vcombine.high %v1332, %v1332
  %v1341 = vcombine.high %v1339, %v1339
  %v1343 = vpack.i.b16 %v1332, %v1332
  %v1345 = vlaneseq
  %v1346 = vshrl.u32 %v1345, 7
  %v1347 = vsub.s32 0, %v1346
  %v1348 = vrot.slane %v1343, %v1347
  %v1350 = vpack.i.b16 %v1339, %v1339
  %v1352 = vlaneseq
  %v1353 = vshrl.u32 %v1352, 7
  %v1354 = vsub.s32 0, %v1353
  %v1355 = vrot.slane %v1350, %v1354
  %v1357 = vpack.i.b16 %v1340, %v1340
  %v1359 = vlaneseq
  %v1360 = vshrl.u32 %v1359, 7
  %v1361 = vsub.s32 0, %v1360
  %v1362 = vrot.slane %v1357, %v1361
  %v1364 = vpack.i.b16 %v1341, %v1341
  %v1366 = vlaneseq
  %v1367 = vshrl.u32 %v1366, 7
  %v1368 = vsub.s32 0, %v1367
  %v1369 = vrot.slane %v1364, %v1368
  %v1370 = vadd.bf16 %v1188, %v1348
  %v1371 = vadd.bf16 %v1189, %v1355
  %v1372 = vadd.bf16 %v1190, %v1362
  %v1373 = vadd.bf16 %v1191, %v1369
  %v1374 = vadd.bf16 %v1192, %v1348
  %v1375 = vadd.bf16 %v1193, %v1355
  %v1376 = vadd.bf16 %v1194, %v1362
  %v1377 = vadd.bf16 %v1195, %v1369
  %v1378 = vadd.bf16 %v1196, %v1348
  %v1379 = vadd.bf16 %v1197, %v1355
  %v1380 = vadd.bf16 %v1198, %v1362
  %v1381 = vadd.bf16 %v1199, %v1369
  %v1382 = vadd.bf16 %v1200, %v1348
  %v1383 = vadd.bf16 %v1201, %v1355
  %v1384 = vadd.bf16 %v1202, %v1362
  %v1385 = vadd.bf16 %v1203, %v1369
  %v1386 = vadd.bf16 %v1204, %v1348
  %v1387 = vadd.bf16 %v1205, %v1355
  %v1388 = vadd.bf16 %v1206, %v1362
  %v1389 = vadd.bf16 %v1207, %v1369
  %v1390 = vadd.bf16 %v1208, %v1348
  %v1391 = vadd.bf16 %v1209, %v1355
  %v1392 = vadd.bf16 %v1210, %v1362
  %v1393 = vadd.bf16 %v1211, %v1369
  %v1394 = vadd.bf16 %v1212, %v1348
  %v1395 = vadd.bf16 %v1213, %v1355
  %v1396 = vadd.bf16 %v1214, %v1362
  %v1397 = vadd.bf16 %v1215, %v1369
  %v1398 = vadd.bf16 %v1216, %v1348
  %v1399 = vadd.bf16 %v1217, %v1355
  %v1400 = vadd.bf16 %v1218, %v1362
  %v1401 = vadd.bf16 %v1219, %v1369
  %v1402 = vadd.bf16 %v1220, %v1348
  %v1403 = vadd.bf16 %v1221, %v1355
  %v1404 = vadd.bf16 %v1222, %v1362
  %v1405 = vadd.bf16 %v1223, %v1369
  %v1406 = vadd.bf16 %v1224, %v1348
  %v1407 = vadd.bf16 %v1225, %v1355
  %v1408 = vadd.bf16 %v1226, %v1362
  %v1409 = vadd.bf16 %v1227, %v1369
  %v1410 = vadd.bf16 %v1228, %v1348
  %v1411 = vadd.bf16 %v1229, %v1355
  %v1412 = vadd.bf16 %v1230, %v1362
  %v1413 = vadd.bf16 %v1231, %v1369
  %v1414 = vadd.bf16 %v1232, %v1348
  %v1415 = vadd.bf16 %v1233, %v1355
  %v1416 = vadd.bf16 %v1234, %v1362
  %v1417 = vadd.bf16 %v1235, %v1369
  %v1418 = vadd.bf16 %v1236, %v1348
  %v1419 = vadd.bf16 %v1237, %v1355
  %v1420 = vadd.bf16 %v1238, %v1362
  %v1421 = vadd.bf16 %v1239, %v1369
  %v1422 = vadd.bf16 %v1240, %v1348
  %v1423 = vadd.bf16 %v1241, %v1355
  %v1424 = vadd.bf16 %v1242, %v1362
  %v1425 = vadd.bf16 %v1243, %v1369
  %v1426 = vadd.bf16 %v1244, %v1348
  %v1427 = vadd.bf16 %v1245, %v1355
  %v1428 = vadd.bf16 %v1246, %v1362
  %v1429 = vadd.bf16 %v1247, %v1369
  %v1430 = vadd.bf16 %v1248, %v1348
  %v1431 = vadd.bf16 %v1249, %v1355
  %v1432 = vadd.bf16 %v1250, %v1362
  %v1433 = vadd.bf16 %v1251, %v1369
  %v1434 = vadd.bf16 %v1252, %v1348
  %v1435 = vadd.bf16 %v1253, %v1355
  %v1436 = vadd.bf16 %v1254, %v1362
  %v1437 = vadd.bf16 %v1255, %v1369
  %v1438 = vadd.bf16 %v1256, %v1348
  %v1439 = vadd.bf16 %v1257, %v1355
  %v1440 = vadd.bf16 %v1258, %v1362
  %v1441 = vadd.bf16 %v1259, %v1369
  %v1442 = vadd.bf16 %v1260, %v1348
  %v1443 = vadd.bf16 %v1261, %v1355
  %v1444 = vadd.bf16 %v1262, %v1362
  %v1445 = vadd.bf16 %v1263, %v1369
  %v1446 = vadd.bf16 %v1264, %v1348
  %v1447 = vadd.bf16 %v1265, %v1355
  %v1448 = vadd.bf16 %v1266, %v1362
  %v1449 = vadd.bf16 %v1267, %v1369
  %v1450 = vadd.bf16 %v1268, %v1348
  %v1451 = vadd.bf16 %v1269, %v1355
  %v1452 = vadd.bf16 %v1270, %v1362
  %v1453 = vadd.bf16 %v1271, %v1369
  %v1454 = vadd.bf16 %v1272, %v1348
  %v1455 = vadd.bf16 %v1273, %v1355
  %v1456 = vadd.bf16 %v1274, %v1362
  %v1457 = vadd.bf16 %v1275, %v1369
  %v1458 = vadd.bf16 %v1276, %v1348
  %v1459 = vadd.bf16 %v1277, %v1355
  %v1460 = vadd.bf16 %v1278, %v1362
  %v1461 = vadd.bf16 %v1279, %v1369
  %v1462 = vadd.bf16 %v1280, %v1348
  %v1463 = vadd.bf16 %v1281, %v1355
  %v1464 = vadd.bf16 %v1282, %v1362
  %v1465 = vadd.bf16 %v1283, %v1369
  %v1466 = vadd.bf16 %v1284, %v1348
  %v1467 = vadd.bf16 %v1285, %v1355
  %v1468 = vadd.bf16 %v1286, %v1362
  %v1469 = vadd.bf16 %v1287, %v1369
  %v1470 = vadd.bf16 %v1288, %v1348
  %v1471 = vadd.bf16 %v1289, %v1355
  %v1472 = vadd.bf16 %v1290, %v1362
  %v1473 = vadd.bf16 %v1291, %v1369
  %v1474 = vadd.bf16 %v1292, %v1348
  %v1475 = vadd.bf16 %v1293, %v1355
  %v1476 = vadd.bf16 %v1294, %v1362
  %v1477 = vadd.bf16 %v1295, %v1369
  %v1478 = vadd.bf16 %v1296, %v1348
  %v1479 = vadd.bf16 %v1297, %v1355
  %v1480 = vadd.bf16 %v1298, %v1362
  %v1481 = vadd.bf16 %v1299, %v1369
  %v1482 = vadd.bf16 %v1300, %v1348
  %v1483 = vadd.bf16 %v1301, %v1355
  %v1484 = vadd.bf16 %v1302, %v1362
  %v1485 = vadd.bf16 %v1303, %v1369
  %v1486 = vadd.bf16 %v1304, %v1348
  %v1487 = vadd.bf16 %v1305, %v1355
  %v1488 = vadd.bf16 %v1306, %v1362
  %v1489 = vadd.bf16 %v1307, %v1369
  %v1490 = vadd.bf16 %v1308, %v1348
  %v1491 = vadd.bf16 %v1309, %v1355
  %v1492 = vadd.bf16 %v1310, %v1362
  %v1493 = vadd.bf16 %v1311, %v1369
  %v1494 = vadd.bf16 %v1312, %v1348
  %v1495 = vadd.bf16 %v1313, %v1355
  %v1496 = vadd.bf16 %v1314, %v1362
  %v1497 = vadd.bf16 %v1315, %v1369
  %v1498 = vmul.bf16 %v1370, 1045249613
  %v1499 = vmul.bf16 %v1371, 1045249613
  %v1500 = vmul.bf16 %v1372, 1045249613
  %v1501 = vmul.bf16 %v1373, 1045249613
  %v1502 = vmul.bf16 %v1374, 1045249613
  %v1503 = vmul.bf16 %v1375, 1045249613
  %v1504 = vmul.bf16 %v1376, 1045249613
  %v1505 = vmul.bf16 %v1377, 1045249613
  %v1506 = vmul.bf16 %v1378, 1045249613
  %v1507 = vmul.bf16 %v1379, 1045249613
  %v1508 = vmul.bf16 %v1380, 1045249613
  %v1509 = vmul.bf16 %v1381, 1045249613
  %v1510 = vmul.bf16 %v1382, 1045249613
  %v1511 = vmul.bf16 %v1383, 1045249613
  %v1512 = vmul.bf16 %v1384, 1045249613
  %v1513 = vmul.bf16 %v1385, 1045249613
  %v1514 = vmul.bf16 %v1386, 1045249613
  %v1515 = vmul.bf16 %v1387, 1045249613
  %v1516 = vmul.bf16 %v1388, 1045249613
  %v1517 = vmul.bf16 %v1389, 1045249613
  %v1518 = vmul.bf16 %v1390, 1045249613
  %v1519 = vmul.bf16 %v1391, 1045249613
  %v1520 = vmul.bf16 %v1392, 1045249613
  %v1521 = vmul.bf16 %v1393, 1045249613
  %v1522 = vmul.bf16 %v1394, 1045249613
  %v1523 = vmul.bf16 %v1395, 1045249613
  %v1524 = vmul.bf16 %v1396, 1045249613
  %v1525 = vmul.bf16 %v1397, 1045249613
  %v1526 = vmul.bf16 %v1398, 1045249613
  %v1527 = vmul.bf16 %v1399, 1045249613
  %v1528 = vmul.bf16 %v1400, 1045249613
  %v1529 = vmul.bf16 %v1401, 1045249613
  %v1530 = vmul.bf16 %v1402, 1045249613
  %v1531 = vmul.bf16 %v1403, 1045249613
  %v1532 = vmul.bf16 %v1404, 1045249613
  %v1533 = vmul.bf16 %v1405, 1045249613
  %v1534 = vmul.bf16 %v1406, 1045249613
  %v1535 = vmul.bf16 %v1407, 1045249613
  %v1536 = vmul.bf16 %v1408, 1045249613
  %v1537 = vmul.bf16 %v1409, 1045249613
  %v1538 = vmul.bf16 %v1410, 1045249613
  %v1539 = vmul.bf16 %v1411, 1045249613
  %v1540 = vmul.bf16 %v1412, 1045249613
  %v1541 = vmul.bf16 %v1413, 1045249613
  %v1542 = vmul.bf16 %v1414, 1045249613
  %v1543 = vmul.bf16 %v1415, 1045249613
  %v1544 = vmul.bf16 %v1416, 1045249613
  %v1545 = vmul.bf16 %v1417, 1045249613
  %v1546 = vmul.bf16 %v1418, 1045249613
  %v1547 = vmul.bf16 %v1419, 1045249613
  %v1548 = vmul.bf16 %v1420, 1045249613
  %v1549 = vmul.bf16 %v1421, 1045249613
  %v1550 = vmul.bf16 %v1422, 1045249613
  %v1551 = vmul.bf16 %v1423, 1045249613
  %v1552 = vmul.bf16 %v1424, 1045249613
  %v1553 = vmul.bf16 %v1425, 1045249613
  %v1554 = vmul.bf16 %v1426, 1045249613
  %v1555 = vmul.bf16 %v1427, 1045249613
  %v1556 = vmul.bf16 %v1428, 1045249613
  %v1557 = vmul.bf16 %v1429, 1045249613
  %v1558 = vmul.bf16 %v1430, 1045249613
  %v1559 = vmul.bf16 %v1431, 1045249613
  %v1560 = vmul.bf16 %v1432, 1045249613
  %v1561 = vmul.bf16 %v1433, 1045249613
  %v1562 = vmul.bf16 %v1434, 1045249613
  %v1563 = vmul.bf16 %v1435, 1045249613
  %v1564 = vmul.bf16 %v1436, 1045249613
  %v1565 = vmul.bf16 %v1437, 1045249613
  %v1566 = vmul.bf16 %v1438, 1045249613
  %v1567 = vmul.bf16 %v1439, 1045249613
  %v1568 = vmul.bf16 %v1440, 1045249613
  %v1569 = vmul.bf16 %v1441, 1045249613
  %v1570 = vmul.bf16 %v1442, 1045249613
  %v1571 = vmul.bf16 %v1443, 1045249613
  %v1572 = vmul.bf16 %v1444, 1045249613
  %v1573 = vmul.bf16 %v1445, 1045249613
  %v1574 = vmul.bf16 %v1446, 1045249613
  %v1575 = vmul.bf16 %v1447, 1045249613
  %v1576 = vmul.bf16 %v1448, 1045249613
  %v1577 = vmul.bf16 %v1449, 1045249613
  %v1578 = vmul.bf16 %v1450, 1045249613
  %v1579 = vmul.bf16 %v1451, 1045249613
  %v1580 = vmul.bf16 %v1452, 1045249613
  %v1581 = vmul.bf16 %v1453, 1045249613
  %v1582 = vmul.bf16 %v1454, 1045249613
  %v1583 = vmul.bf16 %v1455, 1045249613
  %v1584 = vmul.bf16 %v1456, 1045249613
  %v1585 = vmul.bf16 %v1457, 1045249613
  %v1586 = vmul.bf16 %v1458, 1045249613
  %v1587 = vmul.bf16 %v1459, 1045249613
  %v1588 = vmul.bf16 %v1460, 1045249613
  %v1589 = vmul.bf16 %v1461, 1045249613
  %v1590 = vmul.bf16 %v1462, 1045249613
  %v1591 = vmul.bf16 %v1463, 1045249613
  %v1592 = vmul.bf16 %v1464, 1045249613
  %v1593 = vmul.bf16 %v1465, 1045249613
  %v1594 = vmul.bf16 %v1466, 1045249613
  %v1595 = vmul.bf16 %v1467, 1045249613
  %v1596 = vmul.bf16 %v1468, 1045249613
  %v1597 = vmul.bf16 %v1469, 1045249613
  %v1598 = vmul.bf16 %v1470, 1045249613
  %v1599 = vmul.bf16 %v1471, 1045249613
  %v1600 = vmul.bf16 %v1472, 1045249613
  %v1601 = vmul.bf16 %v1473, 1045249613
  %v1602 = vmul.bf16 %v1474, 1045249613
  %v1603 = vmul.bf16 %v1475, 1045249613
  %v1604 = vmul.bf16 %v1476, 1045249613
  %v1605 = vmul.bf16 %v1477, 1045249613
  %v1606 = vmul.bf16 %v1478, 1045249613
  %v1607 = vmul.bf16 %v1479, 1045249613
  %v1608 = vmul.bf16 %v1480, 1045249613
  %v1609 = vmul.bf16 %v1481, 1045249613
  %v1610 = vmul.bf16 %v1482, 1045249613
  %v1611 = vmul.bf16 %v1483, 1045249613
  %v1612 = vmul.bf16 %v1484, 1045249613
  %v1613 = vmul.bf16 %v1485, 1045249613
  %v1614 = vmul.bf16 %v1486, 1045249613
  %v1615 = vmul.bf16 %v1487, 1045249613
  %v1616 = vmul.bf16 %v1488, 1045249613
  %v1617 = vmul.bf16 %v1489, 1045249613
  %v1618 = vmul.bf16 %v1490, 1045249613
  %v1619 = vmul.bf16 %v1491, 1045249613
  %v1620 = vmul.bf16 %v1492, 1045249613
  %v1621 = vmul.bf16 %v1493, 1045249613
  %v1622 = vmul.bf16 %v1494, 1045249613
  %v1623 = vmul.bf16 %v1495, 1045249613
  %v1624 = vmul.bf16 %v1496, 1045249613
  %v1625 = vmul.bf16 %v1497, 1045249613
  %v1626 = vmax.bf16 %v1370, %v1498
  %v1627 = vmax.bf16 %v1371, %v1499
  %v1628 = vmax.bf16 %v1372, %v1500
  %v1629 = vmax.bf16 %v1373, %v1501
  %v1630 = vmax.bf16 %v1374, %v1502
  %v1631 = vmax.bf16 %v1375, %v1503
  %v1632 = vmax.bf16 %v1376, %v1504
  %v1633 = vmax.bf16 %v1377, %v1505
  %v1634 = vmax.bf16 %v1378, %v1506
  %v1635 = vmax.bf16 %v1379, %v1507
  %v1636 = vmax.bf16 %v1380, %v1508
  %v1637 = vmax.bf16 %v1381, %v1509
  %v1638 = vmax.bf16 %v1382, %v1510
  %v1639 = vmax.bf16 %v1383, %v1511
  %v1640 = vmax.bf16 %v1384, %v1512
  %v1641 = vmax.bf16 %v1385, %v1513
  %v1642 = vmax.bf16 %v1386, %v1514
  %v1643 = vmax.bf16 %v1387, %v1515
  %v1644 = vmax.bf16 %v1388, %v1516
  %v1645 = vmax.bf16 %v1389, %v1517
  %v1646 = vmax.bf16 %v1390, %v1518
  %v1647 = vmax.bf16 %v1391, %v1519
  %v1648 = vmax.bf16 %v1392, %v1520
  %v1649 = vmax.bf16 %v1393, %v1521
  %v1650 = vmax.bf16 %v1394, %v1522
  %v1651 = vmax.bf16 %v1395, %v1523
  %v1652 = vmax.bf16 %v1396, %v1524
  %v1653 = vmax.bf16 %v1397, %v1525
  %v1654 = vmax.bf16 %v1398, %v1526
  %v1655 = vmax.bf16 %v1399, %v1527
  %v1656 = vmax.bf16 %v1400, %v1528
  %v1657 = vmax.bf16 %v1401, %v1529
  %v1658 = vmax.bf16 %v1402, %v1530
  %v1659 = vmax.bf16 %v1403, %v1531
  %v1660 = vmax.bf16 %v1404, %v1532
  %v1661 = vmax.bf16 %v1405, %v1533
  %v1662 = vmax.bf16 %v1406, %v1534
  %v1663 = vmax.bf16 %v1407, %v1535
  %v1664 = vmax.bf16 %v1408, %v1536
  %v1665 = vmax.bf16 %v1409, %v1537
  %v1666 = vmax.bf16 %v1410, %v1538
  %v1667 = vmax.bf16 %v1411, %v1539
  %v1668 = vmax.bf16 %v1412, %v1540
  %v1669 = vmax.bf16 %v1413, %v1541
  %v1670 = vmax.bf16 %v1414, %v1542
  %v1671 = vmax.bf16 %v1415, %v1543
  %v1672 = vmax.bf16 %v1416, %v1544
  %v1673 = vmax.bf16 %v1417, %v1545
  %v1674 = vmax.bf16 %v1418, %v1546
  %v1675 = vmax.bf16 %v1419, %v1547
  %v1676 = vmax.bf16 %v1420, %v1548
  %v1677 = vmax.bf16 %v1421, %v1549
  %v1678 = vmax.bf16 %v1422, %v1550
  %v1679 = vmax.bf16 %v1423, %v1551
  %v1680 = vmax.bf16 %v1424, %v1552
  %v1681 = vmax.bf16 %v1425, %v1553
  %v1682 = vmax.bf16 %v1426, %v1554
  %v1683 = vmax.bf16 %v1427, %v1555
  %v1684 = vmax.bf16 %v1428, %v1556
  %v1685 = vmax.bf16 %v1429, %v1557
  %v1686 = vmax.bf16 %v1430, %v1558
  %v1687 = vmax.bf16 %v1431, %v1559
  %v1688 = vmax.bf16 %v1432, %v1560
  %v1689 = vmax.bf16 %v1433, %v1561
  %v1690 = vmax.bf16 %v1434, %v1562
  %v1691 = vmax.bf16 %v1435, %v1563
  %v1692 = vmax.bf16 %v1436, %v1564
  %v1693 = vmax.bf16 %v1437, %v1565
  %v1694 = vmax.bf16 %v1438, %v1566
  %v1695 = vmax.bf16 %v1439, %v1567
  %v1696 = vmax.bf16 %v1440, %v1568
  %v1697 = vmax.bf16 %v1441, %v1569
  %v1698 = vmax.bf16 %v1442, %v1570
  %v1699 = vmax.bf16 %v1443, %v1571
  %v1700 = vmax.bf16 %v1444, %v1572
  %v1701 = vmax.bf16 %v1445, %v1573
  %v1702 = vmax.bf16 %v1446, %v1574
  %v1703 = vmax.bf16 %v1447, %v1575
  %v1704 = vmax.bf16 %v1448, %v1576
  %v1705 = vmax.bf16 %v1449, %v1577
  %v1706 = vmax.bf16 %v1450, %v1578
  %v1707 = vmax.bf16 %v1451, %v1579
  %v1708 = vmax.bf16 %v1452, %v1580
  %v1709 = vmax.bf16 %v1453, %v1581
  %v1710 = vmax.bf16 %v1454, %v1582
  %v1711 = vmax.bf16 %v1455, %v1583
  %v1712 = vmax.bf16 %v1456, %v1584
  %v1713 = vmax.bf16 %v1457, %v1585
  %v1714 = vmax.bf16 %v1458, %v1586
  %v1715 = vmax.bf16 %v1459, %v1587
  %v1716 = vmax.bf16 %v1460, %v1588
  %v1717 = vmax.bf16 %v1461, %v1589
  %v1718 = vmax.bf16 %v1462, %v1590
  %v1719 = vmax.bf16 %v1463, %v1591
  %v1720 = vmax.bf16 %v1464, %v1592
  %v1721 = vmax.bf16 %v1465, %v1593
  %v1722 = vmax.bf16 %v1466, %v1594
  %v1723 = vmax.bf16 %v1467, %v1595
  %v1724 = vmax.bf16 %v1468, %v1596
  %v1725 = vmax.bf16 %v1469, %v1597
  %v1726 = vmax.bf16 %v1470, %v1598
  %v1727 = vmax.bf16 %v1471, %v1599
  %v1728 = vmax.bf16 %v1472, %v1600
  %v1729 = vmax.bf16 %v1473, %v1601
  %v1730 = vmax.bf16 %v1474, %v1602
  %v1731 = vmax.bf16 %v1475, %v1603
  %v1732 = vmax.bf16 %v1476, %v1604
  %v1733 = vmax.bf16 %v1477, %v1605
  %v1734 = vmax.bf16 %v1478, %v1606
  %v1735 = vmax.bf16 %v1479, %v1607
  %v1736 = vmax.bf16 %v1480, %v1608
  %v1737 = vmax.bf16 %v1481, %v1609
  %v1738 = vmax.bf16 %v1482, %v1610
  %v1739 = vmax.bf16 %v1483, %v1611
  %v1740 = vmax.bf16 %v1484, %v1612
  %v1741 = vmax.bf16 %v1485, %v1613
  %v1742 = vmax.bf16 %v1486, %v1614
  %v1743 = vmax.bf16 %v1487, %v1615
  %v1744 = vmax.bf16 %v1488, %v1616
  %v1745 = vmax.bf16 %v1489, %v1617
  %v1746 = vmax.bf16 %v1490, %v1618
  %v1747 = vmax.bf16 %v1491, %v1619
  %v1748 = vmax.bf16 %v1492, %v1620
  %v1749 = vmax.bf16 %v1493, %v1621
  %v1750 = vmax.bf16 %v1494, %v1622
  %v1751 = vmax.bf16 %v1495, %v1623
  %v1752 = vmax.bf16 %v1496, %v1624
  %v1753 = vmax.bf16 %v1497, %v1625
  %v1754 = vld [vmem:[%s3] sm:$0xff]
  %v1755 = vld [vmem:[%s3 + $0x8] sm:$0xff]
  %v1756 = vld [vmem:[%s3 + $0x10] sm:$0xff]
  %v1757 = vld [vmem:[%s3 + $0x18] sm:$0xff]
  %v1758 = vld [vmem:[%s3 + $0x20] sm:$0xff]
  %v1759 = vld [vmem:[%s3 + $0x28] sm:$0xff]
  %v1760 = vld [vmem:[%s3 + $0x30] sm:$0xff]
  %v1761 = vld [vmem:[%s3 + $0x38] sm:$0xff]
  %v1762 = vld [vmem:[%s3 + $0x40] sm:$0xff]
  %v1763 = vld [vmem:[%s3 + $0x48] sm:$0xff]
  %v1764 = vld [vmem:[%s3 + $0x50] sm:$0xff]
  %v1765 = vld [vmem:[%s3 + $0x58] sm:$0xff]
  %v1766 = vld [vmem:[%s3 + $0x60] sm:$0xff]
  %v1767 = vld [vmem:[%s3 + $0x68] sm:$0xff]
  %v1768 = vld [vmem:[%s3 + $0x70] sm:$0xff]
  %v1769 = vld [vmem:[%s3 + $0x78] sm:$0xff]
  %v1770 = vld [vmem:[%s3 + $0x80] sm:$0xff]
  %v1771 = vld [vmem:[%s3 + $0x88] sm:$0xff]
  %v1772 = vld [vmem:[%s3 + $0x90] sm:$0xff]
  %v1773 = vld [vmem:[%s3 + $0x98] sm:$0xff]
  %v1774 = vld [vmem:[%s3 + $0xa0] sm:$0xff]
  %v1775 = vld [vmem:[%s3 + $0xa8] sm:$0xff]
  %v1776 = vld [vmem:[%s3 + $0xb0] sm:$0xff]
  %v1777 = vld [vmem:[%s3 + $0xb8] sm:$0xff]
  %v1778 = vld [vmem:[%s3 + $0xc0] sm:$0xff]
  %v1779 = vld [vmem:[%s3 + $0xc8] sm:$0xff]
  %v1780 = vld [vmem:[%s3 + $0xd0] sm:$0xff]
  %v1781 = vld [vmem:[%s3 + $0xd8] sm:$0xff]
  %v1782 = vld [vmem:[%s3 + $0xe0] sm:$0xff]
  %v1783 = vld [vmem:[%s3 + $0xe8] sm:$0xff]
  %v1784 = vld [vmem:[%s3 + $0xf0] sm:$0xff]
  %v1785 = vld [vmem:[%s3 + $0xf8] sm:$0xff]
  %v1786 = vld [vmem:[%s3 + $0x100] sm:$0xff]
  %v1787 = vld [vmem:[%s3 + $0x108] sm:$0xff]
  %v1788 = vld [vmem:[%s3 + $0x110] sm:$0xff]
  %v1789 = vld [vmem:[%s3 + $0x118] sm:$0xff]
  %v1790 = vld [vmem:[%s3 + $0x120] sm:$0xff]
  %v1791 = vld [vmem:[%s3 + $0x128] sm:$0xff]
  %v1792 = vld [vmem:[%s3 + $0x130] sm:$0xff]
  %v1793 = vld [vmem:[%s3 + $0x138] sm:$0xff]
  %v1794 = vld [vmem:[%s3 + $0x140] sm:$0xff]
  %v1795 = vld [vmem:[%s3 + $0x148] sm:$0xff]
  %v1796 = vld [vmem:[%s3 + $0x150] sm:$0xff]
  %v1797 = vld [vmem:[%s3 + $0x158] sm:$0xff]
  %v1798 = vld [vmem:[%s3 + $0x160] sm:$0xff]
  %v1799 = vld [vmem:[%s3 + $0x168] sm:$0xff]
  %v1800 = vld [vmem:[%s3 + $0x170] sm:$0xff]
  %v1801 = vld [vmem:[%s3 + $0x178] sm:$0xff]
  %v1802 = vld [vmem:[%s3 + $0x180] sm:$0xff]
  %v1803 = vld [vmem:[%s3 + $0x188] sm:$0xff]
  %v1804 = vld [vmem:[%s3 + $0x190] sm:$0xff]
  %v1805 = vld [vmem:[%s3 + $0x198] sm:$0xff]
  %v1806 = vld [vmem:[%s3 + $0x1a0] sm:$0xff]
  %v1807 = vld [vmem:[%s3 + $0x1a8] sm:$0xff]
  %v1808 = vld [vmem:[%s3 + $0x1b0] sm:$0xff]
  %v1809 = vld [vmem:[%s3 + $0x1b8] sm:$0xff]
  %v1810 = vld [vmem:[%s3 + $0x1c0] sm:$0xff]
  %v1811 = vld [vmem:[%s3 + $0x1c8] sm:$0xff]
  %v1812 = vld [vmem:[%s3 + $0x1d0] sm:$0xff]
  %v1813 = vld [vmem:[%s3 + $0x1d8] sm:$0xff]
  %v1814 = vld [vmem:[%s3 + $0x1e0] sm:$0xff]
  %v1815 = vld [vmem:[%s3 + $0x1e8] sm:$0xff]
  %v1816 = vld [vmem:[%s3 + $0x1f0] sm:$0xff]
  %v1817 = vld [vmem:[%s3 + $0x1f8] sm:$0xff]
  %v1882 = vunpack.c.l.b16 %v1754
  %v1883 = vunpack.c.h.b16 %v1754
  %v1884 = vunpack.c.l.b16 %v1755
  %v1885 = vunpack.c.h.b16 %v1755
  %v1886 = vunpack.c.l.b16 %v1756
  %v1887 = vunpack.c.h.b16 %v1756
  %v1888 = vunpack.c.l.b16 %v1757
  %v1889 = vunpack.c.h.b16 %v1757
  %v1890 = vunpack.c.l.b16 %v1758
  %v1891 = vunpack.c.h.b16 %v1758
  %v1892 = vunpack.c.l.b16 %v1759
  %v1893 = vunpack.c.h.b16 %v1759
  %v1894 = vunpack.c.l.b16 %v1760
  %v1895 = vunpack.c.h.b16 %v1760
  %v1896 = vunpack.c.l.b16 %v1761
  %v1897 = vunpack.c.h.b16 %v1761
  %v1898 = vunpack.c.l.b16 %v1762
  %v1899 = vunpack.c.h.b16 %v1762
  %v1900 = vunpack.c.l.b16 %v1763
  %v1901 = vunpack.c.h.b16 %v1763
  %v1902 = vunpack.c.l.b16 %v1764
  %v1903 = vunpack.c.h.b16 %v1764
  %v1904 = vunpack.c.l.b16 %v1765
  %v1905 = vunpack.c.h.b16 %v1765
  %v1906 = vunpack.c.l.b16 %v1766
  %v1907 = vunpack.c.h.b16 %v1766
  %v1908 = vunpack.c.l.b16 %v1767
  %v1909 = vunpack.c.h.b16 %v1767
  %v1910 = vunpack.c.l.b16 %v1768
  %v1911 = vunpack.c.h.b16 %v1768
  %v1912 = vunpack.c.l.b16 %v1769
  %v1913 = vunpack.c.h.b16 %v1769
  %v1914 = vunpack.c.l.b16 %v1770
  %v1915 = vunpack.c.h.b16 %v1770
  %v1916 = vunpack.c.l.b16 %v1771
  %v1917 = vunpack.c.h.b16 %v1771
  %v1918 = vunpack.c.l.b16 %v1772
  %v1919 = vunpack.c.h.b16 %v1772
  %v1920 = vunpack.c.l.b16 %v1773
  %v1921 = vunpack.c.h.b16 %v1773
  %v1922 = vunpack.c.l.b16 %v1774
  %v1923 = vunpack.c.h.b16 %v1774
  %v1924 = vunpack.c.l.b16 %v1775
  %v1925 = vunpack.c.h.b16 %v1775
  %v1926 = vunpack.c.l.b16 %v1776
  %v1927 = vunpack.c.h.b16 %v1776
  %v1928 = vunpack.c.l.b16 %v1777
  %v1929 = vunpack.c.h.b16 %v1777
  %v1930 = vunpack.c.l.b16 %v1778
  %v1931 = vunpack.c.h.b16 %v1778
  %v1932 = vunpack.c.l.b16 %v1779
  %v1933 = vunpack.c.h.b16 %v1779
  %v1934 = vunpack.c.l.b16 %v1780
  %v1935 = vunpack.c.h.b16 %v1780
  %v1936 = vunpack.c.l.b16 %v1781
  %v1937 = vunpack.c.h.b16 %v1781
  %v1938 = vunpack.c.l.b16 %v1782
  %v1939 = vunpack.c.h.b16 %v1782
  %v1940 = vunpack.c.l.b16 %v1783
  %v1941 = vunpack.c.h.b16 %v1783
  %v1942 = vunpack.c.l.b16 %v1784
  %v1943 = vunpack.c.h.b16 %v1784
  %v1944 = vunpack.c.l.b16 %v1785
  %v1945 = vunpack.c.h.b16 %v1785
  %v1946 = vunpack.c.l.b16 %v1786
  %v1947 = vunpack.c.h.b16 %v1786
  %v1948 = vunpack.c.l.b16 %v1787
  %v1949 = vunpack.c.h.b16 %v1787
  %v1950 = vunpack.c.l.b16 %v1788
  %v1951 = vunpack.c.h.b16 %v1788
  %v1952 = vunpack.c.l.b16 %v1789
  %v1953 = vunpack.c.h.b16 %v1789
  %v1954 = vunpack.c.l.b16 %v1790
  %v1955 = vunpack.c.h.b16 %v1790
  %v1956 = vunpack.c.l.b16 %v1791
  %v1957 = vunpack.c.h.b16 %v1791
  %v1958 = vunpack.c.l.b16 %v1792
  %v1959 = vunpack.c.h.b16 %v1792
  %v1960 = vunpack.c.l.b16 %v1793
  %v1961 = vunpack.c.h.b16 %v1793
  %v1962 = vunpack.c.l.b16 %v1794
  %v1963 = vunpack.c.h.b16 %v1794
  %v1964 = vunpack.c.l.b16 %v1795
  %v1965 = vunpack.c.h.b16 %v1795
  %v1966 = vunpack.c.l.b16 %v1796
  %v1967 = vunpack.c.h.b16 %v1796
  %v1968 = vunpack.c.l.b16 %v1797
  %v1969 = vunpack.c.h.b16 %v1797
  %v1970 = vunpack.c.l.b16 %v1798
  %v1971 = vunpack.c.h.b16 %v1798
  %v1972 = vunpack.c.l.b16 %v1799
  %v1973 = vunpack.c.h.b16 %v1799
  %v1974 = vunpack.c.l.b16 %v1800
  %v1975 = vunpack.c.h.b16 %v1800
  %v1976 = vunpack.c.l.b16 %v1801
  %v1977 = vunpack.c.h.b16 %v1801
  %v1978 = vunpack.c.l.b16 %v1802
  %v1979 = vunpack.c.h.b16 %v1802
  %v1980 = vunpack.c.l.b16 %v1803
  %v1981 = vunpack.c.h.b16 %v1803
  %v1982 = vunpack.c.l.b16 %v1804
  %v1983 = vunpack.c.h.b16 %v1804
  %v1984 = vunpack.c.l.b16 %v1805
  %v1985 = vunpack.c.h.b16 %v1805
  %v1986 = vunpack.c.l.b16 %v1806
  %v1987 = vunpack.c.h.b16 %v1806
  %v1988 = vunpack.c.l.b16 %v1807
  %v1989 = vunpack.c.h.b16 %v1807
  %v1990 = vunpack.c.l.b16 %v1808
  %v1991 = vunpack.c.h.b16 %v1808
  %v1992 = vunpack.c.l.b16 %v1809
  %v1993 = vunpack.c.h.b16 %v1809
  %v1994 = vunpack.c.l.b16 %v1810
  %v1995 = vunpack.c.h.b16 %v1810
  %v1996 = vunpack.c.l.b16 %v1811
  %v1997 = vunpack.c.h.b16 %v1811
  %v1998 = vunpack.c.l.b16 %v1812
  %v1999 = vunpack.c.h.b16 %v1812
  %v2000 = vunpack.c.l.b16 %v1813
  %v2001 = vunpack.c.h.b16 %v1813
  %v2002 = vunpack.c.l.b16 %v1814
  %v2003 = vunpack.c.h.b16 %v1814
  %v2004 = vunpack.c.l.b16 %v1815
  %v2005 = vunpack.c.h.b16 %v1815
  %v2006 = vunpack.c.l.b16 %v1816
  %v2007 = vunpack.c.h.b16 %v1816
  %v2008 = vunpack.c.l.b16 %v1817
  %v2009 = vunpack.c.h.b16 %v1817
  %v2010 = vpack.c.b16 %v1884, %v1882
  %v2011 = vpack.c.b16 %v1885, %v1883
  %v2012 = vpack.c.b16 %v1888, %v1886
  %v2013 = vpack.c.b16 %v1889, %v1887
  %v2014 = vpack.c.b16 %v1892, %v1890
  %v2015 = vpack.c.b16 %v1893, %v1891
  %v2016 = vpack.c.b16 %v1896, %v1894
  %v2017 = vpack.c.b16 %v1897, %v1895
  %v2018 = vpack.c.b16 %v1900, %v1898
  %v2019 = vpack.c.b16 %v1901, %v1899
  %v2020 = vpack.c.b16 %v1904, %v1902
  %v2021 = vpack.c.b16 %v1905, %v1903
  %v2022 = vpack.c.b16 %v1908, %v1906
  %v2023 = vpack.c.b16 %v1909, %v1907
  %v2024 = vpack.c.b16 %v1912, %v1910
  %v2025 = vpack.c.b16 %v1913, %v1911
  %v2026 = vpack.c.b16 %v1916, %v1914
  %v2027 = vpack.c.b16 %v1917, %v1915
  %v2028 = vpack.c.b16 %v1920, %v1918
  %v2029 = vpack.c.b16 %v1921, %v1919
  %v2030 = vpack.c.b16 %v1924, %v1922
  %v2031 = vpack.c.b16 %v1925, %v1923
  %v2032 = vpack.c.b16 %v1928, %v1926
  %v2033 = vpack.c.b16 %v1929, %v1927
  %v2034 = vpack.c.b16 %v1932, %v1930
  %v2035 = vpack.c.b16 %v1933, %v1931
  %v2036 = vpack.c.b16 %v1936, %v1934
  %v2037 = vpack.c.b16 %v1937, %v1935
  %v2038 = vpack.c.b16 %v1940, %v1938
  %v2039 = vpack.c.b16 %v1941, %v1939
  %v2040 = vpack.c.b16 %v1944, %v1942
  %v2041 = vpack.c.b16 %v1945, %v1943
  %v2042 = vpack.c.b16 %v1948, %v1946
  %v2043 = vpack.c.b16 %v1949, %v1947
  %v2044 = vpack.c.b16 %v1952, %v1950
  %v2045 = vpack.c.b16 %v1953, %v1951
  %v2046 = vpack.c.b16 %v1956, %v1954
  %v2047 = vpack.c.b16 %v1957, %v1955
  %v2048 = vpack.c.b16 %v1960, %v1958
  %v2049 = vpack.c.b16 %v1961, %v1959
  %v2050 = vpack.c.b16 %v1964, %v1962
  %v2051 = vpack.c.b16 %v1965, %v1963
  %v2052 = vpack.c.b16 %v1968, %v1966
  %v2053 = vpack.c.b16 %v1969, %v1967
  %v2054 = vpack.c.b16 %v1972, %v1970
  %v2055 = vpack.c.b16 %v1973, %v1971
  %v2056 = vpack.c.b16 %v1976, %v1974
  %v2057 = vpack.c.b16 %v1977, %v1975
  %v2058 = vpack.c.b16 %v1980, %v1978
  %v2059 = vpack.c.b16 %v1981, %v1979
  %v2060 = vpack.c.b16 %v1984, %v1982
  %v2061 = vpack.c.b16 %v1985, %v1983
  %v2062 = vpack.c.b16 %v1988, %v1986
  %v2063 = vpack.c.b16 %v1989, %v1987
  %v2064 = vpack.c.b16 %v1992, %v1990
  %v2065 = vpack.c.b16 %v1993, %v1991
  %v2066 = vpack.c.b16 %v1996, %v1994
  %v2067 = vpack.c.b16 %v1997, %v1995
  %v2068 = vpack.c.b16 %v2000, %v1998
  %v2069 = vpack.c.b16 %v2001, %v1999
  %v2070 = vpack.c.b16 %v2004, %v2002
  %v2071 = vpack.c.b16 %v2005, %v2003
  %v2072 = vpack.c.b16 %v2008, %v2006
  %v2073 = vpack.c.b16 %v2009, %v2007
  %2138 = vmatprep.subr.bf16.mxu0 %v2011
  %2139 = vmatpush1.bf16.msra.mxu0 %v2010
  %2140 = vmatprep.subr.bf16.mxu0 %v2013
  %2141 = vmatpush1.bf16.msra.mxu0 %v2012
  %2142 = vmatprep.subr.bf16.mxu0 %v2015
  %2143 = vmatpush1.bf16.msra.mxu0 %v2014
  %2144 = vmatprep.subr.bf16.mxu0 %v2017
  %2145 = vmatpush1.bf16.msra.mxu0 %v2016
  %2146 = vmatprep.subr.bf16.mxu0 %v2019
  %2147 = vmatpush1.bf16.msra.mxu0 %v2018
  %2148 = vmatprep.subr.bf16.mxu0 %v2021
  %2149 = vmatpush1.bf16.msra.mxu0 %v2020
  %2150 = vmatprep.subr.bf16.mxu0 %v2023
  %2151 = vmatpush1.bf16.msra.mxu0 %v2022
  %2152 = vmatprep.subr.bf16.mxu0 %v2025
  %2153 = vmatpush1.bf16.msra.mxu0 %v2024
  %2154 = vmatprep.subr.bf16.mxu0 %v2027
  %2155 = vmatpush1.bf16.msra.mxu0 %v2026
  %2156 = vmatprep.subr.bf16.mxu0 %v2029
  %2157 = vmatpush1.bf16.msra.mxu0 %v2028
  %2158 = vmatprep.subr.bf16.mxu0 %v2031
  %2159 = vmatpush1.bf16.msra.mxu0 %v2030
  %2160 = vmatprep.subr.bf16.mxu0 %v2033
  %2161 = vmatpush1.bf16.msra.mxu0 %v2032
  %2162 = vmatprep.subr.bf16.mxu0 %v2035
  %2163 = vmatpush1.bf16.msra.mxu0 %v2034
  %2164 = vmatprep.subr.bf16.mxu0 %v2037
  %2165 = vmatpush1.bf16.msra.mxu0 %v2036
  %2166 = vmatprep.subr.bf16.mxu0 %v2039
  %2167 = vmatpush1.bf16.msra.mxu0 %v2038
  %2168 = vmatprep.subr.bf16.mxu0 %v2041
  %2169 = vmatpush1.bf16.msra.mxu0 %v2040
  %2170 = vmatprep.mubr.bf16.mxu0 %v1627
  %2171 = vmatmul.mubr.bf16.gmra.mrb[0].mxu0 %v1626
  %v2172 = vpop.f32.mrb[0].mxu0
  %v2173 = vadd.f32 0.0, %v2172
  %v2174 = vpop.f32.mrb[0].mxu0
  %v2175 = vadd.f32 0.0, %v2174
  %v2176 = vpop.f32.mrb[0].mxu0
  %v2177 = vadd.f32 0.0, %v2176
  %v2178 = vpop.f32.mrb[0].mxu0
  %v2179 = vadd.f32 0.0, %v2178
  %2180 = vmatprep.mubr.bf16.mxu0 %v1631
  %2181 = vmatmul.mubr.bf16.gmra.mrb[0].mxu0 %v1630
  %v2182 = vpop.f32.mrb[0].mxu0
  %v2183 = vadd.f32 0.0, %v2182
  %v2184 = vpop.f32.mrb[0].mxu0
  %v2185 = vadd.f32 0.0, %v2184
  %v2186 = vpop.f32.mrb[0].mxu0
  %v2187 = vadd.f32 0.0, %v2186
  %v2188 = vpop.f32.mrb[0].mxu0
  %v2189 = vadd.f32 0.0, %v2188
  %2190 = vmatprep.mubr.bf16.mxu0 %v1635
  %2191 = vmatmul.mubr.bf16.gmra.mrb[0].mxu0 %v1634
  %v2192 = vpop.f32.mrb[0].mxu0
  %v2193 = vadd.f32 0.0, %v2192
  %v2194 = vpop.f32.mrb[0].mxu0
  %v2195 = vadd.f32 0.0, %v2194
  %v2196 = vpop.f32.mrb[0].mxu0
  %v2197 = vadd.f32 0.0, %v2196
  %v2198 = vpop.f32.mrb[0].mxu0
  %v2199 = vadd.f32 0.0, %v2198
  %2200 = vmatprep.mubr.bf16.mxu0 %v1639
  %2201 = vmatmul.mubr.bf16.gmra.mrb[0].mxu0 %v1638
  %v2202 = vpop.f32.mrb[0].mxu0
  %v2203 = vadd.f32 0.0, %v2202
  %v2204 = vpop.f32.mrb[0].mxu0
  %v2205 = vadd.f32 0.0, %v2204
  %v2206 = vpop.f32.mrb[0].mxu0
  %v2207 = vadd.f32 0.0, %v2206
  %v2208 = vpop.f32.mrb[0].mxu0
  %v2209 = vadd.f32 0.0, %v2208
  %2210 = vmatprep.mubr.bf16.mxu0 %v1643
  %2211 = vmatmul.mubr.bf16.gmra.mrb[0].mxu0 %v1642
  %v2212 = vpop.f32.mrb[0].mxu0
  %v2213 = vadd.f32 0.0, %v2212
  %v2214 = vpop.f32.mrb[0].mxu0
  %v2215 = vadd.f32 0.0, %v2214
  %v2216 = vpop.f32.mrb[0].mxu0
  %v2217 = vadd.f32 0.0, %v2216
  %v2218 = vpop.f32.mrb[0].mxu0
  %v2219 = vadd.f32 0.0, %v2218
  %2220 = vmatprep.mubr.bf16.mxu0 %v1647
  %2221 = vmatmul.mubr.bf16.gmra.mrb[0].mxu0 %v1646
  %v2222 = vpop.f32.mrb[0].mxu0
  %v2223 = vadd.f32 0.0, %v2222
  %v2224 = vpop.f32.mrb[0].mxu0
  %v2225 = vadd.f32 0.0, %v2224
  %v2226 = vpop.f32.mrb[0].mxu0
  %v2227 = vadd.f32 0.0, %v2226
  %v2228 = vpop.f32.mrb[0].mxu0
  %v2229 = vadd.f32 0.0, %v2228
  %2230 = vmatprep.mubr.bf16.mxu0 %v1651
  %2231 = vmatmul.mubr.bf16.gmra.mrb[0].mxu0 %v1650
  %v2232 = vpop.f32.mrb[0].mxu0
  %v2233 = vadd.f32 0.0, %v2232
  %v2234 = vpop.f32.mrb[0].mxu0
  %v2235 = vadd.f32 0.0, %v2234
  %v2236 = vpop.f32.mrb[0].mxu0
  %v2237 = vadd.f32 0.0, %v2236
  %v2238 = vpop.f32.mrb[0].mxu0
  %v2239 = vadd.f32 0.0, %v2238
  %2240 = vmatprep.mubr.bf16.mxu0 %v1655
  %2241 = vmatmul.mubr.bf16.gmra.mrb[0].mxu0 %v1654
  %v2242 = vpop.f32.mrb[0].mxu0
  %v2243 = vadd.f32 0.0, %v2242
  %v2244 = vpop.f32.mrb[0].mxu0
  %v2245 = vadd.f32 0.0, %v2244
  %v2246 = vpop.f32.mrb[0].mxu0
  %v2247 = vadd.f32 0.0, %v2246
  %v2248 = vpop.f32.mrb[0].mxu0
  %v2249 = vadd.f32 0.0, %v2248
  %2250 = vmatprep.mubr.bf16.mxu0 %v1659
  %2251 = vmatmul.mubr.bf16.gmra.mrb[0].mxu0 %v1658
  %v2252 = vpop.f32.mrb[0].mxu0
  %v2253 = vadd.f32 0.0, %v2252
  %v2254 = vpop.f32.mrb[0].mxu0
  %v2255 = vadd.f32 0.0, %v2254
  %v2256 = vpop.f32.mrb[0].mxu0
  %v2257 = vadd.f32 0.0, %v2256
  %v2258 = vpop.f32.mrb[0].mxu0
  %v2259 = vadd.f32 0.0, %v2258
  %2260 = vmatprep.mubr.bf16.mxu0 %v1663
  %2261 = vmatmul.mubr.bf16.gmra.mrb[0].mxu0 %v1662
  %v2262 = vpop.f32.mrb[0].mxu0
  %v2263 = vadd.f32 0.0, %v2262
  %v2264 = vpop.f32.mrb[0].mxu0
  %v2265 = vadd.f32 0.0, %v2264
  %v2266 = vpop.f32.mrb[0].mxu0
  %v2267 = vadd.f32 0.0, %v2266
  %v2268 = vpop.f32.mrb[0].mxu0
  %v2269 = vadd.f32 0.0, %v2268
  %2270 = vmatprep.mubr.bf16.mxu0 %v1667
  %2271 = vmatmul.mubr.bf16.gmra.mrb[0].mxu0 %v1666
  %v2272 = vpop.f32.mrb[0].mxu0
  %v2273 = vadd.f32 0.0, %v2272
  %v2274 = vpop.f32.mrb[0].mxu0
  %v2275 = vadd.f32 0.0, %v2274
  %v2276 = vpop.f32.mrb[0].mxu0
  %v2277 = vadd.f32 0.0, %v2276
  %v2278 = vpop.f32.mrb[0].mxu0
  %v2279 = vadd.f32 0.0, %v2278
  %2280 = vmatprep.mubr.bf16.mxu0 %v1671
  %2281 = vmatmul.mubr.bf16.gmra.mrb[0].mxu0 %v1670
  %v2282 = vpop.f32.mrb[0].mxu0
  %v2283 = vadd.f32 0.0, %v2282
  %v2284 = vpop.f32.mrb[0].mxu0
  %v2285 = vadd.f32 0.0, %v2284
  %v2286 = vpop.f32.mrb[0].mxu0
  %v2287 = vadd.f32 0.0, %v2286
  %v2288 = vpop.f32.mrb[0].mxu0
  %v2289 = vadd.f32 0.0, %v2288
  %2290 = vmatprep.mubr.bf16.mxu0 %v1675
  %2291 = vmatmul.mubr.bf16.gmra.mrb[0].mxu0 %v1674
  %v2292 = vpop.f32.mrb[0].mxu0
  %v2293 = vadd.f32 0.0, %v2292
  %v2294 = vpop.f32.mrb[0].mxu0
  %v2295 = vadd.f32 0.0, %v2294
  %v2296 = vpop.f32.mrb[0].mxu0
  %v2297 = vadd.f32 0.0, %v2296
  %v2298 = vpop.f32.mrb[0].mxu0
  %v2299 = vadd.f32 0.0, %v2298
  %2300 = vmatprep.mubr.bf16.mxu0 %v1679
  %2301 = vmatmul.mubr.bf16.gmra.mrb[0].mxu0 %v1678
  %v2302 = vpop.f32.mrb[0].mxu0
  %v2303 = vadd.f32 0.0, %v2302
  %v2304 = vpop.f32.mrb[0].mxu0
  %v2305 = vadd.f32 0.0, %v2304
  %v2306 = vpop.f32.mrb[0].mxu0
  %v2307 = vadd.f32 0.0, %v2306
  %v2308 = vpop.f32.mrb[0].mxu0
  %v2309 = vadd.f32 0.0, %v2308
  %2310 = vmatprep.mubr.bf16.mxu0 %v1683
  %2311 = vmatmul.mubr.bf16.gmra.mrb[0].mxu0 %v1682
  %v2312 = vpop.f32.mrb[0].mxu0
  %v2313 = vadd.f32 0.0, %v2312
  %v2314 = vpop.f32.mrb[0].mxu0
  %v2315 = vadd.f32 0.0, %v2314
  %v2316 = vpop.f32.mrb[0].mxu0
  %v2317 = vadd.f32 0.0, %v2316
  %v2318 = vpop.f32.mrb[0].mxu0
  %v2319 = vadd.f32 0.0, %v2318
  %2320 = vmatprep.mubr.bf16.mxu0 %v1687
  %2321 = vmatmul.mubr.bf16.gmra.mrb[0].mxu0 %v1686
  %v2322 = vpop.f32.mrb[0].mxu0
  %v2323 = vadd.f32 0.0, %v2322
  %v2324 = vpop.f32.mrb[0].mxu0
  %v2325 = vadd.f32 0.0, %v2324
  %v2326 = vpop.f32.mrb[0].mxu0
  %v2327 = vadd.f32 0.0, %v2326
  %v2328 = vpop.f32.mrb[0].mxu0
  %v2329 = vadd.f32 0.0, %v2328
  %2330 = vmatprep.mubr.bf16.mxu0 %v1691
  %2331 = vmatmul.mubr.bf16.gmra.mrb[0].mxu0 %v1690
  %v2332 = vpop.f32.mrb[0].mxu0
  %v2333 = vadd.f32 0.0, %v2332
  %v2334 = vpop.f32.mrb[0].mxu0
  %v2335 = vadd.f32 0.0, %v2334
  %v2336 = vpop.f32.mrb[0].mxu0
  %v2337 = vadd.f32 0.0, %v2336
  %v2338 = vpop.f32.mrb[0].mxu0
  %v2339 = vadd.f32 0.0, %v2338
  %2340 = vmatprep.mubr.bf16.mxu0 %v1695
  %2341 = vmatmul.mubr.bf16.gmra.mrb[0].mxu0 %v1694
  %v2342 = vpop.f32.mrb[0].mxu0
  %v2343 = vadd.f32 0.0, %v2342
  %v2344 = vpop.f32.mrb[0].mxu0
  %v2345 = vadd.f32 0.0, %v2344
  %v2346 = vpop.f32.mrb[0].mxu0
  %v2347 = vadd.f32 0.0, %v2346
  %v2348 = vpop.f32.mrb[0].mxu0
  %v2349 = vadd.f32 0.0, %v2348
  %2350 = vmatprep.mubr.bf16.mxu0 %v1699
  %2351 = vmatmul.mubr.bf16.gmra.mrb[0].mxu0 %v1698
  %v2352 = vpop.f32.mrb[0].mxu0
  %v2353 = vadd.f32 0.0, %v2352
  %v2354 = vpop.f32.mrb[0].mxu0
  %v2355 = vadd.f32 0.0, %v2354
  %v2356 = vpop.f32.mrb[0].mxu0
  %v2357 = vadd.f32 0.0, %v2356
  %v2358 = vpop.f32.mrb[0].mxu0
  %v2359 = vadd.f32 0.0, %v2358
  %2360 = vmatprep.mubr.bf16.mxu0 %v1703
  %2361 = vmatmul.mubr.bf16.gmra.mrb[0].mxu0 %v1702
  %v2362 = vpop.f32.mrb[0].mxu0
  %v2363 = vadd.f32 0.0, %v2362
  %v2364 = vpop.f32.mrb[0].mxu0
  %v2365 = vadd.f32 0.0, %v2364
  %v2366 = vpop.f32.mrb[0].mxu0
  %v2367 = vadd.f32 0.0, %v2366
  %v2368 = vpop.f32.mrb[0].mxu0
  %v2369 = vadd.f32 0.0, %v2368
  %2370 = vmatprep.mubr.bf16.mxu0 %v1707
  %2371 = vmatmul.mubr.bf16.gmra.mrb[0].mxu0 %v1706
  %v2372 = vpop.f32.mrb[0].mxu0
  %v2373 = vadd.f32 0.0, %v2372
  %v2374 = vpop.f32.mrb[0].mxu0
  %v2375 = vadd.f32 0.0, %v2374
  %v2376 = vpop.f32.mrb[0].mxu0
  %v2377 = vadd.f32 0.0, %v2376
  %v2378 = vpop.f32.mrb[0].mxu0
  %v2379 = vadd.f32 0.0, %v2378
  %2380 = vmatprep.mubr.bf16.mxu0 %v1711
  %2381 = vmatmul.mubr.bf16.gmra.mrb[0].mxu0 %v1710
  %v2382 = vpop.f32.mrb[0].mxu0
  %v2383 = vadd.f32 0.0, %v2382
  %v2384 = vpop.f32.mrb[0].mxu0
  %v2385 = vadd.f32 0.0, %v2384
  %v2386 = vpop.f32.mrb[0].mxu0
  %v2387 = vadd.f32 0.0, %v2386
  %v2388 = vpop.f32.mrb[0].mxu0
  %v2389 = vadd.f32 0.0, %v2388
  %2390 = vmatprep.mubr.bf16.mxu0 %v1715
  %2391 = vmatmul.mubr.bf16.gmra.mrb[0].mxu0 %v1714
  %v2392 = vpop.f32.mrb[0].mxu0
  %v2393 = vadd.f32 0.0, %v2392
  %v2394 = vpop.f32.mrb[0].mxu0
  %v2395 = vadd.f32 0.0, %v2394
  %v2396 = vpop.f32.mrb[0].mxu0
  %v2397 = vadd.f32 0.0, %v2396
  %v2398 = vpop.f32.mrb[0].mxu0
  %v2399 = vadd.f32 0.0, %v2398
  %2400 = vmatprep.mubr.bf16.mxu0 %v1719
  %2401 = vmatmul.mubr.bf16.gmra.mrb[0].mxu0 %v1718
  %v2402 = vpop.f32.mrb[0].mxu0
  %v2403 = vadd.f32 0.0, %v2402
  %v2404 = vpop.f32.mrb[0].mxu0
  %v2405 = vadd.f32 0.0, %v2404
  %v2406 = vpop.f32.mrb[0].mxu0
  %v2407 = vadd.f32 0.0, %v2406
  %v2408 = vpop.f32.mrb[0].mxu0
  %v2409 = vadd.f32 0.0, %v2408
  %2410 = vmatprep.mubr.bf16.mxu0 %v1723
  %2411 = vmatmul.mubr.bf16.gmra.mrb[0].mxu0 %v1722
  %v2412 = vpop.f32.mrb[0].mxu0
  %v2413 = vadd.f32 0.0, %v2412
  %v2414 = vpop.f32.mrb[0].mxu0
  %v2415 = vadd.f32 0.0, %v2414
  %v2416 = vpop.f32.mrb[0].mxu0
  %v2417 = vadd.f32 0.0, %v2416
  %v2418 = vpop.f32.mrb[0].mxu0
  %v2419 = vadd.f32 0.0, %v2418
  %2420 = vmatprep.mubr.bf16.mxu0 %v1727
  %2421 = vmatmul.mubr.bf16.gmra.mrb[0].mxu0 %v1726
  %v2422 = vpop.f32.mrb[0].mxu0
  %v2423 = vadd.f32 0.0, %v2422
  %v2424 = vpop.f32.mrb[0].mxu0
  %v2425 = vadd.f32 0.0, %v2424
  %v2426 = vpop.f32.mrb[0].mxu0
  %v2427 = vadd.f32 0.0, %v2426
  %v2428 = vpop.f32.mrb[0].mxu0
  %v2429 = vadd.f32 0.0, %v2428
  %2430 = vmatprep.mubr.bf16.mxu0 %v1731
  %2431 = vmatmul.mubr.bf16.gmra.mrb[0].mxu0 %v1730
  %v2432 = vpop.f32.mrb[0].mxu0
  %v2433 = vadd.f32 0.0, %v2432
  %v2434 = vpop.f32.mrb[0].mxu0
  %v2435 = vadd.f32 0.0, %v2434
  %v2436 = vpop.f32.mrb[0].mxu0
  %v2437 = vadd.f32 0.0, %v2436
  %v2438 = vpop.f32.mrb[0].mxu0
  %v2439 = vadd.f32 0.0, %v2438
  %2440 = vmatprep.mubr.bf16.mxu0 %v1735
  %2441 = vmatmul.mubr.bf16.gmra.mrb[0].mxu0 %v1734
  %v2442 = vpop.f32.mrb[0].mxu0
  %v2443 = vadd.f32 0.0, %v2442
  %v2444 = vpop.f32.mrb[0].mxu0
  %v2445 = vadd.f32 0.0, %v2444
  %v2446 = vpop.f32.mrb[0].mxu0
  %v2447 = vadd.f32 0.0, %v2446
  %v2448 = vpop.f32.mrb[0].mxu0
  %v2449 = vadd.f32 0.0, %v2448
  %2450 = vmatprep.mubr.bf16.mxu0 %v1739
  %2451 = vmatmul.mubr.bf16.gmra.mrb[0].mxu0 %v1738
  %v2452 = vpop.f32.mrb[0].mxu0
  %v2453 = vadd.f32 0.0, %v2452
  %v2454 = vpop.f32.mrb[0].mxu0
  %v2455 = vadd.f32 0.0, %v2454
  %v2456 = vpop.f32.mrb[0].mxu0
  %v2457 = vadd.f32 0.0, %v2456
  %v2458 = vpop.f32.mrb[0].mxu0
  %v2459 = vadd.f32 0.0, %v2458
  %2460 = vmatprep.mubr.bf16.mxu0 %v1743
  %2461 = vmatmul.mubr.bf16.gmra.mrb[0].mxu0 %v1742
  %v2462 = vpop.f32.mrb[0].mxu0
  %v2463 = vadd.f32 0.0, %v2462
  %v2464 = vpop.f32.mrb[0].mxu0
  %v2465 = vadd.f32 0.0, %v2464
  %v2466 = vpop.f32.mrb[0].mxu0
  %v2467 = vadd.f32 0.0, %v2466
  %v2468 = vpop.f32.mrb[0].mxu0
  %v2469 = vadd.f32 0.0, %v2468
  %2470 = vmatprep.mubr.bf16.mxu0 %v1747
  %2471 = vmatmul.mubr.bf16.gmra.mrb[0].mxu0 %v1746
  %v2472 = vpop.f32.mrb[0].mxu0
  %v2473 = vadd.f32 0.0, %v2472
  %v2474 = vpop.f32.mrb[0].mxu0
  %v2475 = vadd.f32 0.0, %v2474
  %v2476 = vpop.f32.mrb[0].mxu0
  %v2477 = vadd.f32 0.0, %v2476
  %v2478 = vpop.f32.mrb[0].mxu0
  %v2479 = vadd.f32 0.0, %v2478
  %2480 = vmatprep.mubr.bf16.mxu0 %v1751
  %2481 = vmatmul.mubr.bf16.gmra.mrb[0].mxu0 %v1750
  %v2482 = vpop.f32.mrb[0].mxu0
  %v2483 = vadd.f32 0.0, %v2482
  %v2484 = vpop.f32.mrb[0].mxu0
  %v2485 = vadd.f32 0.0, %v2484
  %v2486 = vpop.f32.mrb[0].mxu0
  %v2487 = vadd.f32 0.0, %v2486
  %v2488 = vpop.f32.mrb[0].mxu0
  %v2489 = vadd.f32 0.0, %v2488
  %2490 = vdwg.mxu0
  %2491 = vmatprep.subr.bf16.mxu0 %v2043
  %2492 = vmatpush1.bf16.msra.mxu0 %v2042
  %2493 = vmatprep.subr.bf16.mxu0 %v2045
  %2494 = vmatpush1.bf16.msra.mxu0 %v2044
  %2495 = vmatprep.subr.bf16.mxu0 %v2047
  %2496 = vmatpush1.bf16.msra.mxu0 %v2046
  %2497 = vmatprep.subr.bf16.mxu0 %v2049
  %2498 = vmatpush1.bf16.msra.mxu0 %v2048
  %2499 = vmatprep.subr.bf16.mxu0 %v2051
  %2500 = vmatpush1.bf16.msra.mxu0 %v2050
  %2501 = vmatprep.subr.bf16.mxu0 %v2053
  %2502 = vmatpush1.bf16.msra.mxu0 %v2052
  %2503 = vmatprep.subr.bf16.mxu0 %v2055
  %2504 = vmatpush1.bf16.msra.mxu0 %v2054
  %2505 = vmatprep.subr.bf16.mxu0 %v2057
  %2506 = vmatpush1.bf16.msra.mxu0 %v2056
  %2507 = vmatprep.subr.bf16.mxu0 %v2059
  %2508 = vmatpush1.bf16.msra.mxu0 %v2058
  %2509 = vmatprep.subr.bf16.mxu0 %v2061
  %2510 = vmatpush1.bf16.msra.mxu0 %v2060
  %2511 = vmatprep.subr.bf16.mxu0 %v2063
  %2512 = vmatpush1.bf16.msra.mxu0 %v2062
  %2513 = vmatprep.subr.bf16.mxu0 %v2065
  %2514 = vmatpush1.bf16.msra.mxu0 %v2064
  %2515 = vmatprep.subr.bf16.mxu0 %v2067
  %2516 = vmatpush1.bf16.msra.mxu0 %v2066
  %2517 = vmatprep.subr.bf16.mxu0 %v2069
  %2518 = vmatpush1.bf16.msra.mxu0 %v2068
  %2519 = vmatprep.subr.bf16.mxu0 %v2071
  %2520 = vmatpush1.bf16.msra.mxu0 %v2070
  %2521 = vmatprep.subr.bf16.mxu0 %v2073
  %2522 = vmatpush1.bf16.msra.mxu0 %v2072
  %2523 = vmatprep.mubr.bf16.mxu0 %v1629
  %2524 = vmatmul.mubr.bf16.gmra.mrb[0].mxu0 %v1628
  %v2525 = vpop.f32.mrb[0].mxu0
  %v2526 = vadd.f32 %v2173, %v2525
  %v2527 = vpop.f32.mrb[0].mxu0
  %v2528 = vadd.f32 %v2175, %v2527
  %v2529 = vpop.f32.mrb[0].mxu0
  %v2530 = vadd.f32 %v2177, %v2529
  %v2531 = vpop.f32.mrb[0].mxu0
  %v2532 = vadd.f32 %v2179, %v2531
  %2533 = vmatprep.mubr.bf16.mxu0 %v1633
  %2534 = vmatmul.mubr.bf16.gmra.mrb[0].mxu0 %v1632
  %v2535 = vpop.f32.mrb[0].mxu0
  %v2536 = vadd.f32 %v2183, %v2535
  %v2537 = vpop.f32.mrb[0].mxu0
  %v2538 = vadd.f32 %v2185, %v2537
  %v2539 = vpop.f32.mrb[0].mxu0
  %v2540 = vadd.f32 %v2187, %v2539
  %v2541 = vpop.f32.mrb[0].mxu0
  %v2542 = vadd.f32 %v2189, %v2541
  %2543 = vmatprep.mubr.bf16.mxu0 %v1637
  %2544 = vmatmul.mubr.bf16.gmra.mrb[0].mxu0 %v1636
  %v2545 = vpop.f32.mrb[0].mxu0
  %v2546 = vadd.f32 %v2193, %v2545
  %v2547 = vpop.f32.mrb[0].mxu0
  %v2548 = vadd.f32 %v2195, %v2547
  %v2549 = vpop.f32.mrb[0].mxu0
  %v2550 = vadd.f32 %v2197, %v2549
  %v2551 = vpop.f32.mrb[0].mxu0
  %v2552 = vadd.f32 %v2199, %v2551
  %2553 = vmatprep.mubr.bf16.mxu0 %v1641
  %2554 = vmatmul.mubr.bf16.gmra.mrb[0].mxu0 %v1640
  %v2555 = vpop.f32.mrb[0].mxu0
  %v2556 = vadd.f32 %v2203, %v2555
  %v2557 = vpop.f32.mrb[0].mxu0
  %v2558 = vadd.f32 %v2205, %v2557
  %v2559 = vpop.f32.mrb[0].mxu0
  %v2560 = vadd.f32 %v2207, %v2559
  %v2561 = vpop.f32.mrb[0].mxu0
  %v2562 = vadd.f32 %v2209, %v2561
  %2563 = vmatprep.mubr.bf16.mxu0 %v1645
  %2564 = vmatmul.mubr.bf16.gmra.mrb[0].mxu0 %v1644
  %v2565 = vpop.f32.mrb[0].mxu0
  %v2566 = vadd.f32 %v2213, %v2565
  %v2567 = vpop.f32.mrb[0].mxu0
  %v2568 = vadd.f32 %v2215, %v2567
  %v2569 = vpop.f32.mrb[0].mxu0
  %v2570 = vadd.f32 %v2217, %v2569
  %v2571 = vpop.f32.mrb[0].mxu0
  %v2572 = vadd.f32 %v2219, %v2571
  %2573 = vmatprep.mubr.bf16.mxu0 %v1649
  %2574 = vmatmul.mubr.bf16.gmra.mrb[0].mxu0 %v1648
  %v2575 = vpop.f32.mrb[0].mxu0
  %v2576 = vadd.f32 %v2223, %v2575
  %v2577 = vpop.f32.mrb[0].mxu0
  %v2578 = vadd.f32 %v2225, %v2577
  %v2579 = vpop.f32.mrb[0].mxu0
  %v2580 = vadd.f32 %v2227, %v2579
  %v2581 = vpop.f32.mrb[0].mxu0
  %v2582 = vadd.f32 %v2229, %v2581
  %2583 = vmatprep.mubr.bf16.mxu0 %v1653
  %2584 = vmatmul.mubr.bf16.gmra.mrb[0].mxu0 %v1652
  %v2585 = vpop.f32.mrb[0].mxu0
  %v2586 = vadd.f32 %v2233, %v2585
  %v2587 = vpop.f32.mrb[0].mxu0
  %v2588 = vadd.f32 %v2235, %v2587
  %v2589 = vpop.f32.mrb[0].mxu0
  %v2590 = vadd.f32 %v2237, %v2589
  %v2591 = vpop.f32.mrb[0].mxu0
  %v2592 = vadd.f32 %v2239, %v2591
  %2593 = vmatprep.mubr.bf16.mxu0 %v1657
  %2594 = vmatmul.mubr.bf16.gmra.mrb[0].mxu0 %v1656
  %v2595 = vpop.f32.mrb[0].mxu0
  %v2596 = vadd.f32 %v2243, %v2595
  %v2597 = vpop.f32.mrb[0].mxu0
  %v2598 = vadd.f32 %v2245, %v2597
  %v2599 = vpop.f32.mrb[0].mxu0
  %v2600 = vadd.f32 %v2247, %v2599
  %v2601 = vpop.f32.mrb[0].mxu0
  %v2602 = vadd.f32 %v2249, %v2601
  %2603 = vmatprep.mubr.bf16.mxu0 %v1661
  %2604 = vmatmul.mubr.bf16.gmra.mrb[0].mxu0 %v1660
  %v2605 = vpop.f32.mrb[0].mxu0
  %v2606 = vadd.f32 %v2253, %v2605
  %v2607 = vpop.f32.mrb[0].mxu0
  %v2608 = vadd.f32 %v2255, %v2607
  %v2609 = vpop.f32.mrb[0].mxu0
  %v2610 = vadd.f32 %v2257, %v2609
  %v2611 = vpop.f32.mrb[0].mxu0
  %v2612 = vadd.f32 %v2259, %v2611
  %2613 = vmatprep.mubr.bf16.mxu0 %v1665
  %2614 = vmatmul.mubr.bf16.gmra.mrb[0].mxu0 %v1664
  %v2615 = vpop.f32.mrb[0].mxu0
  %v2616 = vadd.f32 %v2263, %v2615
  %v2617 = vpop.f32.mrb[0].mxu0
  %v2618 = vadd.f32 %v2265, %v2617
  %v2619 = vpop.f32.mrb[0].mxu0
  %v2620 = vadd.f32 %v2267, %v2619
  %v2621 = vpop.f32.mrb[0].mxu0
  %v2622 = vadd.f32 %v2269, %v2621
  %2623 = vmatprep.mubr.bf16.mxu0 %v1669
  %2624 = vmatmul.mubr.bf16.gmra.mrb[0].mxu0 %v1668
  %v2625 = vpop.f32.mrb[0].mxu0
  %v2626 = vadd.f32 %v2273, %v2625
  %v2627 = vpop.f32.mrb[0].mxu0
  %v2628 = vadd.f32 %v2275, %v2627
  %v2629 = vpop.f32.mrb[0].mxu0
  %v2630 = vadd.f32 %v2277, %v2629
  %v2631 = vpop.f32.mrb[0].mxu0
  %v2632 = vadd.f32 %v2279, %v2631
  %2633 = vmatprep.mubr.bf16.mxu0 %v1673
  %2634 = vmatmul.mubr.bf16.gmra.mrb[0].mxu0 %v1672
  %v2635 = vpop.f32.mrb[0].mxu0
  %v2636 = vadd.f32 %v2283, %v2635
  %v2637 = vpop.f32.mrb[0].mxu0
  %v2638 = vadd.f32 %v2285, %v2637
  %v2639 = vpop.f32.mrb[0].mxu0
  %v2640 = vadd.f32 %v2287, %v2639
  %v2641 = vpop.f32.mrb[0].mxu0
  %v2642 = vadd.f32 %v2289, %v2641
  %2643 = vmatprep.mubr.bf16.mxu0 %v1677
  %2644 = vmatmul.mubr.bf16.gmra.mrb[0].mxu0 %v1676
  %v2645 = vpop.f32.mrb[0].mxu0
  %v2646 = vadd.f32 %v2293, %v2645
  %v2647 = vpop.f32.mrb[0].mxu0
  %v2648 = vadd.f32 %v2295, %v2647
  %v2649 = vpop.f32.mrb[0].mxu0
  %v2650 = vadd.f32 %v2297, %v2649
  %v2651 = vpop.f32.mrb[0].mxu0
  %v2652 = vadd.f32 %v2299, %v2651
  %2653 = vmatprep.mubr.bf16.mxu0 %v1681
  %2654 = vmatmul.mubr.bf16.gmra.mrb[0].mxu0 %v1680
  %v2655 = vpop.f32.mrb[0].mxu0
  %v2656 = vadd.f32 %v2303, %v2655
  %v2657 = vpop.f32.mrb[0].mxu0
  %v2658 = vadd.f32 %v2305, %v2657
  %v2659 = vpop.f32.mrb[0].mxu0
  %v2660 = vadd.f32 %v2307, %v2659
  %v2661 = vpop.f32.mrb[0].mxu0
  %v2662 = vadd.f32 %v2309, %v2661
  %2663 = vmatprep.mubr.bf16.mxu0 %v1685
  %2664 = vmatmul.mubr.bf16.gmra.mrb[0].mxu0 %v1684
  %v2665 = vpop.f32.mrb[0].mxu0
  %v2666 = vadd.f32 %v2313, %v2665
  %v2667 = vpop.f32.mrb[0].mxu0
  %v2668 = vadd.f32 %v2315, %v2667
  %v2669 = vpop.f32.mrb[0].mxu0
  %v2670 = vadd.f32 %v2317, %v2669
  %v2671 = vpop.f32.mrb[0].mxu0
  %v2672 = vadd.f32 %v2319, %v2671
  %2673 = vmatprep.mubr.bf16.mxu0 %v1689
  %2674 = vmatmul.mubr.bf16.gmra.mrb[0].mxu0 %v1688
  %v2675 = vpop.f32.mrb[0].mxu0
  %v2676 = vadd.f32 %v2323, %v2675
  %v2677 = vpop.f32.mrb[0].mxu0
  %v2678 = vadd.f32 %v2325, %v2677
  %v2679 = vpop.f32.mrb[0].mxu0
  %v2680 = vadd.f32 %v2327, %v2679
  %v2681 = vpop.f32.mrb[0].mxu0
  %v2682 = vadd.f32 %v2329, %v2681
  %2683 = vmatprep.mubr.bf16.mxu0 %v1693
  %2684 = vmatmul.mubr.bf16.gmra.mrb[0].mxu0 %v1692
  %v2685 = vpop.f32.mrb[0].mxu0
  %v2686 = vadd.f32 %v2333, %v2685
  %v2687 = vpop.f32.mrb[0].mxu0
  %v2688 = vadd.f32 %v2335, %v2687
  %v2689 = vpop.f32.mrb[0].mxu0
  %v2690 = vadd.f32 %v2337, %v2689
  %v2691 = vpop.f32.mrb[0].mxu0
  %v2692 = vadd.f32 %v2339, %v2691
  %2693 = vmatprep.mubr.bf16.mxu0 %v1697
  %2694 = vmatmul.mubr.bf16.gmra.mrb[0].mxu0 %v1696
  %v2695 = vpop.f32.mrb[0].mxu0
  %v2696 = vadd.f32 %v2343, %v2695
  %v2697 = vpop.f32.mrb[0].mxu0
  %v2698 = vadd.f32 %v2345, %v2697
  %v2699 = vpop.f32.mrb[0].mxu0
  %v2700 = vadd.f32 %v2347, %v2699
  %v2701 = vpop.f32.mrb[0].mxu0
  %v2702 = vadd.f32 %v2349, %v2701
  %2703 = vmatprep.mubr.bf16.mxu0 %v1701
  %2704 = vmatmul.mubr.bf16.gmra.mrb[0].mxu0 %v1700
  %v2705 = vpop.f32.mrb[0].mxu0
  %v2706 = vadd.f32 %v2353, %v2705
  %v2707 = vpop.f32.mrb[0].mxu0
  %v2708 = vadd.f32 %v2355, %v2707
  %v2709 = vpop.f32.mrb[0].mxu0
  %v2710 = vadd.f32 %v2357, %v2709
  %v2711 = vpop.f32.mrb[0].mxu0
  %v2712 = vadd.f32 %v2359, %v2711
  %2713 = vmatprep.mubr.bf16.mxu0 %v1705
  %2714 = vmatmul.mubr.bf16.gmra.mrb[0].mxu0 %v1704
  %v2715 = vpop.f32.mrb[0].mxu0
  %v2716 = vadd.f32 %v2363, %v2715
  %v2717 = vpop.f32.mrb[0].mxu0
  %v2718 = vadd.f32 %v2365, %v2717
  %v2719 = vpop.f32.mrb[0].mxu0
  %v2720 = vadd.f32 %v2367, %v2719
  %v2721 = vpop.f32.mrb[0].mxu0
  %v2722 = vadd.f32 %v2369, %v2721
  %2723 = vmatprep.mubr.bf16.mxu0 %v1709
  %2724 = vmatmul.mubr.bf16.gmra.mrb[0].mxu0 %v1708
  %v2725 = vpop.f32.mrb[0].mxu0
  %v2726 = vadd.f32 %v2373, %v2725
  %v2727 = vpop.f32.mrb[0].mxu0
  %v2728 = vadd.f32 %v2375, %v2727
  %v2729 = vpop.f32.mrb[0].mxu0
  %v2730 = vadd.f32 %v2377, %v2729
  %v2731 = vpop.f32.mrb[0].mxu0
  %v2732 = vadd.f32 %v2379, %v2731
  %2733 = vmatprep.mubr.bf16.mxu0 %v1713
  %2734 = vmatmul.mubr.bf16.gmra.mrb[0].mxu0 %v1712
  %v2735 = vpop.f32.mrb[0].mxu0
  %v2736 = vadd.f32 %v2383, %v2735
  %v2737 = vpop.f32.mrb[0].mxu0
  %v2738 = vadd.f32 %v2385, %v2737
  %v2739 = vpop.f32.mrb[0].mxu0
  %v2740 = vadd.f32 %v2387, %v2739
  %v2741 = vpop.f32.mrb[0].mxu0
  %v2742 = vadd.f32 %v2389, %v2741
  %2743 = vmatprep.mubr.bf16.mxu0 %v1717
  %2744 = vmatmul.mubr.bf16.gmra.mrb[0].mxu0 %v1716
  %v2745 = vpop.f32.mrb[0].mxu0
  %v2746 = vadd.f32 %v2393, %v2745
  %v2747 = vpop.f32.mrb[0].mxu0
  %v2748 = vadd.f32 %v2395, %v2747
  %v2749 = vpop.f32.mrb[0].mxu0
  %v2750 = vadd.f32 %v2397, %v2749
  %v2751 = vpop.f32.mrb[0].mxu0
  %v2752 = vadd.f32 %v2399, %v2751
  %2753 = vmatprep.mubr.bf16.mxu0 %v1721
  %2754 = vmatmul.mubr.bf16.gmra.mrb[0].mxu0 %v1720
  %v2755 = vpop.f32.mrb[0].mxu0
  %v2756 = vadd.f32 %v2403, %v2755
  %v2757 = vpop.f32.mrb[0].mxu0
  %v2758 = vadd.f32 %v2405, %v2757
  %v2759 = vpop.f32.mrb[0].mxu0
  %v2760 = vadd.f32 %v2407, %v2759
  %v2761 = vpop.f32.mrb[0].mxu0
  %v2762 = vadd.f32 %v2409, %v2761
  %2763 = vmatprep.mubr.bf16.mxu0 %v1725
  %2764 = vmatmul.mubr.bf16.gmra.mrb[0].mxu0 %v1724
  %v2765 = vpop.f32.mrb[0].mxu0
  %v2766 = vadd.f32 %v2413, %v2765
  %v2767 = vpop.f32.mrb[0].mxu0
  %v2768 = vadd.f32 %v2415, %v2767
  %v2769 = vpop.f32.mrb[0].mxu0
  %v2770 = vadd.f32 %v2417, %v2769
  %v2771 = vpop.f32.mrb[0].mxu0
  %v2772 = vadd.f32 %v2419, %v2771
  %2773 = vmatprep.mubr.bf16.mxu0 %v1729
  %2774 = vmatmul.mubr.bf16.gmra.mrb[0].mxu0 %v1728
  %v2775 = vpop.f32.mrb[0].mxu0
  %v2776 = vadd.f32 %v2423, %v2775
  %v2777 = vpop.f32.mrb[0].mxu0
  %v2778 = vadd.f32 %v2425, %v2777
  %v2779 = vpop.f32.mrb[0].mxu0
  %v2780 = vadd.f32 %v2427, %v2779
  %v2781 = vpop.f32.mrb[0].mxu0
  %v2782 = vadd.f32 %v2429, %v2781
  %2783 = vmatprep.mubr.bf16.mxu0 %v1733
  %2784 = vmatmul.mubr.bf16.gmra.mrb[0].mxu0 %v1732
  %v2785 = vpop.f32.mrb[0].mxu0
  %v2786 = vadd.f32 %v2433, %v2785
  %v2787 = vpop.f32.mrb[0].mxu0
  %v2788 = vadd.f32 %v2435, %v2787
  %v2789 = vpop.f32.mrb[0].mxu0
  %v2790 = vadd.f32 %v2437, %v2789
  %v2791 = vpop.f32.mrb[0].mxu0
  %v2792 = vadd.f32 %v2439, %v2791
  %2793 = vmatprep.mubr.bf16.mxu0 %v1737
  %2794 = vmatmul.mubr.bf16.gmra.mrb[0].mxu0 %v1736
  %v2795 = vpop.f32.mrb[0].mxu0
  %v2796 = vadd.f32 %v2443, %v2795
  %v2797 = vpop.f32.mrb[0].mxu0
  %v2798 = vadd.f32 %v2445, %v2797
  %v2799 = vpop.f32.mrb[0].mxu0
  %v2800 = vadd.f32 %v2447, %v2799
  %v2801 = vpop.f32.mrb[0].mxu0
  %v2802 = vadd.f32 %v2449, %v2801
  %2803 = vmatprep.mubr.bf16.mxu0 %v1741
  %2804 = vmatmul.mubr.bf16.gmra.mrb[0].mxu0 %v1740
  %v2805 = vpop.f32.mrb[0].mxu0
  %v2806 = vadd.f32 %v2453, %v2805
  %v2807 = vpop.f32.mrb[0].mxu0
  %v2808 = vadd.f32 %v2455, %v2807
  %v2809 = vpop.f32.mrb[0].mxu0
  %v2810 = vadd.f32 %v2457, %v2809
  %v2811 = vpop.f32.mrb[0].mxu0
  %v2812 = vadd.f32 %v2459, %v2811
  %2813 = vmatprep.mubr.bf16.mxu0 %v1745
  %2814 = vmatmul.mubr.bf16.gmra.mrb[0].mxu0 %v1744
  %v2815 = vpop.f32.mrb[0].mxu0
  %v2816 = vadd.f32 %v2463, %v2815
  %v2817 = vpop.f32.mrb[0].mxu0
  %v2818 = vadd.f32 %v2465, %v2817
  %v2819 = vpop.f32.mrb[0].mxu0
  %v2820 = vadd.f32 %v2467, %v2819
  %v2821 = vpop.f32.mrb[0].mxu0
  %v2822 = vadd.f32 %v2469, %v2821
  %2823 = vmatprep.mubr.bf16.mxu0 %v1749
  %2824 = vmatmul.mubr.bf16.gmra.mrb[0].mxu0 %v1748
  %v2825 = vpop.f32.mrb[0].mxu0
  %v2826 = vadd.f32 %v2473, %v2825
  %v2827 = vpop.f32.mrb[0].mxu0
  %v2828 = vadd.f32 %v2475, %v2827
  %v2829 = vpop.f32.mrb[0].mxu0
  %v2830 = vadd.f32 %v2477, %v2829
  %v2831 = vpop.f32.mrb[0].mxu0
  %v2832 = vadd.f32 %v2479, %v2831
  %2833 = vmatprep.mubr.bf16.mxu0 %v1753
  %2834 = vmatmul.mubr.bf16.gmra.mrb[0].mxu0 %v1752
  %v2835 = vpop.f32.mrb[0].mxu0
  %v2836 = vadd.f32 %v2483, %v2835
  %v2837 = vpop.f32.mrb[0].mxu0
  %v2838 = vadd.f32 %v2485, %v2837
  %v2839 = vpop.f32.mrb[0].mxu0
  %v2840 = vadd.f32 %v2487, %v2839
  %v2841 = vpop.f32.mrb[0].mxu0
  %v2842 = vadd.f32 %v2489, %v2841
  %2843 = vdwg.mxu0
  %v2844 = vpack.c.bf16 %v2530, %v2526
  %v2845 = vpack.c.bf16 %v2532, %v2528
  %v2846 = vpack.c.bf16 %v2540, %v2536
  %v2847 = vpack.c.bf16 %v2542, %v2538
  %v2848 = vpack.c.bf16 %v2550, %v2546
  %v2849 = vpack.c.bf16 %v2552, %v2548
  %v2850 = vpack.c.bf16 %v2560, %v2556
  %v2851 = vpack.c.bf16 %v2562, %v2558
  %v2852 = vpack.c.bf16 %v2570, %v2566
  %v2853 = vpack.c.bf16 %v2572, %v2568
  %v2854 = vpack.c.bf16 %v2580, %v2576
  %v2855 = vpack.c.bf16 %v2582, %v2578
  %v2856 = vpack.c.bf16 %v2590, %v2586
  %v2857 = vpack.c.bf16 %v2592, %v2588
  %v2858 = vpack.c.bf16 %v2600, %v2596
  %v2859 = vpack.c.bf16 %v2602, %v2598
  %v2860 = vpack.c.bf16 %v2610, %v2606
  %v2861 = vpack.c.bf16 %v2612, %v2608
  %v2862 = vpack.c.bf16 %v2620, %v2616
  %v2863 = vpack.c.bf16 %v2622, %v2618
  %v2864 = vpack.c.bf16 %v2630, %v2626
  %v2865 = vpack.c.bf16 %v2632, %v2628
  %v2866 = vpack.c.bf16 %v2640, %v2636
  %v2867 = vpack.c.bf16 %v2642, %v2638
  %v2868 = vpack.c.bf16 %v2650, %v2646
  %v2869 = vpack.c.bf16 %v2652, %v2648
  %v2870 = vpack.c.bf16 %v2660, %v2656
  %v2871 = vpack.c.bf16 %v2662, %v2658
  %v2872 = vpack.c.bf16 %v2670, %v2666
  %v2873 = vpack.c.bf16 %v2672, %v2668
  %v2874 = vpack.c.bf16 %v2680, %v2676
  %v2875 = vpack.c.bf16 %v2682, %v2678
  %v2876 = vpack.c.bf16 %v2690, %v2686
  %v2877 = vpack.c.bf16 %v2692, %v2688
  %v2878 = vpack.c.bf16 %v2700, %v2696
  %v2879 = vpack.c.bf16 %v2702, %v2698
  %v2880 = vpack.c.bf16 %v2710, %v2706
  %v2881 = vpack.c.bf16 %v2712, %v2708
  %v2882 = vpack.c.bf16 %v2720, %v2716
  %v2883 = vpack.c.bf16 %v2722, %v2718
  %v2884 = vpack.c.bf16 %v2730, %v2726
  %v2885 = vpack.c.bf16 %v2732, %v2728
  %v2886 = vpack.c.bf16 %v2740, %v2736
  %v2887 = vpack.c.bf16 %v2742, %v2738
  %v2888 = vpack.c.bf16 %v2750, %v2746
  %v2889 = vpack.c.bf16 %v2752, %v2748
  %v2890 = vpack.c.bf16 %v2760, %v2756
  %v2891 = vpack.c.bf16 %v2762, %v2758
  %v2892 = vpack.c.bf16 %v2770, %v2766
  %v2893 = vpack.c.bf16 %v2772, %v2768
  %v2894 = vpack.c.bf16 %v2780, %v2776
  %v2895 = vpack.c.bf16 %v2782, %v2778
  %v2896 = vpack.c.bf16 %v2790, %v2786
  %v2897 = vpack.c.bf16 %v2792, %v2788
  %v2898 = vpack.c.bf16 %v2800, %v2796
  %v2899 = vpack.c.bf16 %v2802, %v2798
  %v2900 = vpack.c.bf16 %v2810, %v2806
  %v2901 = vpack.c.bf16 %v2812, %v2808
  %v2902 = vpack.c.bf16 %v2820, %v2816
  %v2903 = vpack.c.bf16 %v2822, %v2818
  %v2904 = vpack.c.bf16 %v2830, %v2826
  %v2905 = vpack.c.bf16 %v2832, %v2828
  %v2906 = vpack.c.bf16 %v2840, %v2836
  %v2907 = vpack.c.bf16 %v2842, %v2838
  %v2908 = vld [vmem:[%s4] sm:$0x3]
  %v2911 = vunpack.c.l.s4 1966171168
  %v2912 = vunpack.c.0.s8 %v2911
  %v2913 = vlaneseq
  %v2914 = vshrl.u32 %v2913, 7
  %v2915 = vsub.s32 %v2912, %v2914
  %v2916 = vrot.slane %v2908, %v2915
  %v2917 = vcombine.high %v2916, %v2916
  %v2919 = vunpack.c.l.s4 1966171168
  %v2920 = vunpack.c.0.s8 %v2919
  %v2921 = vlaneseq
  %v2922 = vshrl.u32 %v2921, 7
  %v2923 = vsub.s32 %v2920, %v2922
  %v2924 = vrot.slane %v2916, %v2923
  %v2926 = vunpack.c.l.s4 1966171168
  %v2927 = vunpack.c.0.s8 %v2926
  %v2928 = vlaneseq
  %v2929 = vshrl.u32 %v2928, 7
  %v2930 = vsub.s32 %v2927, %v2929
  %v2931 = vrot.slane %v2917, %v2930
  %v2933 = vpack.i.b16 %v2924, %v2924
  %v2935 = vlaneseq
  %v2936 = vshrl.u32 %v2935, 7
  %v2937 = vsub.s32 0, %v2936
  %v2938 = vrot.slane %v2933, %v2937
  %v2940 = vpack.i.b16 %v2931, %v2931
  %v2942 = vlaneseq
  %v2943 = vshrl.u32 %v2942, 7
  %v2944 = vsub.s32 0, %v2943
  %v2945 = vrot.slane %v2940, %v2944
  %v2946 = vadd.bf16 %v2844, %v2938
  %v2947 = vadd.bf16 %v2845, %v2945
  %v2948 = vadd.bf16 %v2846, %v2938
  %v2949 = vadd.bf16 %v2847, %v2945
  %v2950 = vadd.bf16 %v2848, %v2938
  %v2951 = vadd.bf16 %v2849, %v2945
  %v2952 = vadd.bf16 %v2850, %v2938
  %v2953 = vadd.bf16 %v2851, %v2945
  %v2954 = vadd.bf16 %v2852, %v2938
  %v2955 = vadd.bf16 %v2853, %v2945
  %v2956 = vadd.bf16 %v2854, %v2938
  %v2957 = vadd.bf16 %v2855, %v2945
  %v2958 = vadd.bf16 %v2856, %v2938
  %v2959 = vadd.bf16 %v2857, %v2945
  %v2960 = vadd.bf16 %v2858, %v2938
  %v2961 = vadd.bf16 %v2859, %v2945
  %v2962 = vadd.bf16 %v2860, %v2938
  %v2963 = vadd.bf16 %v2861, %v2945
  %v2964 = vadd.bf16 %v2862, %v2938
  %v2965 = vadd.bf16 %v2863, %v2945
  %v2966 = vadd.bf16 %v2864, %v2938
  %v2967 = vadd.bf16 %v2865, %v2945
  %v2968 = vadd.bf16 %v2866, %v2938
  %v2969 = vadd.bf16 %v2867, %v2945
  %v2970 = vadd.bf16 %v2868, %v2938
  %v2971 = vadd.bf16 %v2869, %v2945
  %v2972 = vadd.bf16 %v2870, %v2938
  %v2973 = vadd.bf16 %v2871, %v2945
  %v2974 = vadd.bf16 %v2872, %v2938
  %v2975 = vadd.bf16 %v2873, %v2945
  %v2976 = vadd.bf16 %v2874, %v2938
  %v2977 = vadd.bf16 %v2875, %v2945
  %v2978 = vadd.bf16 %v2876, %v2938
  %v2979 = vadd.bf16 %v2877, %v2945
  %v2980 = vadd.bf16 %v2878, %v2938
  %v2981 = vadd.bf16 %v2879, %v2945
  %v2982 = vadd.bf16 %v2880, %v2938
  %v2983 = vadd.bf16 %v2881, %v2945
  %v2984 = vadd.bf16 %v2882, %v2938
  %v2985 = vadd.bf16 %v2883, %v2945
  %v2986 = vadd.bf16 %v2884, %v2938
  %v2987 = vadd.bf16 %v2885, %v2945
  %v2988 = vadd.bf16 %v2886, %v2938
  %v2989 = vadd.bf16 %v2887, %v2945
  %v2990 = vadd.bf16 %v2888, %v2938
  %v2991 = vadd.bf16 %v2889, %v2945
  %v2992 = vadd.bf16 %v2890, %v2938
  %v2993 = vadd.bf16 %v2891, %v2945
  %v2994 = vadd.bf16 %v2892, %v2938
  %v2995 = vadd.bf16 %v2893, %v2945
  %v2996 = vadd.bf16 %v2894, %v2938
  %v2997 = vadd.bf16 %v2895, %v2945
  %v2998 = vadd.bf16 %v2896, %v2938
  %v2999 = vadd.bf16 %v2897, %v2945
  %v3000 = vadd.bf16 %v2898, %v2938
  %v3001 = vadd.bf16 %v2899, %v2945
  %v3002 = vadd.bf16 %v2900, %v2938
  %v3003 = vadd.bf16 %v2901, %v2945
  %v3004 = vadd.bf16 %v2902, %v2938
  %v3005 = vadd.bf16 %v2903, %v2945
  %v3006 = vadd.bf16 %v2904, %v2938
  %v3007 = vadd.bf16 %v2905, %v2945
  %v3008 = vadd.bf16 %v2906, %v2938
  %v3009 = vadd.bf16 %v2907, %v2945
  %v3010 = vmul.bf16 %v2946, 1045249613
  %v3011 = vmul.bf16 %v2947, 1045249613
  %v3012 = vmul.bf16 %v2948, 1045249613
  %v3013 = vmul.bf16 %v2949, 1045249613
  %v3014 = vmul.bf16 %v2950, 1045249613
  %v3015 = vmul.bf16 %v2951, 1045249613
  %v3016 = vmul.bf16 %v2952, 1045249613
  %v3017 = vmul.bf16 %v2953, 1045249613
  %v3018 = vmul.bf16 %v2954, 1045249613
  %v3019 = vmul.bf16 %v2955, 1045249613
  %v3020 = vmul.bf16 %v2956, 1045249613
  %v3021 = vmul.bf16 %v2957, 1045249613
  %v3022 = vmul.bf16 %v2958, 1045249613
  %v3023 = vmul.bf16 %v2959, 1045249613
  %v3024 = vmul.bf16 %v2960, 1045249613
  %v3025 = vmul.bf16 %v2961, 1045249613
  %v3026 = vmul.bf16 %v2962, 1045249613
  %v3027 = vmul.bf16 %v2963, 1045249613
  %v3028 = vmul.bf16 %v2964, 1045249613
  %v3029 = vmul.bf16 %v2965, 1045249613
  %v3030 = vmul.bf16 %v2966, 1045249613
  %v3031 = vmul.bf16 %v2967, 1045249613
  %v3032 = vmul.bf16 %v2968, 1045249613
  %v3033 = vmul.bf16 %v2969, 1045249613
  %v3034 = vmul.bf16 %v2970, 1045249613
  %v3035 = vmul.bf16 %v2971, 1045249613
  %v3036 = vmul.bf16 %v2972, 1045249613
  %v3037 = vmul.bf16 %v2973, 1045249613
  %v3038 = vmul.bf16 %v2974, 1045249613
  %v3039 = vmul.bf16 %v2975, 1045249613
  %v3040 = vmul.bf16 %v2976, 1045249613
  %v3041 = vmul.bf16 %v2977, 1045249613
  %v3042 = vmul.bf16 %v2978, 1045249613
  %v3043 = vmul.bf16 %v2979, 1045249613
  %v3044 = vmul.bf16 %v2980, 1045249613
  %v3045 = vmul.bf16 %v2981, 1045249613
  %v3046 = vmul.bf16 %v2982, 1045249613
  %v3047 = vmul.bf16 %v2983, 1045249613
  %v3048 = vmul.bf16 %v2984, 1045249613
  %v3049 = vmul.bf16 %v2985, 1045249613
  %v3050 = vmul.bf16 %v2986, 1045249613
  %v3051 = vmul.bf16 %v2987, 1045249613
  %v3052 = vmul.bf16 %v2988, 1045249613
  %v3053 = vmul.bf16 %v2989, 1045249613
  %v3054 = vmul.bf16 %v2990, 1045249613
  %v3055 = vmul.bf16 %v2991, 1045249613
  %v3056 = vmul.bf16 %v2992, 1045249613
  %v3057 = vmul.bf16 %v2993, 1045249613
  %v3058 = vmul.bf16 %v2994, 1045249613
  %v3059 = vmul.bf16 %v2995, 1045249613
  %v3060 = vmul.bf16 %v2996, 1045249613
  %v3061 = vmul.bf16 %v2997, 1045249613
  %v3062 = vmul.bf16 %v2998, 1045249613
  %v3063 = vmul.bf16 %v2999, 1045249613
  %v3064 = vmul.bf16 %v3000, 1045249613
  %v3065 = vmul.bf16 %v3001, 1045249613
  %v3066 = vmul.bf16 %v3002, 1045249613
  %v3067 = vmul.bf16 %v3003, 1045249613
  %v3068 = vmul.bf16 %v3004, 1045249613
  %v3069 = vmul.bf16 %v3005, 1045249613
  %v3070 = vmul.bf16 %v3006, 1045249613
  %v3071 = vmul.bf16 %v3007, 1045249613
  %v3072 = vmul.bf16 %v3008, 1045249613
  %v3073 = vmul.bf16 %v3009, 1045249613
  %v3074 = vmax.bf16 %v2946, %v3010
  %v3075 = vmax.bf16 %v2947, %v3011
  %v3076 = vmax.bf16 %v2948, %v3012
  %v3077 = vmax.bf16 %v2949, %v3013
  %v3078 = vmax.bf16 %v2950, %v3014
  %v3079 = vmax.bf16 %v2951, %v3015
  %v3080 = vmax.bf16 %v2952, %v3016
  %v3081 = vmax.bf16 %v2953, %v3017
  %v3082 = vmax.bf16 %v2954, %v3018
  %v3083 = vmax.bf16 %v2955, %v3019
  %v3084 = vmax.bf16 %v2956, %v3020
  %v3085 = vmax.bf16 %v2957, %v3021
  %v3086 = vmax.bf16 %v2958, %v3022
  %v3087 = vmax.bf16 %v2959, %v3023
  %v3088 = vmax.bf16 %v2960, %v3024
  %v3089 = vmax.bf16 %v2961, %v3025
  %v3090 = vmax.bf16 %v2962, %v3026
  %v3091 = vmax.bf16 %v2963, %v3027
  %v3092 = vmax.bf16 %v2964, %v3028
  %v3093 = vmax.bf16 %v2965, %v3029
  %v3094 = vmax.bf16 %v2966, %v3030
  %v3095 = vmax.bf16 %v2967, %v3031
  %v3096 = vmax.bf16 %v2968, %v3032
  %v3097 = vmax.bf16 %v2969, %v3033
  %v3098 = vmax.bf16 %v2970, %v3034
  %v3099 = vmax.bf16 %v2971, %v3035
  %v3100 = vmax.bf16 %v2972, %v3036
  %v3101 = vmax.bf16 %v2973, %v3037
  %v3102 = vmax.bf16 %v2974, %v3038
  %v3103 = vmax.bf16 %v2975, %v3039
  %v3104 = vmax.bf16 %v2976, %v3040
  %v3105 = vmax.bf16 %v2977, %v3041
  %v3106 = vmax.bf16 %v2978, %v3042
  %v3107 = vmax.bf16 %v2979, %v3043
  %v3108 = vmax.bf16 %v2980, %v3044
  %v3109 = vmax.bf16 %v2981, %v3045
  %v3110 = vmax.bf16 %v2982, %v3046
  %v3111 = vmax.bf16 %v2983, %v3047
  %v3112 = vmax.bf16 %v2984, %v3048
  %v3113 = vmax.bf16 %v2985, %v3049
  %v3114 = vmax.bf16 %v2986, %v3050
  %v3115 = vmax.bf16 %v2987, %v3051
  %v3116 = vmax.bf16 %v2988, %v3052
  %v3117 = vmax.bf16 %v2989, %v3053
  %v3118 = vmax.bf16 %v2990, %v3054
  %v3119 = vmax.bf16 %v2991, %v3055
  %v3120 = vmax.bf16 %v2992, %v3056
  %v3121 = vmax.bf16 %v2993, %v3057
  %v3122 = vmax.bf16 %v2994, %v3058
  %v3123 = vmax.bf16 %v2995, %v3059
  %v3124 = vmax.bf16 %v2996, %v3060
  %v3125 = vmax.bf16 %v2997, %v3061
  %v3126 = vmax.bf16 %v2998, %v3062
  %v3127 = vmax.bf16 %v2999, %v3063
  %v3128 = vmax.bf16 %v3000, %v3064
  %v3129 = vmax.bf16 %v3001, %v3065
  %v3130 = vmax.bf16 %v3002, %v3066
  %v3131 = vmax.bf16 %v3003, %v3067
  %v3132 = vmax.bf16 %v3004, %v3068
  %v3133 = vmax.bf16 %v3005, %v3069
  %v3134 = vmax.bf16 %v3006, %v3070
  %v3135 = vmax.bf16 %v3007, %v3071
  %v3136 = vmax.bf16 %v3008, %v3072
  %v3137 = vmax.bf16 %v3009, %v3073
  %v3138 = vld [vmem:[%s5] sm:$0xff]
  %v3139 = vld [vmem:[%s5 + $0x8] sm:$0xff]
  %v3140 = vld [vmem:[%s5 + $0x10] sm:$0xff]
  %v3141 = vld [vmem:[%s5 + $0x18] sm:$0xff]
  %v3142 = vld [vmem:[%s5 + $0x20] sm:$0xff]
  %v3143 = vld [vmem:[%s5 + $0x28] sm:$0xff]
  %v3144 = vld [vmem:[%s5 + $0x30] sm:$0xff]
  %v3145 = vld [vmem:[%s5 + $0x38] sm:$0xff]
  %v3146 = vld [vmem:[%s5 + $0x40] sm:$0xff]
  %v3147 = vld [vmem:[%s5 + $0x48] sm:$0xff]
  %v3148 = vld [vmem:[%s5 + $0x50] sm:$0xff]
  %v3149 = vld [vmem:[%s5 + $0x58] sm:$0xff]
  %v3150 = vld [vmem:[%s5 + $0x60] sm:$0xff]
  %v3151 = vld [vmem:[%s5 + $0x68] sm:$0xff]
  %v3152 = vld [vmem:[%s5 + $0x70] sm:$0xff]
  %v3153 = vld [vmem:[%s5 + $0x78] sm:$0xff]
  %v3154 = vld [vmem:[%s5 + $0x80] sm:$0xff]
  %v3155 = vld [vmem:[%s5 + $0x88] sm:$0xff]
  %v3156 = vld [vmem:[%s5 + $0x90] sm:$0xff]
  %v3157 = vld [vmem:[%s5 + $0x98] sm:$0xff]
  %v3158 = vld [vmem:[%s5 + $0xa0] sm:$0xff]
  %v3159 = vld [vmem:[%s5 + $0xa8] sm:$0xff]
  %v3160 = vld [vmem:[%s5 + $0xb0] sm:$0xff]
  %v3161 = vld [vmem:[%s5 + $0xb8] sm:$0xff]
  %v3162 = vld [vmem:[%s5 + $0xc0] sm:$0xff]
  %v3163 = vld [vmem:[%s5 + $0xc8] sm:$0xff]
  %v3164 = vld [vmem:[%s5 + $0xd0] sm:$0xff]
  %v3165 = vld [vmem:[%s5 + $0xd8] sm:$0xff]
  %v3166 = vld [vmem:[%s5 + $0xe0] sm:$0xff]
  %v3167 = vld [vmem:[%s5 + $0xe8] sm:$0xff]
  %v3168 = vld [vmem:[%s5 + $0xf0] sm:$0xff]
  %v3169 = vld [vmem:[%s5 + $0xf8] sm:$0xff]
  %v3170 = vld [vmem:[%s5 + $0x100] sm:$0xff]
  %v3171 = vld [vmem:[%s5 + $0x108] sm:$0xff]
  %v3172 = vld [vmem:[%s5 + $0x110] sm:$0xff]
  %v3173 = vld [vmem:[%s5 + $0x118] sm:$0xff]
  %v3174 = vld [vmem:[%s5 + $0x120] sm:$0xff]
  %v3175 = vld [vmem:[%s5 + $0x128] sm:$0xff]
  %v3176 = vld [vmem:[%s5 + $0x130] sm:$0xff]
  %v3177 = vld [vmem:[%s5 + $0x138] sm:$0xff]
  %v3178 = vld [vmem:[%s5 + $0x140] sm:$0xff]
  %v3179 = vld [vmem:[%s5 + $0x148] sm:$0xff]
  %v3180 = vld [vmem:[%s5 + $0x150] sm:$0xff]
  %v3181 = vld [vmem:[%s5 + $0x158] sm:$0xff]
  %v3182 = vld [vmem:[%s5 + $0x160] sm:$0xff]
  %v3183 = vld [vmem:[%s5 + $0x168] sm:$0xff]
  %v3184 = vld [vmem:[%s5 + $0x170] sm:$0xff]
  %v3185 = vld [vmem:[%s5 + $0x178] sm:$0xff]
  %v3186 = vld [vmem:[%s5 + $0x180] sm:$0xff]
  %v3187 = vld [vmem:[%s5 + $0x188] sm:$0xff]
  %v3188 = vld [vmem:[%s5 + $0x190] sm:$0xff]
  %v3189 = vld [vmem:[%s5 + $0x198] sm:$0xff]
  %v3190 = vld [vmem:[%s5 + $0x1a0] sm:$0xff]
  %v3191 = vld [vmem:[%s5 + $0x1a8] sm:$0xff]
  %v3192 = vld [vmem:[%s5 + $0x1b0] sm:$0xff]
  %v3193 = vld [vmem:[%s5 + $0x1b8] sm:$0xff]
  %v3194 = vld [vmem:[%s5 + $0x1c0] sm:$0xff]
  %v3195 = vld [vmem:[%s5 + $0x1c8] sm:$0xff]
  %v3196 = vld [vmem:[%s5 + $0x1d0] sm:$0xff]
  %v3197 = vld [vmem:[%s5 + $0x1d8] sm:$0xff]
  %v3198 = vld [vmem:[%s5 + $0x1e0] sm:$0xff]
  %v3199 = vld [vmem:[%s5 + $0x1e8] sm:$0xff]
  %v3200 = vld [vmem:[%s5 + $0x1f0] sm:$0xff]
  %v3201 = vld [vmem:[%s5 + $0x1f8] sm:$0xff]
  %v3266 = vunpack.c.l.b16 %v3138
  %v3267 = vunpack.c.h.b16 %v3138
  %v3268 = vunpack.c.l.b16 %v3139
  %v3269 = vunpack.c.h.b16 %v3139
  %v3270 = vunpack.c.l.b16 %v3140
  %v3271 = vunpack.c.h.b16 %v3140
  %v3272 = vunpack.c.l.b16 %v3141
  %v3273 = vunpack.c.h.b16 %v3141
  %v3274 = vunpack.c.l.b16 %v3142
  %v3275 = vunpack.c.h.b16 %v3142
  %v3276 = vunpack.c.l.b16 %v3143
  %v3277 = vunpack.c.h.b16 %v3143
  %v3278 = vunpack.c.l.b16 %v3144
  %v3279 = vunpack.c.h.b16 %v3144
  %v3280 = vunpack.c.l.b16 %v3145
  %v3281 = vunpack.c.h.b16 %v3145
  %v3282 = vunpack.c.l.b16 %v3146
  %v3283 = vunpack.c.h.b16 %v3146
  %v3284 = vunpack.c.l.b16 %v3147
  %v3285 = vunpack.c.h.b16 %v3147
  %v3286 = vunpack.c.l.b16 %v3148
  %v3287 = vunpack.c.h.b16 %v3148
  %v3288 = vunpack.c.l.b16 %v3149
  %v3289 = vunpack.c.h.b16 %v3149
  %v3290 = vunpack.c.l.b16 %v3150
  %v3291 = vunpack.c.h.b16 %v3150
  %v3292 = vunpack.c.l.b16 %v3151
  %v3293 = vunpack.c.h.b16 %v3151
  %v3294 = vunpack.c.l.b16 %v3152
  %v3295 = vunpack.c.h.b16 %v3152
  %v3296 = vunpack.c.l.b16 %v3153
  %v3297 = vunpack.c.h.b16 %v3153
  %v3298 = vunpack.c.l.b16 %v3154
  %v3299 = vunpack.c.h.b16 %v3154
  %v3300 = vunpack.c.l.b16 %v3155
  %v3301 = vunpack.c.h.b16 %v3155
  %v3302 = vunpack.c.l.b16 %v3156
  %v3303 = vunpack.c.h.b16 %v3156
  %v3304 = vunpack.c.l.b16 %v3157
  %v3305 = vunpack.c.h.b16 %v3157
  %v3306 = vunpack.c.l.b16 %v3158
  %v3307 = vunpack.c.h.b16 %v3158
  %v3308 = vunpack.c.l.b16 %v3159
  %v3309 = vunpack.c.h.b16 %v3159
  %v3310 = vunpack.c.l.b16 %v3160
  %v3311 = vunpack.c.h.b16 %v3160
  %v3312 = vunpack.c.l.b16 %v3161
  %v3313 = vunpack.c.h.b16 %v3161
  %v3314 = vunpack.c.l.b16 %v3162
  %v3315 = vunpack.c.h.b16 %v3162
  %v3316 = vunpack.c.l.b16 %v3163
  %v3317 = vunpack.c.h.b16 %v3163
  %v3318 = vunpack.c.l.b16 %v3164
  %v3319 = vunpack.c.h.b16 %v3164
  %v3320 = vunpack.c.l.b16 %v3165
  %v3321 = vunpack.c.h.b16 %v3165
  %v3322 = vunpack.c.l.b16 %v3166
  %v3323 = vunpack.c.h.b16 %v3166
  %v3324 = vunpack.c.l.b16 %v3167
  %v3325 = vunpack.c.h.b16 %v3167
  %v3326 = vunpack.c.l.b16 %v3168
  %v3327 = vunpack.c.h.b16 %v3168
  %v3328 = vunpack.c.l.b16 %v3169
  %v3329 = vunpack.c.h.b16 %v3169
  %v3330 = vunpack.c.l.b16 %v3170
  %v3331 = vunpack.c.h.b16 %v3170
  %v3332 = vunpack.c.l.b16 %v3171
  %v3333 = vunpack.c.h.b16 %v3171
  %v3334 = vunpack.c.l.b16 %v3172
  %v3335 = vunpack.c.h.b16 %v3172
  %v3336 = vunpack.c.l.b16 %v3173
  %v3337 = vunpack.c.h.b16 %v3173
  %v3338 = vunpack.c.l.b16 %v3174
  %v3339 = vunpack.c.h.b16 %v3174
  %v3340 = vunpack.c.l.b16 %v3175
  %v3341 = vunpack.c.h.b16 %v3175
  %v3342 = vunpack.c.l.b16 %v3176
  %v3343 = vunpack.c.h.b16 %v3176
  %v3344 = vunpack.c.l.b16 %v3177
  %v3345 = vunpack.c.h.b16 %v3177
  %v3346 = vunpack.c.l.b16 %v3178
  %v3347 = vunpack.c.h.b16 %v3178
  %v3348 = vunpack.c.l.b16 %v3179
  %v3349 = vunpack.c.h.b16 %v3179
  %v3350 = vunpack.c.l.b16 %v3180
  %v3351 = vunpack.c.h.b16 %v3180
  %v3352 = vunpack.c.l.b16 %v3181
  %v3353 = vunpack.c.h.b16 %v3181
  %v3354 = vunpack.c.l.b16 %v3182
  %v3355 = vunpack.c.h.b16 %v3182
  %v3356 = vunpack.c.l.b16 %v3183
  %v3357 = vunpack.c.h.b16 %v3183
  %v3358 = vunpack.c.l.b16 %v3184
  %v3359 = vunpack.c.h.b16 %v3184
  %v3360 = vunpack.c.l.b16 %v3185
  %v3361 = vunpack.c.h.b16 %v3185
  %v3362 = vunpack.c.l.b16 %v3186
  %v3363 = vunpack.c.h.b16 %v3186
  %v3364 = vunpack.c.l.b16 %v3187
  %v3365 = vunpack.c.h.b16 %v3187
  %v3366 = vunpack.c.l.b16 %v3188
  %v3367 = vunpack.c.h.b16 %v3188
  %v3368 = vunpack.c.l.b16 %v3189
  %v3369 = vunpack.c.h.b16 %v3189
  %v3370 = vunpack.c.l.b16 %v3190
  %v3371 = vunpack.c.h.b16 %v3190
  %v3372 = vunpack.c.l.b16 %v3191
  %v3373 = vunpack.c.h.b16 %v3191
  %v3374 = vunpack.c.l.b16 %v3192
  %v3375 = vunpack.c.h.b16 %v3192
  %v3376 = vunpack.c.l.b16 %v3193
  %v3377 = vunpack.c.h.b16 %v3193
  %v3378 = vunpack.c.l.b16 %v3194
  %v3379 = vunpack.c.h.b16 %v3194
  %v3380 = vunpack.c.l.b16 %v3195
  %v3381 = vunpack.c.h.b16 %v3195
  %v3382 = vunpack.c.l.b16 %v3196
  %v3383 = vunpack.c.h.b16 %v3196
  %v3384 = vunpack.c.l.b16 %v3197
  %v3385 = vunpack.c.h.b16 %v3197
  %v3386 = vunpack.c.l.b16 %v3198
  %v3387 = vunpack.c.h.b16 %v3198
  %v3388 = vunpack.c.l.b16 %v3199
  %v3389 = vunpack.c.h.b16 %v3199
  %v3390 = vunpack.c.l.b16 %v3200
  %v3391 = vunpack.c.h.b16 %v3200
  %v3392 = vunpack.c.l.b16 %v3201
  %v3393 = vunpack.c.h.b16 %v3201
  %v3394 = vpack.c.b16 %v3270, %v3266
  %v3395 = vpack.c.b16 %v3271, %v3267
  %v3396 = vpack.c.b16 %v3272, %v3268
  %v3397 = vpack.c.b16 %v3273, %v3269
  %v3398 = vpack.c.b16 %v3278, %v3274
  %v3399 = vpack.c.b16 %v3279, %v3275
  %v3400 = vpack.c.b16 %v3280, %v3276
  %v3401 = vpack.c.b16 %v3281, %v3277
  %v3402 = vpack.c.b16 %v3286, %v3282
  %v3403 = vpack.c.b16 %v3287, %v3283
  %v3404 = vpack.c.b16 %v3288, %v3284
  %v3405 = vpack.c.b16 %v3289, %v3285
  %v3406 = vpack.c.b16 %v3294, %v3290
  %v3407 = vpack.c.b16 %v3295, %v3291
  %v3408 = vpack.c.b16 %v3296, %v3292
  %v3409 = vpack.c.b16 %v3297, %v3293
  %v3410 = vpack.c.b16 %v3302, %v3298
  %v3411 = vpack.c.b16 %v3303, %v3299
  %v3412 = vpack.c.b16 %v3304, %v3300
  %v3413 = vpack.c.b16 %v3305, %v3301
  %v3414 = vpack.c.b16 %v3310, %v3306
  %v3415 = vpack.c.b16 %v3311, %v3307
  %v3416 = vpack.c.b16 %v3312, %v3308
  %v3417 = vpack.c.b16 %v3313, %v3309
  %v3418 = vpack.c.b16 %v3318, %v3314
  %v3419 = vpack.c.b16 %v3319, %v3315
  %v3420 = vpack.c.b16 %v3320, %v3316
  %v3421 = vpack.c.b16 %v3321, %v3317
  %v3422 = vpack.c.b16 %v3326, %v3322
  %v3423 = vpack.c.b16 %v3327, %v3323
  %v3424 = vpack.c.b16 %v3328, %v3324
  %v3425 = vpack.c.b16 %v3329, %v3325
  %v3426 = vpack.c.b16 %v3334, %v3330
  %v3427 = vpack.c.b16 %v3335, %v3331
  %v3428 = vpack.c.b16 %v3336, %v3332
  %v3429 = vpack.c.b16 %v3337, %v3333
  %v3430 = vpack.c.b16 %v3342, %v3338
  %v3431 = vpack.c.b16 %v3343, %v3339
  %v3432 = vpack.c.b16 %v3344, %v3340
  %v3433 = vpack.c.b16 %v3345, %v3341
  %v3434 = vpack.c.b16 %v3350, %v3346
  %v3435 = vpack.c.b16 %v3351, %v3347
  %v3436 = vpack.c.b16 %v3352, %v3348
  %v3437 = vpack.c.b16 %v3353, %v3349
  %v3438 = vpack.c.b16 %v3358, %v3354
  %v3439 = vpack.c.b16 %v3359, %v3355
  %v3440 = vpack.c.b16 %v3360, %v3356
  %v3441 = vpack.c.b16 %v3361, %v3357
  %v3442 = vpack.c.b16 %v3366, %v3362
  %v3443 = vpack.c.b16 %v3367, %v3363
  %v3444 = vpack.c.b16 %v3368, %v3364
  %v3445 = vpack.c.b16 %v3369, %v3365
  %v3446 = vpack.c.b16 %v3374, %v3370
  %v3447 = vpack.c.b16 %v3375, %v3371
  %v3448 = vpack.c.b16 %v3376, %v3372
  %v3449 = vpack.c.b16 %v3377, %v3373
  %v3450 = vpack.c.b16 %v3382, %v3378
  %v3451 = vpack.c.b16 %v3383, %v3379
  %v3452 = vpack.c.b16 %v3384, %v3380
  %v3453 = vpack.c.b16 %v3385, %v3381
  %v3454 = vpack.c.b16 %v3390, %v3386
  %v3455 = vpack.c.b16 %v3391, %v3387
  %v3456 = vpack.c.b16 %v3392, %v3388
  %v3457 = vpack.c.b16 %v3393, %v3389
  %3522 = vmatprep.subr.bf16.mxu0 %v3395
  %3523 = vmatpush1.bf16.msra.mxu0 %v3394
  %3524 = vmatprep.subr.bf16.mxu0 %v3399
  %3525 = vmatpush1.bf16.msra.mxu0 %v3398
  %3526 = vmatprep.subr.bf16.mxu0 %v3403
  %3527 = vmatpush1.bf16.msra.mxu0 %v3402
  %3528 = vmatprep.subr.bf16.mxu0 %v3407
  %3529 = vmatpush1.bf16.msra.mxu0 %v3406
  %3530 = vmatprep.subr.bf16.mxu0 %v3411
  %3531 = vmatpush1.bf16.msra.mxu0 %v3410
  %3532 = vmatprep.subr.bf16.mxu0 %v3415
  %3533 = vmatpush1.bf16.msra.mxu0 %v3414
  %3534 = vmatprep.subr.bf16.mxu0 %v3419
  %3535 = vmatpush1.bf16.msra.mxu0 %v3418
  %3536 = vmatprep.subr.bf16.mxu0 %v3423
  %3537 = vmatpush1.bf16.msra.mxu0 %v3422
  %3538 = vmatprep.subr.bf16.mxu0 %v3427
  %3539 = vmatpush1.bf16.msra.mxu0 %v3426
  %3540 = vmatprep.subr.bf16.mxu0 %v3431
  %3541 = vmatpush1.bf16.msra.mxu0 %v3430
  %3542 = vmatprep.subr.bf16.mxu0 %v3435
  %3543 = vmatpush1.bf16.msra.mxu0 %v3434
  %3544 = vmatprep.subr.bf16.mxu0 %v3439
  %3545 = vmatpush1.bf16.msra.mxu0 %v3438
  %3546 = vmatprep.subr.bf16.mxu0 %v3443
  %3547 = vmatpush1.bf16.msra.mxu0 %v3442
  %3548 = vmatprep.subr.bf16.mxu0 %v3447
  %3549 = vmatpush1.bf16.msra.mxu0 %v3446
  %3550 = vmatprep.subr.bf16.mxu0 %v3451
  %3551 = vmatpush1.bf16.msra.mxu0 %v3450
  %3552 = vmatprep.subr.bf16.mxu0 %v3455
  %3553 = vmatpush1.bf16.msra.mxu0 %v3454
  %3554 = vmatprep.mubr.bf16.mxu0 %v3075
  %3555 = vmatmul.mubr.bf16.gmra.mrb[0].mxu0 %v3074
  %v3556 = vpop.f32.mrb[0].mxu0
  %v3557 = vadd.f32 0.0, %v3556
  %v3558 = vpop.f32.mrb[0].mxu0
  %v3559 = vadd.f32 0.0, %v3558
  %v3560 = vpop.f32.mrb[0].mxu0
  %v3561 = vadd.f32 0.0, %v3560
  %v3562 = vpop.f32.mrb[0].mxu0
  %v3563 = vadd.f32 0.0, %v3562
  %3564 = vmatprep.mubr.bf16.mxu0 %v3077
  %3565 = vmatmul.mubr.bf16.gmra.mrb[0].mxu0 %v3076
  %v3566 = vpop.f32.mrb[0].mxu0
  %v3567 = vadd.f32 0.0, %v3566
  %v3568 = vpop.f32.mrb[0].mxu0
  %v3569 = vadd.f32 0.0, %v3568
  %v3570 = vpop.f32.mrb[0].mxu0
  %v3571 = vadd.f32 0.0, %v3570
  %v3572 = vpop.f32.mrb[0].mxu0
  %v3573 = vadd.f32 0.0, %v3572
  %3574 = vmatprep.mubr.bf16.mxu0 %v3079
  %3575 = vmatmul.mubr.bf16.gmra.mrb[0].mxu0 %v3078
  %v3576 = vpop.f32.mrb[0].mxu0
  %v3577 = vadd.f32 0.0, %v3576
  %v3578 = vpop.f32.mrb[0].mxu0
  %v3579 = vadd.f32 0.0, %v3578
  %v3580 = vpop.f32.mrb[0].mxu0
  %v3581 = vadd.f32 0.0, %v3580
  %v3582 = vpop.f32.mrb[0].mxu0
  %v3583 = vadd.f32 0.0, %v3582
  %3584 = vmatprep.mubr.bf16.mxu0 %v3081
  %3585 = vmatmul.mubr.bf16.gmra.mrb[0].mxu0 %v3080
  %v3586 = vpop.f32.mrb[0].mxu0
  %v3587 = vadd.f32 0.0, %v3586
  %v3588 = vpop.f32.mrb[0].mxu0
  %v3589 = vadd.f32 0.0, %v3588
  %v3590 = vpop.f32.mrb[0].mxu0
  %v3591 = vadd.f32 0.0, %v3590
  %v3592 = vpop.f32.mrb[0].mxu0
  %v3593 = vadd.f32 0.0, %v3592
  %3594 = vmatprep.mubr.bf16.mxu0 %v3083
  %3595 = vmatmul.mubr.bf16.gmra.mrb[0].mxu0 %v3082
  %v3596 = vpop.f32.mrb[0].mxu0
  %v3597 = vadd.f32 0.0, %v3596
  %v3598 = vpop.f32.mrb[0].mxu0
  %v3599 = vadd.f32 0.0, %v3598
  %v3600 = vpop.f32.mrb[0].mxu0
  %v3601 = vadd.f32 0.0, %v3600
  %v3602 = vpop.f32.mrb[0].mxu0
  %v3603 = vadd.f32 0.0, %v3602
  %3604 = vmatprep.mubr.bf16.mxu0 %v3085
  %3605 = vmatmul.mubr.bf16.gmra.mrb[0].mxu0 %v3084
  %v3606 = vpop.f32.mrb[0].mxu0
  %v3607 = vadd.f32 0.0, %v3606
  %v3608 = vpop.f32.mrb[0].mxu0
  %v3609 = vadd.f32 0.0, %v3608
  %v3610 = vpop.f32.mrb[0].mxu0
  %v3611 = vadd.f32 0.0, %v3610
  %v3612 = vpop.f32.mrb[0].mxu0
  %v3613 = vadd.f32 0.0, %v3612
  %3614 = vmatprep.mubr.bf16.mxu0 %v3087
  %3615 = vmatmul.mubr.bf16.gmra.mrb[0].mxu0 %v3086
  %v3616 = vpop.f32.mrb[0].mxu0
  %v3617 = vadd.f32 0.0, %v3616
  %v3618 = vpop.f32.mrb[0].mxu0
  %v3619 = vadd.f32 0.0, %v3618
  %v3620 = vpop.f32.mrb[0].mxu0
  %v3621 = vadd.f32 0.0, %v3620
  %v3622 = vpop.f32.mrb[0].mxu0
  %v3623 = vadd.f32 0.0, %v3622
  %3624 = vmatprep.mubr.bf16.mxu0 %v3089
  %3625 = vmatmul.mubr.bf16.gmra.mrb[0].mxu0 %v3088
  %v3626 = vpop.f32.mrb[0].mxu0
  %v3627 = vadd.f32 0.0, %v3626
  %v3628 = vpop.f32.mrb[0].mxu0
  %v3629 = vadd.f32 0.0, %v3628
  %v3630 = vpop.f32.mrb[0].mxu0
  %v3631 = vadd.f32 0.0, %v3630
  %v3632 = vpop.f32.mrb[0].mxu0
  %v3633 = vadd.f32 0.0, %v3632
  %3634 = vmatprep.mubr.bf16.mxu0 %v3091
  %3635 = vmatmul.mubr.bf16.gmra.mrb[0].mxu0 %v3090
  %v3636 = vpop.f32.mrb[0].mxu0
  %v3637 = vadd.f32 0.0, %v3636
  %v3638 = vpop.f32.mrb[0].mxu0
  %v3639 = vadd.f32 0.0, %v3638
  %v3640 = vpop.f32.mrb[0].mxu0
  %v3641 = vadd.f32 0.0, %v3640
  %v3642 = vpop.f32.mrb[0].mxu0
  %v3643 = vadd.f32 0.0, %v3642
  %3644 = vmatprep.mubr.bf16.mxu0 %v3093
  %3645 = vmatmul.mubr.bf16.gmra.mrb[0].mxu0 %v3092
  %v3646 = vpop.f32.mrb[0].mxu0
  %v3647 = vadd.f32 0.0, %v3646
  %v3648 = vpop.f32.mrb[0].mxu0
  %v3649 = vadd.f32 0.0, %v3648
  %v3650 = vpop.f32.mrb[0].mxu0
  %v3651 = vadd.f32 0.0, %v3650
  %v3652 = vpop.f32.mrb[0].mxu0
  %v3653 = vadd.f32 0.0, %v3652
  %3654 = vmatprep.mubr.bf16.mxu0 %v3095
  %3655 = vmatmul.mubr.bf16.gmra.mrb[0].mxu0 %v3094
  %v3656 = vpop.f32.mrb[0].mxu0
  %v3657 = vadd.f32 0.0, %v3656
  %v3658 = vpop.f32.mrb[0].mxu0
  %v3659 = vadd.f32 0.0, %v3658
  %v3660 = vpop.f32.mrb[0].mxu0
  %v3661 = vadd.f32 0.0, %v3660
  %v3662 = vpop.f32.mrb[0].mxu0
  %v3663 = vadd.f32 0.0, %v3662
  %3664 = vmatprep.mubr.bf16.mxu0 %v3097
  %3665 = vmatmul.mubr.bf16.gmra.mrb[0].mxu0 %v3096
  %v3666 = vpop.f32.mrb[0].mxu0
  %v3667 = vadd.f32 0.0, %v3666
  %v3668 = vpop.f32.mrb[0].mxu0
  %v3669 = vadd.f32 0.0, %v3668
  %v3670 = vpop.f32.mrb[0].mxu0
  %v3671 = vadd.f32 0.0, %v3670
  %v3672 = vpop.f32.mrb[0].mxu0
  %v3673 = vadd.f32 0.0, %v3672
  %3674 = vmatprep.mubr.bf16.mxu0 %v3099
  %3675 = vmatmul.mubr.bf16.gmra.mrb[0].mxu0 %v3098
  %v3676 = vpop.f32.mrb[0].mxu0
  %v3677 = vadd.f32 0.0, %v3676
  %v3678 = vpop.f32.mrb[0].mxu0
  %v3679 = vadd.f32 0.0, %v3678
  %v3680 = vpop.f32.mrb[0].mxu0
  %v3681 = vadd.f32 0.0, %v3680
  %v3682 = vpop.f32.mrb[0].mxu0
  %v3683 = vadd.f32 0.0, %v3682
  %3684 = vmatprep.mubr.bf16.mxu0 %v3101
  %3685 = vmatmul.mubr.bf16.gmra.mrb[0].mxu0 %v3100
  %v3686 = vpop.f32.mrb[0].mxu0
  %v3687 = vadd.f32 0.0, %v3686
  %v3688 = vpop.f32.mrb[0].mxu0
  %v3689 = vadd.f32 0.0, %v3688
  %v3690 = vpop.f32.mrb[0].mxu0
  %v3691 = vadd.f32 0.0, %v3690
  %v3692 = vpop.f32.mrb[0].mxu0
  %v3693 = vadd.f32 0.0, %v3692
  %3694 = vmatprep.mubr.bf16.mxu0 %v3103
  %3695 = vmatmul.mubr.bf16.gmra.mrb[0].mxu0 %v3102
  %v3696 = vpop.f32.mrb[0].mxu0
  %v3697 = vadd.f32 0.0, %v3696
  %v3698 = vpop.f32.mrb[0].mxu0
  %v3699 = vadd.f32 0.0, %v3698
  %v3700 = vpop.f32.mrb[0].mxu0
  %v3701 = vadd.f32 0.0, %v3700
  %v3702 = vpop.f32.mrb[0].mxu0
  %v3703 = vadd.f32 0.0, %v3702
  %3704 = vmatprep.mubr.bf16.mxu0 %v3105
  %3705 = vmatmul.mubr.bf16.gmra.mrb[0].mxu0 %v3104
  %v3706 = vpop.f32.mrb[0].mxu0
  %v3707 = vadd.f32 0.0, %v3706
  %v3708 = vpop.f32.mrb[0].mxu0
  %v3709 = vadd.f32 0.0, %v3708
  %v3710 = vpop.f32.mrb[0].mxu0
  %v3711 = vadd.f32 0.0, %v3710
  %v3712 = vpop.f32.mrb[0].mxu0
  %v3713 = vadd.f32 0.0, %v3712
  %3714 = vmatprep.mubr.bf16.mxu0 %v3107
  %3715 = vmatmul.mubr.bf16.gmra.mrb[0].mxu0 %v3106
  %v3716 = vpop.f32.mrb[0].mxu0
  %v3717 = vadd.f32 0.0, %v3716
  %v3718 = vpop.f32.mrb[0].mxu0
  %v3719 = vadd.f32 0.0, %v3718
  %v3720 = vpop.f32.mrb[0].mxu0
  %v3721 = vadd.f32 0.0, %v3720
  %v3722 = vpop.f32.mrb[0].mxu0
  %v3723 = vadd.f32 0.0, %v3722
  %3724 = vmatprep.mubr.bf16.mxu0 %v3109
  %3725 = vmatmul.mubr.bf16.gmra.mrb[0].mxu0 %v3108
  %v3726 = vpop.f32.mrb[0].mxu0
  %v3727 = vadd.f32 0.0, %v3726
  %v3728 = vpop.f32.mrb[0].mxu0
  %v3729 = vadd.f32 0.0, %v3728
  %v3730 = vpop.f32.mrb[0].mxu0
  %v3731 = vadd.f32 0.0, %v3730
  %v3732 = vpop.f32.mrb[0].mxu0
  %v3733 = vadd.f32 0.0, %v3732
  %3734 = vmatprep.mubr.bf16.mxu0 %v3111
  %3735 = vmatmul.mubr.bf16.gmra.mrb[0].mxu0 %v3110
  %v3736 = vpop.f32.mrb[0].mxu0
  %v3737 = vadd.f32 0.0, %v3736
  %v3738 = vpop.f32.mrb[0].mxu0
  %v3739 = vadd.f32 0.0, %v3738
  %v3740 = vpop.f32.mrb[0].mxu0
  %v3741 = vadd.f32 0.0, %v3740
  %v3742 = vpop.f32.mrb[0].mxu0
  %v3743 = vadd.f32 0.0, %v3742
  %3744 = vmatprep.mubr.bf16.mxu0 %v3113
  %3745 = vmatmul.mubr.bf16.gmra.mrb[0].mxu0 %v3112
  %v3746 = vpop.f32.mrb[0].mxu0
  %v3747 = vadd.f32 0.0, %v3746
  %v3748 = vpop.f32.mrb[0].mxu0
  %v3749 = vadd.f32 0.0, %v3748
  %v3750 = vpop.f32.mrb[0].mxu0
  %v3751 = vadd.f32 0.0, %v3750
  %v3752 = vpop.f32.mrb[0].mxu0
  %v3753 = vadd.f32 0.0, %v3752
  %3754 = vmatprep.mubr.bf16.mxu0 %v3115
  %3755 = vmatmul.mubr.bf16.gmra.mrb[0].mxu0 %v3114
  %v3756 = vpop.f32.mrb[0].mxu0
  %v3757 = vadd.f32 0.0, %v3756
  %v3758 = vpop.f32.mrb[0].mxu0
  %v3759 = vadd.f32 0.0, %v3758
  %v3760 = vpop.f32.mrb[0].mxu0
  %v3761 = vadd.f32 0.0, %v3760
  %v3762 = vpop.f32.mrb[0].mxu0
  %v3763 = vadd.f32 0.0, %v3762
  %3764 = vmatprep.mubr.bf16.mxu0 %v3117
  %3765 = vmatmul.mubr.bf16.gmra.mrb[0].mxu0 %v3116
  %v3766 = vpop.f32.mrb[0].mxu0
  %v3767 = vadd.f32 0.0, %v3766
  %v3768 = vpop.f32.mrb[0].mxu0
  %v3769 = vadd.f32 0.0, %v3768
  %v3770 = vpop.f32.mrb[0].mxu0
  %v3771 = vadd.f32 0.0, %v3770
  %v3772 = vpop.f32.mrb[0].mxu0
  %v3773 = vadd.f32 0.0, %v3772
  %3774 = vmatprep.mubr.bf16.mxu0 %v3119
  %3775 = vmatmul.mubr.bf16.gmra.mrb[0].mxu0 %v3118
  %v3776 = vpop.f32.mrb[0].mxu0
  %v3777 = vadd.f32 0.0, %v3776
  %v3778 = vpop.f32.mrb[0].mxu0
  %v3779 = vadd.f32 0.0, %v3778
  %v3780 = vpop.f32.mrb[0].mxu0
  %v3781 = vadd.f32 0.0, %v3780
  %v3782 = vpop.f32.mrb[0].mxu0
  %v3783 = vadd.f32 0.0, %v3782
  %3784 = vmatprep.mubr.bf16.mxu0 %v3121
  %3785 = vmatmul.mubr.bf16.gmra.mrb[0].mxu0 %v3120
  %v3786 = vpop.f32.mrb[0].mxu0
  %v3787 = vadd.f32 0.0, %v3786
  %v3788 = vpop.f32.mrb[0].mxu0
  %v3789 = vadd.f32 0.0, %v3788
  %v3790 = vpop.f32.mrb[0].mxu0
  %v3791 = vadd.f32 0.0, %v3790
  %v3792 = vpop.f32.mrb[0].mxu0
  %v3793 = vadd.f32 0.0, %v3792
  %3794 = vmatprep.mubr.bf16.mxu0 %v3123
  %3795 = vmatmul.mubr.bf16.gmra.mrb[0].mxu0 %v3122
  %v3796 = vpop.f32.mrb[0].mxu0
  %v3797 = vadd.f32 0.0, %v3796
  %v3798 = vpop.f32.mrb[0].mxu0
  %v3799 = vadd.f32 0.0, %v3798
  %v3800 = vpop.f32.mrb[0].mxu0
  %v3801 = vadd.f32 0.0, %v3800
  %v3802 = vpop.f32.mrb[0].mxu0
  %v3803 = vadd.f32 0.0, %v3802
  %3804 = vmatprep.mubr.bf16.mxu0 %v3125
  %3805 = vmatmul.mubr.bf16.gmra.mrb[0].mxu0 %v3124
  %v3806 = vpop.f32.mrb[0].mxu0
  %v3807 = vadd.f32 0.0, %v3806
  %v3808 = vpop.f32.mrb[0].mxu0
  %v3809 = vadd.f32 0.0, %v3808
  %v3810 = vpop.f32.mrb[0].mxu0
  %v3811 = vadd.f32 0.0, %v3810
  %v3812 = vpop.f32.mrb[0].mxu0
  %v3813 = vadd.f32 0.0, %v3812
  %3814 = vmatprep.mubr.bf16.mxu0 %v3127
  %3815 = vmatmul.mubr.bf16.gmra.mrb[0].mxu0 %v3126
  %v3816 = vpop.f32.mrb[0].mxu0
  %v3817 = vadd.f32 0.0, %v3816
  %v3818 = vpop.f32.mrb[0].mxu0
  %v3819 = vadd.f32 0.0, %v3818
  %v3820 = vpop.f32.mrb[0].mxu0
  %v3821 = vadd.f32 0.0, %v3820
  %v3822 = vpop.f32.mrb[0].mxu0
  %v3823 = vadd.f32 0.0, %v3822
  %3824 = vmatprep.mubr.bf16.mxu0 %v3129
  %3825 = vmatmul.mubr.bf16.gmra.mrb[0].mxu0 %v3128
  %v3826 = vpop.f32.mrb[0].mxu0
  %v3827 = vadd.f32 0.0, %v3826
  %v3828 = vpop.f32.mrb[0].mxu0
  %v3829 = vadd.f32 0.0, %v3828
  %v3830 = vpop.f32.mrb[0].mxu0
  %v3831 = vadd.f32 0.0, %v3830
  %v3832 = vpop.f32.mrb[0].mxu0
  %v3833 = vadd.f32 0.0, %v3832
  %3834 = vmatprep.mubr.bf16.mxu0 %v3131
  %3835 = vmatmul.mubr.bf16.gmra.mrb[0].mxu0 %v3130
  %v3836 = vpop.f32.mrb[0].mxu0
  %v3837 = vadd.f32 0.0, %v3836
  %v3838 = vpop.f32.mrb[0].mxu0
  %v3839 = vadd.f32 0.0, %v3838
  %v3840 = vpop.f32.mrb[0].mxu0
  %v3841 = vadd.f32 0.0, %v3840
  %v3842 = vpop.f32.mrb[0].mxu0
  %v3843 = vadd.f32 0.0, %v3842
  %3844 = vmatprep.mubr.bf16.mxu0 %v3133
  %3845 = vmatmul.mubr.bf16.gmra.mrb[0].mxu0 %v3132
  %v3846 = vpop.f32.mrb[0].mxu0
  %v3847 = vadd.f32 0.0, %v3846
  %v3848 = vpop.f32.mrb[0].mxu0
  %v3849 = vadd.f32 0.0, %v3848
  %v3850 = vpop.f32.mrb[0].mxu0
  %v3851 = vadd.f32 0.0, %v3850
  %v3852 = vpop.f32.mrb[0].mxu0
  %v3853 = vadd.f32 0.0, %v3852
  %3854 = vmatprep.mubr.bf16.mxu0 %v3135
  %3855 = vmatmul.mubr.bf16.gmra.mrb[0].mxu0 %v3134
  %v3856 = vpop.f32.mrb[0].mxu0
  %v3857 = vadd.f32 0.0, %v3856
  %v3858 = vpop.f32.mrb[0].mxu0
  %v3859 = vadd.f32 0.0, %v3858
  %v3860 = vpop.f32.mrb[0].mxu0
  %v3861 = vadd.f32 0.0, %v3860
  %v3862 = vpop.f32.mrb[0].mxu0
  %v3863 = vadd.f32 0.0, %v3862
  %3864 = vmatprep.mubr.bf16.mxu0 %v3137
  %3865 = vmatmul.mubr.bf16.gmra.mrb[0].mxu0 %v3136
  %v3866 = vpop.f32.mrb[0].mxu0
  %v3867 = vadd.f32 0.0, %v3866
  %v3868 = vpop.f32.mrb[0].mxu0
  %v3869 = vadd.f32 0.0, %v3868
  %v3870 = vpop.f32.mrb[0].mxu0
  %v3871 = vadd.f32 0.0, %v3870
  %v3872 = vpop.f32.mrb[0].mxu0
  %v3873 = vadd.f32 0.0, %v3872
  %3874 = vdwg.mxu0
  %3875 = vmatprep.subr.bf16.mxu0 %v3397
  %3876 = vmatpush1.bf16.msra.mxu0 %v3396
  %3877 = vmatprep.subr.bf16.mxu0 %v3401
  %3878 = vmatpush1.bf16.msra.mxu0 %v3400
  %3879 = vmatprep.subr.bf16.mxu0 %v3405
  %3880 = vmatpush1.bf16.msra.mxu0 %v3404
  %3881 = vmatprep.subr.bf16.mxu0 %v3409
  %3882 = vmatpush1.bf16.msra.mxu0 %v3408
  %3883 = vmatprep.subr.bf16.mxu0 %v3413
  %3884 = vmatpush1.bf16.msra.mxu0 %v3412
  %3885 = vmatprep.subr.bf16.mxu0 %v3417
  %3886 = vmatpush1.bf16.msra.mxu0 %v3416
  %3887 = vmatprep.subr.bf16.mxu0 %v3421
  %3888 = vmatpush1.bf16.msra.mxu0 %v3420
  %3889 = vmatprep.subr.bf16.mxu0 %v3425
  %3890 = vmatpush1.bf16.msra.mxu0 %v3424
  %3891 = vmatprep.subr.bf16.mxu0 %v3429
  %3892 = vmatpush1.bf16.msra.mxu0 %v3428
  %3893 = vmatprep.subr.bf16.mxu0 %v3433
  %3894 = vmatpush1.bf16.msra.mxu0 %v3432
  %3895 = vmatprep.subr.bf16.mxu0 %v3437
  %3896 = vmatpush1.bf16.msra.mxu0 %v3436
  %3897 = vmatprep.subr.bf16.mxu0 %v3441
  %3898 = vmatpush1.bf16.msra.mxu0 %v3440
  %3899 = vmatprep.subr.bf16.mxu0 %v3445
  %3900 = vmatpush1.bf16.msra.mxu0 %v3444
  %3901 = vmatprep.subr.bf16.mxu0 %v3449
  %3902 = vmatpush1.bf16.msra.mxu0 %v3448
  %3903 = vmatprep.subr.bf16.mxu0 %v3453
  %3904 = vmatpush1.bf16.msra.mxu0 %v3452
  %3905 = vmatprep.subr.bf16.mxu0 %v3457
  %3906 = vmatpush1.bf16.msra.mxu0 %v3456
  %3907 = vmatprep.mubr.bf16.mxu0 %v3075
  %3908 = vmatmul.mubr.bf16.gmra.mrb[0].mxu0 %v3074
  %v3909 = vpop.f32.mrb[0].mxu0
  %v3910 = vadd.f32 0.0, %v3909
  %v3911 = vpop.f32.mrb[0].mxu0
  %v3912 = vadd.f32 0.0, %v3911
  %v3913 = vpop.f32.mrb[0].mxu0
  %v3914 = vadd.f32 0.0, %v3913
  %v3915 = vpop.f32.mrb[0].mxu0
  %v3916 = vadd.f32 0.0, %v3915
  %3917 = vmatprep.mubr.bf16.mxu0 %v3077
  %3918 = vmatmul.mubr.bf16.gmra.mrb[0].mxu0 %v3076
  %v3919 = vpop.f32.mrb[0].mxu0
  %v3920 = vadd.f32 0.0, %v3919
  %v3921 = vpop.f32.mrb[0].mxu0
  %v3922 = vadd.f32 0.0, %v3921
  %v3923 = vpop.f32.mrb[0].mxu0
  %v3924 = vadd.f32 0.0, %v3923
  %v3925 = vpop.f32.mrb[0].mxu0
  %v3926 = vadd.f32 0.0, %v3925
  %3927 = vmatprep.mubr.bf16.mxu0 %v3079
  %3928 = vmatmul.mubr.bf16.gmra.mrb[0].mxu0 %v3078
  %v3929 = vpop.f32.mrb[0].mxu0
  %v3930 = vadd.f32 0.0, %v3929
  %v3931 = vpop.f32.mrb[0].mxu0
  %v3932 = vadd.f32 0.0, %v3931
  %v3933 = vpop.f32.mrb[0].mxu0
  %v3934 = vadd.f32 0.0, %v3933
  %v3935 = vpop.f32.mrb[0].mxu0
  %v3936 = vadd.f32 0.0, %v3935
  %3937 = vmatprep.mubr.bf16.mxu0 %v3081
  %3938 = vmatmul.mubr.bf16.gmra.mrb[0].mxu0 %v3080
  %v3939 = vpop.f32.mrb[0].mxu0
  %v3940 = vadd.f32 0.0, %v3939
  %v3941 = vpop.f32.mrb[0].mxu0
  %v3942 = vadd.f32 0.0, %v3941
  %v3943 = vpop.f32.mrb[0].mxu0
  %v3944 = vadd.f32 0.0, %v3943
  %v3945 = vpop.f32.mrb[0].mxu0
  %v3946 = vadd.f32 0.0, %v3945
  %3947 = vmatprep.mubr.bf16.mxu0 %v3083
  %3948 = vmatmul.mubr.bf16.gmra.mrb[0].mxu0 %v3082
  %v3949 = vpop.f32.mrb[0].mxu0
  %v3950 = vadd.f32 0.0, %v3949
  %v3951 = vpop.f32.mrb[0].mxu0
  %v3952 = vadd.f32 0.0, %v3951
  %v3953 = vpop.f32.mrb[0].mxu0
  %v3954 = vadd.f32 0.0, %v3953
  %v3955 = vpop.f32.mrb[0].mxu0
  %v3956 = vadd.f32 0.0, %v3955
  %3957 = vmatprep.mubr.bf16.mxu0 %v3085
  %3958 = vmatmul.mubr.bf16.gmra.mrb[0].mxu0 %v3084
  %v3959 = vpop.f32.mrb[0].mxu0
  %v3960 = vadd.f32 0.0, %v3959
  %v3961 = vpop.f32.mrb[0].mxu0
  %v3962 = vadd.f32 0.0, %v3961
  %v3963 = vpop.f32.mrb[0].mxu0
  %v3964 = vadd.f32 0.0, %v3963
  %v3965 = vpop.f32.mrb[0].mxu0
  %v3966 = vadd.f32 0.0, %v3965
  %3967 = vmatprep.mubr.bf16.mxu0 %v3087
  %3968 = vmatmul.mubr.bf16.gmra.mrb[0].mxu0 %v3086
  %v3969 = vpop.f32.mrb[0].mxu0
  %v3970 = vadd.f32 0.0, %v3969
  %v3971 = vpop.f32.mrb[0].mxu0
  %v3972 = vadd.f32 0.0, %v3971
  %v3973 = vpop.f32.mrb[0].mxu0
  %v3974 = vadd.f32 0.0, %v3973
  %v3975 = vpop.f32.mrb[0].mxu0
  %v3976 = vadd.f32 0.0, %v3975
  %3977 = vmatprep.mubr.bf16.mxu0 %v3089
  %3978 = vmatmul.mubr.bf16.gmra.mrb[0].mxu0 %v3088
  %v3979 = vpop.f32.mrb[0].mxu0
  %v3980 = vadd.f32 0.0, %v3979
  %v3981 = vpop.f32.mrb[0].mxu0
  %v3982 = vadd.f32 0.0, %v3981
  %v3983 = vpop.f32.mrb[0].mxu0
  %v3984 = vadd.f32 0.0, %v3983
  %v3985 = vpop.f32.mrb[0].mxu0
  %v3986 = vadd.f32 0.0, %v3985
  %3987 = vmatprep.mubr.bf16.mxu0 %v3091
  %3988 = vmatmul.mubr.bf16.gmra.mrb[0].mxu0 %v3090
  %v3989 = vpop.f32.mrb[0].mxu0
  %v3990 = vadd.f32 0.0, %v3989
  %v3991 = vpop.f32.mrb[0].mxu0
  %v3992 = vadd.f32 0.0, %v3991
  %v3993 = vpop.f32.mrb[0].mxu0
  %v3994 = vadd.f32 0.0, %v3993
  %v3995 = vpop.f32.mrb[0].mxu0
  %v3996 = vadd.f32 0.0, %v3995
  %3997 = vmatprep.mubr.bf16.mxu0 %v3093
  %3998 = vmatmul.mubr.bf16.gmra.mrb[0].mxu0 %v3092
  %v3999 = vpop.f32.mrb[0].mxu0
  %v4000 = vadd.f32 0.0, %v3999
  %v4001 = vpop.f32.mrb[0].mxu0
  %v4002 = vadd.f32 0.0, %v4001
  %v4003 = vpop.f32.mrb[0].mxu0
  %v4004 = vadd.f32 0.0, %v4003
  %v4005 = vpop.f32.mrb[0].mxu0
  %v4006 = vadd.f32 0.0, %v4005
  %4007 = vmatprep.mubr.bf16.mxu0 %v3095
  %4008 = vmatmul.mubr.bf16.gmra.mrb[0].mxu0 %v3094
  %v4009 = vpop.f32.mrb[0].mxu0
  %v4010 = vadd.f32 0.0, %v4009
  %v4011 = vpop.f32.mrb[0].mxu0
  %v4012 = vadd.f32 0.0, %v4011
  %v4013 = vpop.f32.mrb[0].mxu0
  %v4014 = vadd.f32 0.0, %v4013
  %v4015 = vpop.f32.mrb[0].mxu0
  %v4016 = vadd.f32 0.0, %v4015
  %4017 = vmatprep.mubr.bf16.mxu0 %v3097
  %4018 = vmatmul.mubr.bf16.gmra.mrb[0].mxu0 %v3096
  %v4019 = vpop.f32.mrb[0].mxu0
  %v4020 = vadd.f32 0.0, %v4019
  %v4021 = vpop.f32.mrb[0].mxu0
  %v4022 = vadd.f32 0.0, %v4021
  %v4023 = vpop.f32.mrb[0].mxu0
  %v4024 = vadd.f32 0.0, %v4023
  %v4025 = vpop.f32.mrb[0].mxu0
  %v4026 = vadd.f32 0.0, %v4025
  %4027 = vmatprep.mubr.bf16.mxu0 %v3099
  %4028 = vmatmul.mubr.bf16.gmra.mrb[0].mxu0 %v3098
  %v4029 = vpop.f32.mrb[0].mxu0
  %v4030 = vadd.f32 0.0, %v4029
  %v4031 = vpop.f32.mrb[0].mxu0
  %v4032 = vadd.f32 0.0, %v4031
  %v4033 = vpop.f32.mrb[0].mxu0
  %v4034 = vadd.f32 0.0, %v4033
  %v4035 = vpop.f32.mrb[0].mxu0
  %v4036 = vadd.f32 0.0, %v4035
  %4037 = vmatprep.mubr.bf16.mxu0 %v3101
  %4038 = vmatmul.mubr.bf16.gmra.mrb[0].mxu0 %v3100
  %v4039 = vpop.f32.mrb[0].mxu0
  %v4040 = vadd.f32 0.0, %v4039
  %v4041 = vpop.f32.mrb[0].mxu0
  %v4042 = vadd.f32 0.0, %v4041
  %v4043 = vpop.f32.mrb[0].mxu0
  %v4044 = vadd.f32 0.0, %v4043
  %v4045 = vpop.f32.mrb[0].mxu0
  %v4046 = vadd.f32 0.0, %v4045
  %4047 = vmatprep.mubr.bf16.mxu0 %v3103
  %4048 = vmatmul.mubr.bf16.gmra.mrb[0].mxu0 %v3102
  %v4049 = vpop.f32.mrb[0].mxu0
  %v4050 = vadd.f32 0.0, %v4049
  %v4051 = vpop.f32.mrb[0].mxu0
  %v4052 = vadd.f32 0.0, %v4051
  %v4053 = vpop.f32.mrb[0].mxu0
  %v4054 = vadd.f32 0.0, %v4053
  %v4055 = vpop.f32.mrb[0].mxu0
  %v4056 = vadd.f32 0.0, %v4055
  %4057 = vmatprep.mubr.bf16.mxu0 %v3105
  %4058 = vmatmul.mubr.bf16.gmra.mrb[0].mxu0 %v3104
  %v4059 = vpop.f32.mrb[0].mxu0
  %v4060 = vadd.f32 0.0, %v4059
  %v4061 = vpop.f32.mrb[0].mxu0
  %v4062 = vadd.f32 0.0, %v4061
  %v4063 = vpop.f32.mrb[0].mxu0
  %v4064 = vadd.f32 0.0, %v4063
  %v4065 = vpop.f32.mrb[0].mxu0
  %v4066 = vadd.f32 0.0, %v4065
  %4067 = vmatprep.mubr.bf16.mxu0 %v3107
  %4068 = vmatmul.mubr.bf16.gmra.mrb[0].mxu0 %v3106
  %v4069 = vpop.f32.mrb[0].mxu0
  %v4070 = vadd.f32 0.0, %v4069
  %v4071 = vpop.f32.mrb[0].mxu0
  %v4072 = vadd.f32 0.0, %v4071
  %v4073 = vpop.f32.mrb[0].mxu0
  %v4074 = vadd.f32 0.0, %v4073
  %v4075 = vpop.f32.mrb[0].mxu0
  %v4076 = vadd.f32 0.0, %v4075
  %4077 = vmatprep.mubr.bf16.mxu0 %v3109
  %4078 = vmatmul.mubr.bf16.gmra.mrb[0].mxu0 %v3108
  %v4079 = vpop.f32.mrb[0].mxu0
  %v4080 = vadd.f32 0.0, %v4079
  %v4081 = vpop.f32.mrb[0].mxu0
  %v4082 = vadd.f32 0.0, %v4081
  %v4083 = vpop.f32.mrb[0].mxu0
  %v4084 = vadd.f32 0.0, %v4083
  %v4085 = vpop.f32.mrb[0].mxu0
  %v4086 = vadd.f32 0.0, %v4085
  %4087 = vmatprep.mubr.bf16.mxu0 %v3111
  %4088 = vmatmul.mubr.bf16.gmra.mrb[0].mxu0 %v3110
  %v4089 = vpop.f32.mrb[0].mxu0
  %v4090 = vadd.f32 0.0, %v4089
  %v4091 = vpop.f32.mrb[0].mxu0
  %v4092 = vadd.f32 0.0, %v4091
  %v4093 = vpop.f32.mrb[0].mxu0
  %v4094 = vadd.f32 0.0, %v4093
  %v4095 = vpop.f32.mrb[0].mxu0
  %v4096 = vadd.f32 0.0, %v4095
  %4097 = vmatprep.mubr.bf16.mxu0 %v3113
  %4098 = vmatmul.mubr.bf16.gmra.mrb[0].mxu0 %v3112
  %v4099 = vpop.f32.mrb[0].mxu0
  %v4100 = vadd.f32 0.0, %v4099
  %v4101 = vpop.f32.mrb[0].mxu0
  %v4102 = vadd.f32 0.0, %v4101
  %v4103 = vpop.f32.mrb[0].mxu0
  %v4104 = vadd.f32 0.0, %v4103
  %v4105 = vpop.f32.mrb[0].mxu0
  %v4106 = vadd.f32 0.0, %v4105
  %4107 = vmatprep.mubr.bf16.mxu0 %v3115
  %4108 = vmatmul.mubr.bf16.gmra.mrb[0].mxu0 %v3114
  %v4109 = vpop.f32.mrb[0].mxu0
  %v4110 = vadd.f32 0.0, %v4109
  %v4111 = vpop.f32.mrb[0].mxu0
  %v4112 = vadd.f32 0.0, %v4111
  %v4113 = vpop.f32.mrb[0].mxu0
  %v4114 = vadd.f32 0.0, %v4113
  %v4115 = vpop.f32.mrb[0].mxu0
  %v4116 = vadd.f32 0.0, %v4115
  %4117 = vmatprep.mubr.bf16.mxu0 %v3117
  %4118 = vmatmul.mubr.bf16.gmra.mrb[0].mxu0 %v3116
  %v4119 = vpop.f32.mrb[0].mxu0
  %v4120 = vadd.f32 0.0, %v4119
  %v4121 = vpop.f32.mrb[0].mxu0
  %v4122 = vadd.f32 0.0, %v4121
  %v4123 = vpop.f32.mrb[0].mxu0
  %v4124 = vadd.f32 0.0, %v4123
  %v4125 = vpop.f32.mrb[0].mxu0
  %v4126 = vadd.f32 0.0, %v4125
  %4127 = vmatprep.mubr.bf16.mxu0 %v3119
  %4128 = vmatmul.mubr.bf16.gmra.mrb[0].mxu0 %v3118
  %v4129 = vpop.f32.mrb[0].mxu0
  %v4130 = vadd.f32 0.0, %v4129
  %v4131 = vpop.f32.mrb[0].mxu0
  %v4132 = vadd.f32 0.0, %v4131
  %v4133 = vpop.f32.mrb[0].mxu0
  %v4134 = vadd.f32 0.0, %v4133
  %v4135 = vpop.f32.mrb[0].mxu0
  %v4136 = vadd.f32 0.0, %v4135
  %4137 = vmatprep.mubr.bf16.mxu0 %v3121
  %4138 = vmatmul.mubr.bf16.gmra.mrb[0].mxu0 %v3120
  %v4139 = vpop.f32.mrb[0].mxu0
  %v4140 = vadd.f32 0.0, %v4139
  %v4141 = vpop.f32.mrb[0].mxu0
  %v4142 = vadd.f32 0.0, %v4141
  %v4143 = vpop.f32.mrb[0].mxu0
  %v4144 = vadd.f32 0.0, %v4143
  %v4145 = vpop.f32.mrb[0].mxu0
  %v4146 = vadd.f32 0.0, %v4145
  %4147 = vmatprep.mubr.bf16.mxu0 %v3123
  %4148 = vmatmul.mubr.bf16.gmra.mrb[0].mxu0 %v3122
  %v4149 = vpop.f32.mrb[0].mxu0
  %v4150 = vadd.f32 0.0, %v4149
  %v4151 = vpop.f32.mrb[0].mxu0
  %v4152 = vadd.f32 0.0, %v4151
  %v4153 = vpop.f32.mrb[0].mxu0
  %v4154 = vadd.f32 0.0, %v4153
  %v4155 = vpop.f32.mrb[0].mxu0
  %v4156 = vadd.f32 0.0, %v4155
  %4157 = vmatprep.mubr.bf16.mxu0 %v3125
  %4158 = vmatmul.mubr.bf16.gmra.mrb[0].mxu0 %v3124
  %v4159 = vpop.f32.mrb[0].mxu0
  %v4160 = vadd.f32 0.0, %v4159
  %v4161 = vpop.f32.mrb[0].mxu0
  %v4162 = vadd.f32 0.0, %v4161
  %v4163 = vpop.f32.mrb[0].mxu0
  %v4164 = vadd.f32 0.0, %v4163
  %v4165 = vpop.f32.mrb[0].mxu0
  %v4166 = vadd.f32 0.0, %v4165
  %4167 = vmatprep.mubr.bf16.mxu0 %v3127
  %4168 = vmatmul.mubr.bf16.gmra.mrb[0].mxu0 %v3126
  %v4169 = vpop.f32.mrb[0].mxu0
  %v4170 = vadd.f32 0.0, %v4169
  %v4171 = vpop.f32.mrb[0].mxu0
  %v4172 = vadd.f32 0.0, %v4171
  %v4173 = vpop.f32.mrb[0].mxu0
  %v4174 = vadd.f32 0.0, %v4173
  %v4175 = vpop.f32.mrb[0].mxu0
  %v4176 = vadd.f32 0.0, %v4175
  %4177 = vmatprep.mubr.bf16.mxu0 %v3129
  %4178 = vmatmul.mubr.bf16.gmra.mrb[0].mxu0 %v3128
  %v4179 = vpop.f32.mrb[0].mxu0
  %v4180 = vadd.f32 0.0, %v4179
  %v4181 = vpop.f32.mrb[0].mxu0
  %v4182 = vadd.f32 0.0, %v4181
  %v4183 = vpop.f32.mrb[0].mxu0
  %v4184 = vadd.f32 0.0, %v4183
  %v4185 = vpop.f32.mrb[0].mxu0
  %v4186 = vadd.f32 0.0, %v4185
  %4187 = vmatprep.mubr.bf16.mxu0 %v3131
  %4188 = vmatmul.mubr.bf16.gmra.mrb[0].mxu0 %v3130
  %v4189 = vpop.f32.mrb[0].mxu0
  %v4190 = vadd.f32 0.0, %v4189
  %v4191 = vpop.f32.mrb[0].mxu0
  %v4192 = vadd.f32 0.0, %v4191
  %v4193 = vpop.f32.mrb[0].mxu0
  %v4194 = vadd.f32 0.0, %v4193
  %v4195 = vpop.f32.mrb[0].mxu0
  %v4196 = vadd.f32 0.0, %v4195
  %4197 = vmatprep.mubr.bf16.mxu0 %v3133
  %4198 = vmatmul.mubr.bf16.gmra.mrb[0].mxu0 %v3132
  %v4199 = vpop.f32.mrb[0].mxu0
  %v4200 = vadd.f32 0.0, %v4199
  %v4201 = vpop.f32.mrb[0].mxu0
  %v4202 = vadd.f32 0.0, %v4201
  %v4203 = vpop.f32.mrb[0].mxu0
  %v4204 = vadd.f32 0.0, %v4203
  %v4205 = vpop.f32.mrb[0].mxu0
  %v4206 = vadd.f32 0.0, %v4205
  %4207 = vmatprep.mubr.bf16.mxu0 %v3135
  %4208 = vmatmul.mubr.bf16.gmra.mrb[0].mxu0 %v3134
  %v4209 = vpop.f32.mrb[0].mxu0
  %v4210 = vadd.f32 0.0, %v4209
  %v4211 = vpop.f32.mrb[0].mxu0
  %v4212 = vadd.f32 0.0, %v4211
  %v4213 = vpop.f32.mrb[0].mxu0
  %v4214 = vadd.f32 0.0, %v4213
  %v4215 = vpop.f32.mrb[0].mxu0
  %v4216 = vadd.f32 0.0, %v4215
  %4217 = vmatprep.mubr.bf16.mxu0 %v3137
  %4218 = vmatmul.mubr.bf16.gmra.mrb[0].mxu0 %v3136
  %v4219 = vpop.f32.mrb[0].mxu0
  %v4220 = vadd.f32 0.0, %v4219
  %v4221 = vpop.f32.mrb[0].mxu0
  %v4222 = vadd.f32 0.0, %v4221
  %v4223 = vpop.f32.mrb[0].mxu0
  %v4224 = vadd.f32 0.0, %v4223
  %v4225 = vpop.f32.mrb[0].mxu0
  %v4226 = vadd.f32 0.0, %v4225
  %4227 = vdwg.mxu0
  %v4228 = vpack.c.bf16 %v3561, %v3557
  %v4229 = vpack.c.bf16 %v3563, %v3559
  %v4230 = vpack.c.bf16 %v3914, %v3910
  %v4231 = vpack.c.bf16 %v3916, %v3912
  %v4232 = vpack.c.bf16 %v3571, %v3567
  %v4233 = vpack.c.bf16 %v3573, %v3569
  %v4234 = vpack.c.bf16 %v3924, %v3920
  %v4235 = vpack.c.bf16 %v3926, %v3922
  %v4236 = vpack.c.bf16 %v3581, %v3577
  %v4237 = vpack.c.bf16 %v3583, %v3579
  %v4238 = vpack.c.bf16 %v3934, %v3930
  %v4239 = vpack.c.bf16 %v3936, %v3932
  %v4240 = vpack.c.bf16 %v3591, %v3587
  %v4241 = vpack.c.bf16 %v3593, %v3589
  %v4242 = vpack.c.bf16 %v3944, %v3940
  %v4243 = vpack.c.bf16 %v3946, %v3942
  %v4244 = vpack.c.bf16 %v3601, %v3597
  %v4245 = vpack.c.bf16 %v3603, %v3599
  %v4246 = vpack.c.bf16 %v3954, %v3950
  %v4247 = vpack.c.bf16 %v3956, %v3952
  %v4248 = vpack.c.bf16 %v3611, %v3607
  %v4249 = vpack.c.bf16 %v3613, %v3609
  %v4250 = vpack.c.bf16 %v3964, %v3960
  %v4251 = vpack.c.bf16 %v3966, %v3962
  %v4252 = vpack.c.bf16 %v3621, %v3617
  %v4253 = vpack.c.bf16 %v3623, %v3619
  %v4254 = vpack.c.bf16 %v3974, %v3970
  %v4255 = vpack.c.bf16 %v3976, %v3972
  %v4256 = vpack.c.bf16 %v3631, %v3627
  %v4257 = vpack.c.bf16 %v3633, %v3629
  %v4258 = vpack.c.bf16 %v3984, %v3980
  %v4259 = vpack.c.bf16 %v3986, %v3982
  %v4260 = vpack.c.bf16 %v3641, %v3637
  %v4261 = vpack.c.bf16 %v3643, %v3639
  %v4262 = vpack.c.bf16 %v3994, %v3990
  %v4263 = vpack.c.bf16 %v3996, %v3992
  %v4264 = vpack.c.bf16 %v3651, %v3647
  %v4265 = vpack.c.bf16 %v3653, %v3649
  %v4266 = vpack.c.bf16 %v4004, %v4000
  %v4267 = vpack.c.bf16 %v4006, %v4002
  %v4268 = vpack.c.bf16 %v3661, %v3657
  %v4269 = vpack.c.bf16 %v3663, %v3659
  %v4270 = vpack.c.bf16 %v4014, %v4010
  %v4271 = vpack.c.bf16 %v4016, %v4012
  %v4272 = vpack.c.bf16 %v3671, %v3667
  %v4273 = vpack.c.bf16 %v3673, %v3669
  %v4274 = vpack.c.bf16 %v4024, %v4020
  %v4275 = vpack.c.bf16 %v4026, %v4022
  %v4276 = vpack.c.bf16 %v3681, %v3677
  %v4277 = vpack.c.bf16 %v3683, %v3679
  %v4278 = vpack.c.bf16 %v4034, %v4030
  %v4279 = vpack.c.bf16 %v4036, %v4032
  %v4280 = vpack.c.bf16 %v3691, %v3687
  %v4281 = vpack.c.bf16 %v3693, %v3689
  %v4282 = vpack.c.bf16 %v4044, %v4040
  %v4283 = vpack.c.bf16 %v4046, %v4042
  %v4284 = vpack.c.bf16 %v3701, %v3697
  %v4285 = vpack.c.bf16 %v3703, %v3699
  %v4286 = vpack.c.bf16 %v4054, %v4050
  %v4287 = vpack.c.bf16 %v4056, %v4052
  %v4288 = vpack.c.bf16 %v3711, %v3707
  %v4289 = vpack.c.bf16 %v3713, %v3709
  %v4290 = vpack.c.bf16 %v4064, %v4060
  %v4291 = vpack.c.bf16 %v4066, %v4062
  %v4292 = vpack.c.bf16 %v3721, %v3717
  %v4293 = vpack.c.bf16 %v3723, %v3719
  %v4294 = vpack.c.bf16 %v4074, %v4070
  %v4295 = vpack.c.bf16 %v4076, %v4072
  %v4296 = vpack.c.bf16 %v3731, %v3727
  %v4297 = vpack.c.bf16 %v3733, %v3729
  %v4298 = vpack.c.bf16 %v4084, %v4080
  %v4299 = vpack.c.bf16 %v4086, %v4082
  %v4300 = vpack.c.bf16 %v3741, %v3737
  %v4301 = vpack.c.bf16 %v3743, %v3739
  %v4302 = vpack.c.bf16 %v4094, %v4090
  %v4303 = vpack.c.bf16 %v4096, %v4092
  %v4304 = vpack.c.bf16 %v3751, %v3747
  %v4305 = vpack.c.bf16 %v3753, %v3749
  %v4306 = vpack.c.bf16 %v4104, %v4100
  %v4307 = vpack.c.bf16 %v4106, %v4102
  %v4308 = vpack.c.bf16 %v3761, %v3757
  %v4309 = vpack.c.bf16 %v3763, %v3759
  %v4310 = vpack.c.bf16 %v4114, %v4110
  %v4311 = vpack.c.bf16 %v4116, %v4112
  %v4312 = vpack.c.bf16 %v3771, %v3767
  %v4313 = vpack.c.bf16 %v3773, %v3769
  %v4314 = vpack.c.bf16 %v4124, %v4120
  %v4315 = vpack.c.bf16 %v4126, %v4122
  %v4316 = vpack.c.bf16 %v3781, %v3777
  %v4317 = vpack.c.bf16 %v3783, %v3779
  %v4318 = vpack.c.bf16 %v4134, %v4130
  %v4319 = vpack.c.bf16 %v4136, %v4132
  %v4320 = vpack.c.bf16 %v3791, %v3787
  %v4321 = vpack.c.bf16 %v3793, %v3789
  %v4322 = vpack.c.bf16 %v4144, %v4140
  %v4323 = vpack.c.bf16 %v4146, %v4142
  %v4324 = vpack.c.bf16 %v3801, %v3797
  %v4325 = vpack.c.bf16 %v3803, %v3799
  %v4326 = vpack.c.bf16 %v4154, %v4150
  %v4327 = vpack.c.bf16 %v4156, %v4152
  %v4328 = vpack.c.bf16 %v3811, %v3807
  %v4329 = vpack.c.bf16 %v3813, %v3809
  %v4330 = vpack.c.bf16 %v4164, %v4160
  %v4331 = vpack.c.bf16 %v4166, %v4162
  %v4332 = vpack.c.bf16 %v3821, %v3817
  %v4333 = vpack.c.bf16 %v3823, %v3819
  %v4334 = vpack.c.bf16 %v4174, %v4170
  %v4335 = vpack.c.bf16 %v4176, %v4172
  %v4336 = vpack.c.bf16 %v3831, %v3827
  %v4337 = vpack.c.bf16 %v3833, %v3829
  %v4338 = vpack.c.bf16 %v4184, %v4180
  %v4339 = vpack.c.bf16 %v4186, %v4182
  %v4340 = vpack.c.bf16 %v3841, %v3837
  %v4341 = vpack.c.bf16 %v3843, %v3839
  %v4342 = vpack.c.bf16 %v4194, %v4190
  %v4343 = vpack.c.bf16 %v4196, %v4192
  %v4344 = vpack.c.bf16 %v3851, %v3847
  %v4345 = vpack.c.bf16 %v3853, %v3849
  %v4346 = vpack.c.bf16 %v4204, %v4200
  %v4347 = vpack.c.bf16 %v4206, %v4202
  %v4348 = vpack.c.bf16 %v3861, %v3857
  %v4349 = vpack.c.bf16 %v3863, %v3859
  %v4350 = vpack.c.bf16 %v4214, %v4210
  %v4351 = vpack.c.bf16 %v4216, %v4212
  %v4352 = vpack.c.bf16 %v3871, %v3867
  %v4353 = vpack.c.bf16 %v3873, %v3869
  %v4354 = vpack.c.bf16 %v4224, %v4220
  %v4355 = vpack.c.bf16 %v4226, %v4222
  %v4356 = vld [vmem:[%s6] sm:$0xf]
  %v4359 = vunpack.c.l.s4 1966171168
  %v4360 = vunpack.c.0.s8 %v4359
  %v4361 = vlaneseq
  %v4362 = vshrl.u32 %v4361, 7
  %v4363 = vsub.s32 %v4360, %v4362
  %v4364 = vrot.slane %v4356, %v4363
  %v4365 = vcombine.high %v4364, %v4364
  %v4367 = vunpack.c.l.s4 1966171168
  %v4368 = vunpack.c.0.s8 %v4367
  %v4369 = vlaneseq
  %v4370 = vshrl.u32 %v4369, 7
  %v4371 = vsub.s32 %v4368, %v4370
  %v4372 = vrot.slane %v4364, %v4371
  %v4374 = vunpack.c.l.s4 1966171168
  %v4375 = vunpack.c.0.s8 %v4374
  %v4376 = vlaneseq
  %v4377 = vshrl.u32 %v4376, 7
  %v4378 = vsub.s32 %v4375, %v4377
  %v4379 = vrot.slane %v4365, %v4378
  %v4380 = vcombine.high %v4372, %v4372
  %v4381 = vcombine.high %v4379, %v4379
  %v4383 = vpack.i.b16 %v4372, %v4372
  %v4385 = vlaneseq
  %v4386 = vshrl.u32 %v4385, 7
  %v4387 = vsub.s32 0, %v4386
  %v4388 = vrot.slane %v4383, %v4387
  %v4390 = vpack.i.b16 %v4379, %v4379
  %v4392 = vlaneseq
  %v4393 = vshrl.u32 %v4392, 7
  %v4394 = vsub.s32 0, %v4393
  %v4395 = vrot.slane %v4390, %v4394
  %v4397 = vpack.i.b16 %v4380, %v4380
  %v4399 = vlaneseq
  %v4400 = vshrl.u32 %v4399, 7
  %v4401 = vsub.s32 0, %v4400
  %v4402 = vrot.slane %v4397, %v4401
  %v4404 = vpack.i.b16 %v4381, %v4381
  %v4406 = vlaneseq
  %v4407 = vshrl.u32 %v4406, 7
  %v4408 = vsub.s32 0, %v4407
  %v4409 = vrot.slane %v4404, %v4408
  %v4410 = vadd.bf16 %v4228, %v4388
  %v4411 = vadd.bf16 %v4229, %v4395
  %v4412 = vadd.bf16 %v4230, %v4402
  %v4413 = vadd.bf16 %v4231, %v4409
  %v4414 = vadd.bf16 %v4232, %v4388
  %v4415 = vadd.bf16 %v4233, %v4395
  %v4416 = vadd.bf16 %v4234, %v4402
  %v4417 = vadd.bf16 %v4235, %v4409
  %v4418 = vadd.bf16 %v4236, %v4388
  %v4419 = vadd.bf16 %v4237, %v4395
  %v4420 = vadd.bf16 %v4238, %v4402
  %v4421 = vadd.bf16 %v4239, %v4409
  %v4422 = vadd.bf16 %v4240, %v4388
  %v4423 = vadd.bf16 %v4241, %v4395
  %v4424 = vadd.bf16 %v4242, %v4402
  %v4425 = vadd.bf16 %v4243, %v4409
  %v4426 = vadd.bf16 %v4244, %v4388
  %v4427 = vadd.bf16 %v4245, %v4395
  %v4428 = vadd.bf16 %v4246, %v4402
  %v4429 = vadd.bf16 %v4247, %v4409
  %v4430 = vadd.bf16 %v4248, %v4388
  %v4431 = vadd.bf16 %v4249, %v4395
  %v4432 = vadd.bf16 %v4250, %v4402
  %v4433 = vadd.bf16 %v4251, %v4409
  %v4434 = vadd.bf16 %v4252, %v4388
  %v4435 = vadd.bf16 %v4253, %v4395
  %v4436 = vadd.bf16 %v4254, %v4402
  %v4437 = vadd.bf16 %v4255, %v4409
  %v4438 = vadd.bf16 %v4256, %v4388
  %v4439 = vadd.bf16 %v4257, %v4395
  %v4440 = vadd.bf16 %v4258, %v4402
  %v4441 = vadd.bf16 %v4259, %v4409
  %v4442 = vadd.bf16 %v4260, %v4388
  %v4443 = vadd.bf16 %v4261, %v4395
  %v4444 = vadd.bf16 %v4262, %v4402
  %v4445 = vadd.bf16 %v4263, %v4409
  %v4446 = vadd.bf16 %v4264, %v4388
  %v4447 = vadd.bf16 %v4265, %v4395
  %v4448 = vadd.bf16 %v4266, %v4402
  %v4449 = vadd.bf16 %v4267, %v4409
  %v4450 = vadd.bf16 %v4268, %v4388
  %v4451 = vadd.bf16 %v4269, %v4395
  %v4452 = vadd.bf16 %v4270, %v4402
  %v4453 = vadd.bf16 %v4271, %v4409
  %v4454 = vadd.bf16 %v4272, %v4388
  %v4455 = vadd.bf16 %v4273, %v4395
  %v4456 = vadd.bf16 %v4274, %v4402
  %v4457 = vadd.bf16 %v4275, %v4409
  %v4458 = vadd.bf16 %v4276, %v4388
  %v4459 = vadd.bf16 %v4277, %v4395
  %v4460 = vadd.bf16 %v4278, %v4402
  %v4461 = vadd.bf16 %v4279, %v4409
  %v4462 = vadd.bf16 %v4280, %v4388
  %v4463 = vadd.bf16 %v4281, %v4395
  %v4464 = vadd.bf16 %v4282, %v4402
  %v4465 = vadd.bf16 %v4283, %v4409
  %v4466 = vadd.bf16 %v4284, %v4388
  %v4467 = vadd.bf16 %v4285, %v4395
  %v4468 = vadd.bf16 %v4286, %v4402
  %v4469 = vadd.bf16 %v4287, %v4409
  %v4470 = vadd.bf16 %v4288, %v4388
  %v4471 = vadd.bf16 %v4289, %v4395
  %v4472 = vadd.bf16 %v4290, %v4402
  %v4473 = vadd.bf16 %v4291, %v4409
  %v4474 = vadd.bf16 %v4292, %v4388
  %v4475 = vadd.bf16 %v4293, %v4395
  %v4476 = vadd.bf16 %v4294, %v4402
  %v4477 = vadd.bf16 %v4295, %v4409
  %v4478 = vadd.bf16 %v4296, %v4388
  %v4479 = vadd.bf16 %v4297, %v4395
  %v4480 = vadd.bf16 %v4298, %v4402
  %v4481 = vadd.bf16 %v4299, %v4409
  %v4482 = vadd.bf16 %v4300, %v4388
  %v4483 = vadd.bf16 %v4301, %v4395
  %v4484 = vadd.bf16 %v4302, %v4402
  %v4485 = vadd.bf16 %v4303, %v4409
  %v4486 = vadd.bf16 %v4304, %v4388
  %v4487 = vadd.bf16 %v4305, %v4395
  %v4488 = vadd.bf16 %v4306, %v4402
  %v4489 = vadd.bf16 %v4307, %v4409
  %v4490 = vadd.bf16 %v4308, %v4388
  %v4491 = vadd.bf16 %v4309, %v4395
  %v4492 = vadd.bf16 %v4310, %v4402
  %v4493 = vadd.bf16 %v4311, %v4409
  %v4494 = vadd.bf16 %v4312, %v4388
  %v4495 = vadd.bf16 %v4313, %v4395
  %v4496 = vadd.bf16 %v4314, %v4402
  %v4497 = vadd.bf16 %v4315, %v4409
  %v4498 = vadd.bf16 %v4316, %v4388
  %v4499 = vadd.bf16 %v4317, %v4395
  %v4500 = vadd.bf16 %v4318, %v4402
  %v4501 = vadd.bf16 %v4319, %v4409
  %v4502 = vadd.bf16 %v4320, %v4388
  %v4503 = vadd.bf16 %v4321, %v4395
  %v4504 = vadd.bf16 %v4322, %v4402
  %v4505 = vadd.bf16 %v4323, %v4409
  %v4506 = vadd.bf16 %v4324, %v4388
  %v4507 = vadd.bf16 %v4325, %v4395
  %v4508 = vadd.bf16 %v4326, %v4402
  %v4509 = vadd.bf16 %v4327, %v4409
  %v4510 = vadd.bf16 %v4328, %v4388
  %v4511 = vadd.bf16 %v4329, %v4395
  %v4512 = vadd.bf16 %v4330, %v4402
  %v4513 = vadd.bf16 %v4331, %v4409
  %v4514 = vadd.bf16 %v4332, %v4388
  %v4515 = vadd.bf16 %v4333, %v4395
  %v4516 = vadd.bf16 %v4334, %v4402
  %v4517 = vadd.bf16 %v4335, %v4409
  %v4518 = vadd.bf16 %v4336, %v4388
  %v4519 = vadd.bf16 %v4337, %v4395
  %v4520 = vadd.bf16 %v4338, %v4402
  %v4521 = vadd.bf16 %v4339, %v4409
  %v4522 = vadd.bf16 %v4340, %v4388
  %v4523 = vadd.bf16 %v4341, %v4395
  %v4524 = vadd.bf16 %v4342, %v4402
  %v4525 = vadd.bf16 %v4343, %v4409
  %v4526 = vadd.bf16 %v4344, %v4388
  %v4527 = vadd.bf16 %v4345, %v4395
  %v4528 = vadd.bf16 %v4346, %v4402
  %v4529 = vadd.bf16 %v4347, %v4409
  %v4530 = vadd.bf16 %v4348, %v4388
  %v4531 = vadd.bf16 %v4349, %v4395
  %v4532 = vadd.bf16 %v4350, %v4402
  %v4533 = vadd.bf16 %v4351, %v4409
  %v4534 = vadd.bf16 %v4352, %v4388
  %v4535 = vadd.bf16 %v4353, %v4395
  %v4536 = vadd.bf16 %v4354, %v4402
  %v4537 = vadd.bf16 %v4355, %v4409
  %v4538 = vmul.bf16 %v4410, 1045249613
  %v4539 = vmul.bf16 %v4411, 1045249613
  %v4540 = vmul.bf16 %v4412, 1045249613
  %v4541 = vmul.bf16 %v4413, 1045249613
  %v4542 = vmul.bf16 %v4414, 1045249613
  %v4543 = vmul.bf16 %v4415, 1045249613
  %v4544 = vmul.bf16 %v4416, 1045249613
  %v4545 = vmul.bf16 %v4417, 1045249613
  %v4546 = vmul.bf16 %v4418, 1045249613
  %v4547 = vmul.bf16 %v4419, 1045249613
  %v4548 = vmul.bf16 %v4420, 1045249613
  %v4549 = vmul.bf16 %v4421, 1045249613
  %v4550 = vmul.bf16 %v4422, 1045249613
  %v4551 = vmul.bf16 %v4423, 1045249613
  %v4552 = vmul.bf16 %v4424, 1045249613
  %v4553 = vmul.bf16 %v4425, 1045249613
  %v4554 = vmul.bf16 %v4426, 1045249613
  %v4555 = vmul.bf16 %v4427, 1045249613
  %v4556 = vmul.bf16 %v4428, 1045249613
  %v4557 = vmul.bf16 %v4429, 1045249613
  %v4558 = vmul.bf16 %v4430, 1045249613
  %v4559 = vmul.bf16 %v4431, 1045249613
  %v4560 = vmul.bf16 %v4432, 1045249613
  %v4561 = vmul.bf16 %v4433, 1045249613
  %v4562 = vmul.bf16 %v4434, 1045249613
  %v4563 = vmul.bf16 %v4435, 1045249613
  %v4564 = vmul.bf16 %v4436, 1045249613
  %v4565 = vmul.bf16 %v4437, 1045249613
  %v4566 = vmul.bf16 %v4438, 1045249613
  %v4567 = vmul.bf16 %v4439, 1045249613
  %v4568 = vmul.bf16 %v4440, 1045249613
  %v4569 = vmul.bf16 %v4441, 1045249613
  %v4570 = vmul.bf16 %v4442, 1045249613
  %v4571 = vmul.bf16 %v4443, 1045249613
  %v4572 = vmul.bf16 %v4444, 1045249613
  %v4573 = vmul.bf16 %v4445, 1045249613
  %v4574 = vmul.bf16 %v4446, 1045249613
  %v4575 = vmul.bf16 %v4447, 1045249613
  %v4576 = vmul.bf16 %v4448, 1045249613
  %v4577 = vmul.bf16 %v4449, 1045249613
  %v4578 = vmul.bf16 %v4450, 1045249613
  %v4579 = vmul.bf16 %v4451, 1045249613
  %v4580 = vmul.bf16 %v4452, 1045249613
  %v4581 = vmul.bf16 %v4453, 1045249613
  %v4582 = vmul.bf16 %v4454, 1045249613
  %v4583 = vmul.bf16 %v4455, 1045249613
  %v4584 = vmul.bf16 %v4456, 1045249613
  %v4585 = vmul.bf16 %v4457, 1045249613
  %v4586 = vmul.bf16 %v4458, 1045249613
  %v4587 = vmul.bf16 %v4459, 1045249613
  %v4588 = vmul.bf16 %v4460, 1045249613
  %v4589 = vmul.bf16 %v4461, 1045249613
  %v4590 = vmul.bf16 %v4462, 1045249613
  %v4591 = vmul.bf16 %v4463, 1045249613
  %v4592 = vmul.bf16 %v4464, 1045249613
  %v4593 = vmul.bf16 %v4465, 1045249613
  %v4594 = vmul.bf16 %v4466, 1045249613
  %v4595 = vmul.bf16 %v4467, 1045249613
  %v4596 = vmul.bf16 %v4468, 1045249613
  %v4597 = vmul.bf16 %v4469, 1045249613
  %v4598 = vmul.bf16 %v4470, 1045249613
  %v4599 = vmul.bf16 %v4471, 1045249613
  %v4600 = vmul.bf16 %v4472, 1045249613
  %v4601 = vmul.bf16 %v4473, 1045249613
  %v4602 = vmul.bf16 %v4474, 1045249613
  %v4603 = vmul.bf16 %v4475, 1045249613
  %v4604 = vmul.bf16 %v4476, 1045249613
  %v4605 = vmul.bf16 %v4477, 1045249613
  %v4606 = vmul.bf16 %v4478, 1045249613
  %v4607 = vmul.bf16 %v4479, 1045249613
  %v4608 = vmul.bf16 %v4480, 1045249613
  %v4609 = vmul.bf16 %v4481, 1045249613
  %v4610 = vmul.bf16 %v4482, 1045249613
  %v4611 = vmul.bf16 %v4483, 1045249613
  %v4612 = vmul.bf16 %v4484, 1045249613
  %v4613 = vmul.bf16 %v4485, 1045249613
  %v4614 = vmul.bf16 %v4486, 1045249613
  %v4615 = vmul.bf16 %v4487, 1045249613
  %v4616 = vmul.bf16 %v4488, 1045249613
  %v4617 = vmul.bf16 %v4489, 1045249613
  %v4618 = vmul.bf16 %v4490, 1045249613
  %v4619 = vmul.bf16 %v4491, 1045249613
  %v4620 = vmul.bf16 %v4492, 1045249613
  %v4621 = vmul.bf16 %v4493, 1045249613
  %v4622 = vmul.bf16 %v4494, 1045249613
  %v4623 = vmul.bf16 %v4495, 1045249613
  %v4624 = vmul.bf16 %v4496, 1045249613
  %v4625 = vmul.bf16 %v4497, 1045249613
  %v4626 = vmul.bf16 %v4498, 1045249613
  %v4627 = vmul.bf16 %v4499, 1045249613
  %v4628 = vmul.bf16 %v4500, 1045249613
  %v4629 = vmul.bf16 %v4501, 1045249613
  %v4630 = vmul.bf16 %v4502, 1045249613
  %v4631 = vmul.bf16 %v4503, 1045249613
  %v4632 = vmul.bf16 %v4504, 1045249613
  %v4633 = vmul.bf16 %v4505, 1045249613
  %v4634 = vmul.bf16 %v4506, 1045249613
  %v4635 = vmul.bf16 %v4507, 1045249613
  %v4636 = vmul.bf16 %v4508, 1045249613
  %v4637 = vmul.bf16 %v4509, 1045249613
  %v4638 = vmul.bf16 %v4510, 1045249613
  %v4639 = vmul.bf16 %v4511, 1045249613
  %v4640 = vmul.bf16 %v4512, 1045249613
  %v4641 = vmul.bf16 %v4513, 1045249613
  %v4642 = vmul.bf16 %v4514, 1045249613
  %v4643 = vmul.bf16 %v4515, 1045249613
  %v4644 = vmul.bf16 %v4516, 1045249613
  %v4645 = vmul.bf16 %v4517, 1045249613
  %v4646 = vmul.bf16 %v4518, 1045249613
  %v4647 = vmul.bf16 %v4519, 1045249613
  %v4648 = vmul.bf16 %v4520, 1045249613
  %v4649 = vmul.bf16 %v4521, 1045249613
  %v4650 = vmul.bf16 %v4522, 1045249613
  %v4651 = vmul.bf16 %v4523, 1045249613
  %v4652 = vmul.bf16 %v4524, 1045249613
  %v4653 = vmul.bf16 %v4525, 1045249613
  %v4654 = vmul.bf16 %v4526, 1045249613
  %v4655 = vmul.bf16 %v4527, 1045249613
  %v4656 = vmul.bf16 %v4528, 1045249613
  %v4657 = vmul.bf16 %v4529, 1045249613
  %v4658 = vmul.bf16 %v4530, 1045249613
  %v4659 = vmul.bf16 %v4531, 1045249613
  %v4660 = vmul.bf16 %v4532, 1045249613
  %v4661 = vmul.bf16 %v4533, 1045249613
  %v4662 = vmul.bf16 %v4534, 1045249613
  %v4663 = vmul.bf16 %v4535, 1045249613
  %v4664 = vmul.bf16 %v4536, 1045249613
  %v4665 = vmul.bf16 %v4537, 1045249613
  %v4666 = vmax.bf16 %v4410, %v4538
  %v4667 = vmax.bf16 %v4411, %v4539
  %v4668 = vmax.bf16 %v4412, %v4540
  %v4669 = vmax.bf16 %v4413, %v4541
  %v4670 = vmax.bf16 %v4414, %v4542
  %v4671 = vmax.bf16 %v4415, %v4543
  %v4672 = vmax.bf16 %v4416, %v4544
  %v4673 = vmax.bf16 %v4417, %v4545
  %v4674 = vmax.bf16 %v4418, %v4546
  %v4675 = vmax.bf16 %v4419, %v4547
  %v4676 = vmax.bf16 %v4420, %v4548
  %v4677 = vmax.bf16 %v4421, %v4549
  %v4678 = vmax.bf16 %v4422, %v4550
  %v4679 = vmax.bf16 %v4423, %v4551
  %v4680 = vmax.bf16 %v4424, %v4552
  %v4681 = vmax.bf16 %v4425, %v4553
  %v4682 = vmax.bf16 %v4426, %v4554
  %v4683 = vmax.bf16 %v4427, %v4555
  %v4684 = vmax.bf16 %v4428, %v4556
  %v4685 = vmax.bf16 %v4429, %v4557
  %v4686 = vmax.bf16 %v4430, %v4558
  %v4687 = vmax.bf16 %v4431, %v4559
  %v4688 = vmax.bf16 %v4432, %v4560
  %v4689 = vmax.bf16 %v4433, %v4561
  %v4690 = vmax.bf16 %v4434, %v4562
  %v4691 = vmax.bf16 %v4435, %v4563
  %v4692 = vmax.bf16 %v4436, %v4564
  %v4693 = vmax.bf16 %v4437, %v4565
  %v4694 = vmax.bf16 %v4438, %v4566
  %v4695 = vmax.bf16 %v4439, %v4567
  %v4696 = vmax.bf16 %v4440, %v4568
  %v4697 = vmax.bf16 %v4441, %v4569
  %v4698 = vmax.bf16 %v4442, %v4570
  %v4699 = vmax.bf16 %v4443, %v4571
  %v4700 = vmax.bf16 %v4444, %v4572
  %v4701 = vmax.bf16 %v4445, %v4573
  %v4702 = vmax.bf16 %v4446, %v4574
  %v4703 = vmax.bf16 %v4447, %v4575
  %v4704 = vmax.bf16 %v4448, %v4576
  %v4705 = vmax.bf16 %v4449, %v4577
  %v4706 = vmax.bf16 %v4450, %v4578
  %v4707 = vmax.bf16 %v4451, %v4579
  %v4708 = vmax.bf16 %v4452, %v4580
  %v4709 = vmax.bf16 %v4453, %v4581
  %v4710 = vmax.bf16 %v4454, %v4582
  %v4711 = vmax.bf16 %v4455, %v4583
  %v4712 = vmax.bf16 %v4456, %v4584
  %v4713 = vmax.bf16 %v4457, %v4585
  %v4714 = vmax.bf16 %v4458, %v4586
  %v4715 = vmax.bf16 %v4459, %v4587
  %v4716 = vmax.bf16 %v4460, %v4588
  %v4717 = vmax.bf16 %v4461, %v4589
  %v4718 = vmax.bf16 %v4462, %v4590
  %v4719 = vmax.bf16 %v4463, %v4591
  %v4720 = vmax.bf16 %v4464, %v4592
  %v4721 = vmax.bf16 %v4465, %v4593
  %v4722 = vmax.bf16 %v4466, %v4594
  %v4723 = vmax.bf16 %v4467, %v4595
  %v4724 = vmax.bf16 %v4468, %v4596
  %v4725 = vmax.bf16 %v4469, %v4597
  %v4726 = vmax.bf16 %v4470, %v4598
  %v4727 = vmax.bf16 %v4471, %v4599
  %v4728 = vmax.bf16 %v4472, %v4600
  %v4729 = vmax.bf16 %v4473, %v4601
  %v4730 = vmax.bf16 %v4474, %v4602
  %v4731 = vmax.bf16 %v4475, %v4603
  %v4732 = vmax.bf16 %v4476, %v4604
  %v4733 = vmax.bf16 %v4477, %v4605
  %v4734 = vmax.bf16 %v4478, %v4606
  %v4735 = vmax.bf16 %v4479, %v4607
  %v4736 = vmax.bf16 %v4480, %v4608
  %v4737 = vmax.bf16 %v4481, %v4609
  %v4738 = vmax.bf16 %v4482, %v4610
  %v4739 = vmax.bf16 %v4483, %v4611
  %v4740 = vmax.bf16 %v4484, %v4612
  %v4741 = vmax.bf16 %v4485, %v4613
  %v4742 = vmax.bf16 %v4486, %v4614
  %v4743 = vmax.bf16 %v4487, %v4615
  %v4744 = vmax.bf16 %v4488, %v4616
  %v4745 = vmax.bf16 %v4489, %v4617
  %v4746 = vmax.bf16 %v4490, %v4618
  %v4747 = vmax.bf16 %v4491, %v4619
  %v4748 = vmax.bf16 %v4492, %v4620
  %v4749 = vmax.bf16 %v4493, %v4621
  %v4750 = vmax.bf16 %v4494, %v4622
  %v4751 = vmax.bf16 %v4495, %v4623
  %v4752 = vmax.bf16 %v4496, %v4624
  %v4753 = vmax.bf16 %v4497, %v4625
  %v4754 = vmax.bf16 %v4498, %v4626
  %v4755 = vmax.bf16 %v4499, %v4627
  %v4756 = vmax.bf16 %v4500, %v4628
  %v4757 = vmax.bf16 %v4501, %v4629
  %v4758 = vmax.bf16 %v4502, %v4630
  %v4759 = vmax.bf16 %v4503, %v4631
  %v4760 = vmax.bf16 %v4504, %v4632
  %v4761 = vmax.bf16 %v4505, %v4633
  %v4762 = vmax.bf16 %v4506, %v4634
  %v4763 = vmax.bf16 %v4507, %v4635
  %v4764 = vmax.bf16 %v4508, %v4636
  %v4765 = vmax.bf16 %v4509, %v4637
  %v4766 = vmax.bf16 %v4510, %v4638
  %v4767 = vmax.bf16 %v4511, %v4639
  %v4768 = vmax.bf16 %v4512, %v4640
  %v4769 = vmax.bf16 %v4513, %v4641
  %v4770 = vmax.bf16 %v4514, %v4642
  %v4771 = vmax.bf16 %v4515, %v4643
  %v4772 = vmax.bf16 %v4516, %v4644
  %v4773 = vmax.bf16 %v4517, %v4645
  %v4774 = vmax.bf16 %v4518, %v4646
  %v4775 = vmax.bf16 %v4519, %v4647
  %v4776 = vmax.bf16 %v4520, %v4648
  %v4777 = vmax.bf16 %v4521, %v4649
  %v4778 = vmax.bf16 %v4522, %v4650
  %v4779 = vmax.bf16 %v4523, %v4651
  %v4780 = vmax.bf16 %v4524, %v4652
  %v4781 = vmax.bf16 %v4525, %v4653
  %v4782 = vmax.bf16 %v4526, %v4654
  %v4783 = vmax.bf16 %v4527, %v4655
  %v4784 = vmax.bf16 %v4528, %v4656
  %v4785 = vmax.bf16 %v4529, %v4657
  %v4786 = vmax.bf16 %v4530, %v4658
  %v4787 = vmax.bf16 %v4531, %v4659
  %v4788 = vmax.bf16 %v4532, %v4660
  %v4789 = vmax.bf16 %v4533, %v4661
  %v4790 = vmax.bf16 %v4534, %v4662
  %v4791 = vmax.bf16 %v4535, %v4663
  %v4792 = vmax.bf16 %v4536, %v4664
  %v4793 = vmax.bf16 %v4537, %v4665
  %v4794 = vld [vmem:[%s7] sm:$0xf]
  %v4795 = vld [vmem:[%s7 + $0x4] sm:$0xf]
  %v4796 = vld [vmem:[%s7 + $0x8] sm:$0xf]
  %v4797 = vld [vmem:[%s7 + $0xc] sm:$0xf]
  %v4798 = vld [vmem:[%s7 + $0x10] sm:$0xf]
  %v4799 = vld [vmem:[%s7 + $0x14] sm:$0xf]
  %v4800 = vld [vmem:[%s7 + $0x18] sm:$0xf]
  %v4801 = vld [vmem:[%s7 + $0x1c] sm:$0xf]
  %v4802 = vld [vmem:[%s7 + $0x20] sm:$0xf]
  %v4803 = vld [vmem:[%s7 + $0x24] sm:$0xf]
  %v4804 = vld [vmem:[%s7 + $0x28] sm:$0xf]
  %v4805 = vld [vmem:[%s7 + $0x2c] sm:$0xf]
  %v4806 = vld [vmem:[%s7 + $0x30] sm:$0xf]
  %v4807 = vld [vmem:[%s7 + $0x34] sm:$0xf]
  %v4808 = vld [vmem:[%s7 + $0x38] sm:$0xf]
  %v4809 = vld [vmem:[%s7 + $0x3c] sm:$0xf]
  %v4810 = vld [vmem:[%s7 + $0x40] sm:$0xf]
  %v4811 = vld [vmem:[%s7 + $0x44] sm:$0xf]
  %v4812 = vld [vmem:[%s7 + $0x48] sm:$0xf]
  %v4813 = vld [vmem:[%s7 + $0x4c] sm:$0xf]
  %v4814 = vld [vmem:[%s7 + $0x50] sm:$0xf]
  %v4815 = vld [vmem:[%s7 + $0x54] sm:$0xf]
  %v4816 = vld [vmem:[%s7 + $0x58] sm:$0xf]
  %v4817 = vld [vmem:[%s7 + $0x5c] sm:$0xf]
  %v4818 = vld [vmem:[%s7 + $0x60] sm:$0xf]
  %v4819 = vld [vmem:[%s7 + $0x64] sm:$0xf]
  %v4820 = vld [vmem:[%s7 + $0x68] sm:$0xf]
  %v4821 = vld [vmem:[%s7 + $0x6c] sm:$0xf]
  %v4822 = vld [vmem:[%s7 + $0x70] sm:$0xf]
  %v4823 = vld [vmem:[%s7 + $0x74] sm:$0xf]
  %v4824 = vld [vmem:[%s7 + $0x78] sm:$0xf]
  %v4825 = vld [vmem:[%s7 + $0x7c] sm:$0xf]
  %v4826 = vld [vmem:[%s7 + $0x80] sm:$0xf]
  %v4827 = vld [vmem:[%s7 + $0x84] sm:$0xf]
  %v4828 = vld [vmem:[%s7 + $0x88] sm:$0xf]
  %v4829 = vld [vmem:[%s7 + $0x8c] sm:$0xf]
  %v4830 = vld [vmem:[%s7 + $0x90] sm:$0xf]
  %v4831 = vld [vmem:[%s7 + $0x94] sm:$0xf]
  %v4832 = vld [vmem:[%s7 + $0x98] sm:$0xf]
  %v4833 = vld [vmem:[%s7 + $0x9c] sm:$0xf]
  %v4834 = vld [vmem:[%s7 + $0xa0] sm:$0xf]
  %v4835 = vld [vmem:[%s7 + $0xa4] sm:$0xf]
  %v4836 = vld [vmem:[%s7 + $0xa8] sm:$0xf]
  %v4837 = vld [vmem:[%s7 + $0xac] sm:$0xf]
  %v4838 = vld [vmem:[%s7 + $0xb0] sm:$0xf]
  %v4839 = vld [vmem:[%s7 + $0xb4] sm:$0xf]
  %v4840 = vld [vmem:[%s7 + $0xb8] sm:$0xf]
  %v4841 = vld [vmem:[%s7 + $0xbc] sm:$0xf]
  %v4842 = vld [vmem:[%s7 + $0xc0] sm:$0xf]
  %v4843 = vld [vmem:[%s7 + $0xc4] sm:$0xf]
  %v4844 = vld [vmem:[%s7 + $0xc8] sm:$0xf]
  %v4845 = vld [vmem:[%s7 + $0xcc] sm:$0xf]
  %v4846 = vld [vmem:[%s7 + $0xd0] sm:$0xf]
  %v4847 = vld [vmem:[%s7 + $0xd4] sm:$0xf]
  %v4848 = vld [vmem:[%s7 + $0xd8] sm:$0xf]
  %v4849 = vld [vmem:[%s7 + $0xdc] sm:$0xf]
  %v4850 = vld [vmem:[%s7 + $0xe0] sm:$0xf]
  %v4851 = vld [vmem:[%s7 + $0xe4] sm:$0xf]
  %v4852 = vld [vmem:[%s7 + $0xe8] sm:$0xf]
  %v4853 = vld [vmem:[%s7 + $0xec] sm:$0xf]
  %v4854 = vld [vmem:[%s7 + $0xf0] sm:$0xf]
  %v4855 = vld [vmem:[%s7 + $0xf4] sm:$0xf]
  %v4856 = vld [vmem:[%s7 + $0xf8] sm:$0xf]
  %v4857 = vld [vmem:[%s7 + $0xfc] sm:$0xf]
  %v4858 = vld [vmem:[%s8] sm:$0x1]
  %v4860 = vlaneseq
  %v4861 = vshrl.u32 %v4860, 7
  %v4862 = vsub.s32 0, %v4861
  %v4863 = vrot.slane %v4858, %v4862
  %v4929 = vunpack.c.l.b16 %v4794
  %v4930 = vunpack.c.l.b16 %v4795
  %v4931 = vunpack.c.l.b16 %v4796
  %v4932 = vunpack.c.l.b16 %v4797
  %v4933 = vunpack.c.l.b16 %v4798
  %v4934 = vunpack.c.l.b16 %v4799
  %v4935 = vunpack.c.l.b16 %v4800
  %v4936 = vunpack.c.l.b16 %v4801
  %v4937 = vunpack.c.l.b16 %v4802
  %v4938 = vunpack.c.l.b16 %v4803
  %v4939 = vunpack.c.l.b16 %v4804
  %v4940 = vunpack.c.l.b16 %v4805
  %v4941 = vunpack.c.l.b16 %v4806
  %v4942 = vunpack.c.l.b16 %v4807
  %v4943 = vunpack.c.l.b16 %v4808
  %v4944 = vunpack.c.l.b16 %v4809
  %v4945 = vunpack.c.l.b16 %v4810
  %v4946 = vunpack.c.l.b16 %v4811
  %v4947 = vunpack.c.l.b16 %v4812
  %v4948 = vunpack.c.l.b16 %v4813
  %v4949 = vunpack.c.l.b16 %v4814
  %v4950 = vunpack.c.l.b16 %v4815
  %v4951 = vunpack.c.l.b16 %v4816
  %v4952 = vunpack.c.l.b16 %v4817
  %v4953 = vunpack.c.l.b16 %v4818
  %v4954 = vunpack.c.l.b16 %v4819
  %v4955 = vunpack.c.l.b16 %v4820
  %v4956 = vunpack.c.l.b16 %v4821
  %v4957 = vunpack.c.l.b16 %v4822
  %v4958 = vunpack.c.l.b16 %v4823
  %v4959 = vunpack.c.l.b16 %v4824
  %v4960 = vunpack.c.l.b16 %v4825
  %v4961 = vunpack.c.l.b16 %v4826
  %v4962 = vunpack.c.l.b16 %v4827
  %v4963 = vunpack.c.l.b16 %v4828
  %v4964 = vunpack.c.l.b16 %v4829
  %v4965 = vunpack.c.l.b16 %v4830
  %v4966 = vunpack.c.l.b16 %v4831
  %v4967 = vunpack.c.l.b16 %v4832
  %v4968 = vunpack.c.l.b16 %v4833
  %v4969 = vunpack.c.l.b16 %v4834
  %v4970 = vunpack.c.l.b16 %v4835
  %v4971 = vunpack.c.l.b16 %v4836
  %v4972 = vunpack.c.l.b16 %v4837
  %v4973 = vunpack.c.l.b16 %v4838
  %v4974 = vunpack.c.l.b16 %v4839
  %v4975 = vunpack.c.l.b16 %v4840
  %v4976 = vunpack.c.l.b16 %v4841
  %v4977 = vunpack.c.l.b16 %v4842
  %v4978 = vunpack.c.l.b16 %v4843
  %v4979 = vunpack.c.l.b16 %v4844
  %v4980 = vunpack.c.l.b16 %v4845
  %v4981 = vunpack.c.l.b16 %v4846
  %v4982 = vunpack.c.l.b16 %v4847
  %v4983 = vunpack.c.l.b16 %v4848
  %v4984 = vunpack.c.l.b16 %v4849
  %v4985 = vunpack.c.l.b16 %v4850
  %v4986 = vunpack.c.l.b16 %v4851
  %v4987 = vunpack.c.l.b16 %v4852
  %v4988 = vunpack.c.l.b16 %v4853
  %v4989 = vunpack.c.l.b16 %v4854
  %v4990 = vunpack.c.l.b16 %v4855
  %v4991 = vunpack.c.l.b16 %v4856
  %v4992 = vunpack.c.l.b16 %v4857
  %v4993 = vpack.c.b16 %v4930, %v4929
  %v4994 = vpack.c.b16 %v4932, %v4931
  %v4995 = vpack.c.b16 %v4934, %v4933
  %v4996 = vpack.c.b16 %v4936, %v4935
  %v4997 = vpack.c.b16 %v4938, %v4937
  %v4998 = vpack.c.b16 %v4940, %v4939
  %v4999 = vpack.c.b16 %v4942, %v4941
  %v5000 = vpack.c.b16 %v4944, %v4943
  %v5001 = vpack.c.b16 %v4946, %v4945
  %v5002 = vpack.c.b16 %v4948, %v4947
  %v5003 = vpack.c.b16 %v4950, %v4949
  %v5004 = vpack.c.b16 %v4952, %v4951
  %v5005 = vpack.c.b16 %v4954, %v4953
  %v5006 = vpack.c.b16 %v4956, %v4955
  %v5007 = vpack.c.b16 %v4958, %v4957
  %v5008 = vpack.c.b16 %v4960, %v4959
  %v5009 = vpack.c.b16 %v4962, %v4961
  %v5010 = vpack.c.b16 %v4964, %v4963
  %v5011 = vpack.c.b16 %v4966, %v4965
  %v5012 = vpack.c.b16 %v4968, %v4967
  %v5013 = vpack.c.b16 %v4970, %v4969
  %v5014 = vpack.c.b16 %v4972, %v4971
  %v5015 = vpack.c.b16 %v4974, %v4973
  %v5016 = vpack.c.b16 %v4976, %v4975
  %v5017 = vpack.c.b16 %v4978, %v4977
  %v5018 = vpack.c.b16 %v4980, %v4979
  %v5019 = vpack.c.b16 %v4982, %v4981
  %v5020 = vpack.c.b16 %v4984, %v4983
  %v5021 = vpack.c.b16 %v4986, %v4985
  %v5022 = vpack.c.b16 %v4988, %v4987
  %v5023 = vpack.c.b16 %v4990, %v4989
  %v5024 = vpack.c.b16 %v4992, %v4991
  %5057 = vmatprep.subr.bf16.mxu0 0
  %5058 = vmatpush1.bf16.msra.mxu0 %v4993
  %5059 = vmatprep.subr.bf16.mxu0 0
  %5060 = vmatpush1.bf16.msra.mxu0 %v4994
  %5061 = vmatprep.subr.bf16.mxu0 0
  %5062 = vmatpush1.bf16.msra.mxu0 %v4995
  %5063 = vmatprep.subr.bf16.mxu0 0
  %5064 = vmatpush1.bf16.msra.mxu0 %v4996
  %5065 = vmatprep.subr.bf16.mxu0 0
  %5066 = vmatpush1.bf16.msra.mxu0 %v4997
  %5067 = vmatprep.subr.bf16.mxu0 0
  %5068 = vmatpush1.bf16.msra.mxu0 %v4998
  %5069 = vmatprep.subr.bf16.mxu0 0
  %5070 = vmatpush1.bf16.msra.mxu0 %v4999
  %5071 = vmatprep.subr.bf16.mxu0 0
  %5072 = vmatpush1.bf16.msra.mxu0 %v5000
  %5073 = vmatprep.subr.bf16.mxu0 0
  %5074 = vmatpush1.bf16.msra.mxu0 %v5001
  %5075 = vmatprep.subr.bf16.mxu0 0
  %5076 = vmatpush1.bf16.msra.mxu0 %v5002
  %5077 = vmatprep.subr.bf16.mxu0 0
  %5078 = vmatpush1.bf16.msra.mxu0 %v5003
  %5079 = vmatprep.subr.bf16.mxu0 0
  %5080 = vmatpush1.bf16.msra.mxu0 %v5004
  %5081 = vmatprep.subr.bf16.mxu0 0
  %5082 = vmatpush1.bf16.msra.mxu0 %v5005
  %5083 = vmatprep.subr.bf16.mxu0 0
  %5084 = vmatpush1.bf16.msra.mxu0 %v5006
  %5085 = vmatprep.subr.bf16.mxu0 0
  %5086 = vmatpush1.bf16.msra.mxu0 %v5007
  %5087 = vmatprep.subr.bf16.mxu0 0
  %5088 = vmatpush1.bf16.msra.mxu0 %v5008
  %5089 = vmatprep.mubr.bf16.mxu0 %v4667
  %5090 = vmatmul.mubr.bf16.gmra.mrb[0].mxu0 %v4666
  %v5091 = vpop.f32.mrb[0].mxu0
  %v5092 = vadd.f32 %v4863, %v5091
  %v5093 = vpop.f32.mrb[0].mxu0
  %v5094 = vpop.f32.mrb[0].mxu0
  %v5095 = vadd.f32 %v4863, %v5094
  %v5096 = vpop.f32.mrb[0].mxu0
  %5097 = vmatprep.mubr.bf16.mxu0 %v4671
  %5098 = vmatmul.mubr.bf16.gmra.mrb[0].mxu0 %v4670
  %v5099 = vpop.f32.mrb[0].mxu0
  %v5100 = vadd.f32 %v4863, %v5099
  %v5101 = vpop.f32.mrb[0].mxu0
  %v5102 = vpop.f32.mrb[0].mxu0
  %v5103 = vadd.f32 %v4863, %v5102
  %v5104 = vpop.f32.mrb[0].mxu0
  %5105 = vmatprep.mubr.bf16.mxu0 %v4675
  %5106 = vmatmul.mubr.bf16.gmra.mrb[0].mxu0 %v4674
  %v5107 = vpop.f32.mrb[0].mxu0
  %v5108 = vadd.f32 %v4863, %v5107
  %v5109 = vpop.f32.mrb[0].mxu0
  %v5110 = vpop.f32.mrb[0].mxu0
  %v5111 = vadd.f32 %v4863, %v5110
  %v5112 = vpop.f32.mrb[0].mxu0
  %5113 = vmatprep.mubr.bf16.mxu0 %v4679
  %5114 = vmatmul.mubr.bf16.gmra.mrb[0].mxu0 %v4678
  %v5115 = vpop.f32.mrb[0].mxu0
  %v5116 = vadd.f32 %v4863, %v5115
  %v5117 = vpop.f32.mrb[0].mxu0
  %v5118 = vpop.f32.mrb[0].mxu0
  %v5119 = vadd.f32 %v4863, %v5118
  %v5120 = vpop.f32.mrb[0].mxu0
  %5121 = vmatprep.mubr.bf16.mxu0 %v4683
  %5122 = vmatmul.mubr.bf16.gmra.mrb[0].mxu0 %v4682
  %v5123 = vpop.f32.mrb[0].mxu0
  %v5124 = vadd.f32 %v4863, %v5123
  %v5125 = vpop.f32.mrb[0].mxu0
  %v5126 = vpop.f32.mrb[0].mxu0
  %v5127 = vadd.f32 %v4863, %v5126
  %v5128 = vpop.f32.mrb[0].mxu0
  %5129 = vmatprep.mubr.bf16.mxu0 %v4687
  %5130 = vmatmul.mubr.bf16.gmra.mrb[0].mxu0 %v4686
  %v5131 = vpop.f32.mrb[0].mxu0
  %v5132 = vadd.f32 %v4863, %v5131
  %v5133 = vpop.f32.mrb[0].mxu0
  %v5134 = vpop.f32.mrb[0].mxu0
  %v5135 = vadd.f32 %v4863, %v5134
  %v5136 = vpop.f32.mrb[0].mxu0
  %5137 = vmatprep.mubr.bf16.mxu0 %v4691
  %5138 = vmatmul.mubr.bf16.gmra.mrb[0].mxu0 %v4690
  %v5139 = vpop.f32.mrb[0].mxu0
  %v5140 = vadd.f32 %v4863, %v5139
  %v5141 = vpop.f32.mrb[0].mxu0
  %v5142 = vpop.f32.mrb[0].mxu0
  %v5143 = vadd.f32 %v4863, %v5142
  %v5144 = vpop.f32.mrb[0].mxu0
  %5145 = vmatprep.mubr.bf16.mxu0 %v4695
  %5146 = vmatmul.mubr.bf16.gmra.mrb[0].mxu0 %v4694
  %v5147 = vpop.f32.mrb[0].mxu0
  %v5148 = vadd.f32 %v4863, %v5147
  %v5149 = vpop.f32.mrb[0].mxu0
  %v5150 = vpop.f32.mrb[0].mxu0
  %v5151 = vadd.f32 %v4863, %v5150
  %v5152 = vpop.f32.mrb[0].mxu0
  %5153 = vmatprep.mubr.bf16.mxu0 %v4699
  %5154 = vmatmul.mubr.bf16.gmra.mrb[0].mxu0 %v4698
  %v5155 = vpop.f32.mrb[0].mxu0
  %v5156 = vadd.f32 %v4863, %v5155
  %v5157 = vpop.f32.mrb[0].mxu0
  %v5158 = vpop.f32.mrb[0].mxu0
  %v5159 = vadd.f32 %v4863, %v5158
  %v5160 = vpop.f32.mrb[0].mxu0
  %5161 = vmatprep.mubr.bf16.mxu0 %v4703
  %5162 = vmatmul.mubr.bf16.gmra.mrb[0].mxu0 %v4702
  %v5163 = vpop.f32.mrb[0].mxu0
  %v5164 = vadd.f32 %v4863, %v5163
  %v5165 = vpop.f32.mrb[0].mxu0
  %v5166 = vpop.f32.mrb[0].mxu0
  %v5167 = vadd.f32 %v4863, %v5166
  %v5168 = vpop.f32.mrb[0].mxu0
  %5169 = vmatprep.mubr.bf16.mxu0 %v4707
  %5170 = vmatmul.mubr.bf16.gmra.mrb[0].mxu0 %v4706
  %v5171 = vpop.f32.mrb[0].mxu0
  %v5172 = vadd.f32 %v4863, %v5171
  %v5173 = vpop.f32.mrb[0].mxu0
  %v5174 = vpop.f32.mrb[0].mxu0
  %v5175 = vadd.f32 %v4863, %v5174
  %v5176 = vpop.f32.mrb[0].mxu0
  %5177 = vmatprep.mubr.bf16.mxu0 %v4711
  %5178 = vmatmul.mubr.bf16.gmra.mrb[0].mxu0 %v4710
  %v5179 = vpop.f32.mrb[0].mxu0
  %v5180 = vadd.f32 %v4863, %v5179
  %v5181 = vpop.f32.mrb[0].mxu0
  %v5182 = vpop.f32.mrb[0].mxu0
  %v5183 = vadd.f32 %v4863, %v5182
  %v5184 = vpop.f32.mrb[0].mxu0
  %5185 = vmatprep.mubr.bf16.mxu0 %v4715
  %5186 = vmatmul.mubr.bf16.gmra.mrb[0].mxu0 %v4714
  %v5187 = vpop.f32.mrb[0].mxu0
  %v5188 = vadd.f32 %v4863, %v5187
  %v5189 = vpop.f32.mrb[0].mxu0
  %v5190 = vpop.f32.mrb[0].mxu0
  %v5191 = vadd.f32 %v4863, %v5190
  %v5192 = vpop.f32.mrb[0].mxu0
  %5193 = vmatprep.mubr.bf16.mxu0 %v4719
  %5194 = vmatmul.mubr.bf16.gmra.mrb[0].mxu0 %v4718
  %v5195 = vpop.f32.mrb[0].mxu0
  %v5196 = vadd.f32 %v4863, %v5195
  %v5197 = vpop.f32.mrb[0].mxu0
  %v5198 = vpop.f32.mrb[0].mxu0
  %v5199 = vadd.f32 %v4863, %v5198
  %v5200 = vpop.f32.mrb[0].mxu0
  %5201 = vmatprep.mubr.bf16.mxu0 %v4723
  %5202 = vmatmul.mubr.bf16.gmra.mrb[0].mxu0 %v4722
  %v5203 = vpop.f32.mrb[0].mxu0
  %v5204 = vadd.f32 %v4863, %v5203
  %v5205 = vpop.f32.mrb[0].mxu0
  %v5206 = vpop.f32.mrb[0].mxu0
  %v5207 = vadd.f32 %v4863, %v5206
  %v5208 = vpop.f32.mrb[0].mxu0
  %5209 = vmatprep.mubr.bf16.mxu0 %v4727
  %5210 = vmatmul.mubr.bf16.gmra.mrb[0].mxu0 %v4726
  %v5211 = vpop.f32.mrb[0].mxu0
  %v5212 = vadd.f32 %v4863, %v5211
  %v5213 = vpop.f32.mrb[0].mxu0
  %v5214 = vpop.f32.mrb[0].mxu0
  %v5215 = vadd.f32 %v4863, %v5214
  %v5216 = vpop.f32.mrb[0].mxu0
  %5217 = vmatprep.mubr.bf16.mxu0 %v4731
  %5218 = vmatmul.mubr.bf16.gmra.mrb[0].mxu0 %v4730
  %v5219 = vpop.f32.mrb[0].mxu0
  %v5220 = vadd.f32 %v4863, %v5219
  %v5221 = vpop.f32.mrb[0].mxu0
  %v5222 = vpop.f32.mrb[0].mxu0
  %v5223 = vadd.f32 %v4863, %v5222
  %v5224 = vpop.f32.mrb[0].mxu0
  %5225 = vmatprep.mubr.bf16.mxu0 %v4735
  %5226 = vmatmul.mubr.bf16.gmra.mrb[0].mxu0 %v4734
  %v5227 = vpop.f32.mrb[0].mxu0
  %v5228 = vadd.f32 %v4863, %v5227
  %v5229 = vpop.f32.mrb[0].mxu0
  %v5230 = vpop.f32.mrb[0].mxu0
  %v5231 = vadd.f32 %v4863, %v5230
  %v5232 = vpop.f32.mrb[0].mxu0
  %5233 = vmatprep.mubr.bf16.mxu0 %v4739
  %5234 = vmatmul.mubr.bf16.gmra.mrb[0].mxu0 %v4738
  %v5235 = vpop.f32.mrb[0].mxu0
  %v5236 = vadd.f32 %v4863, %v5235
  %v5237 = vpop.f32.mrb[0].mxu0
  %v5238 = vpop.f32.mrb[0].mxu0
  %v5239 = vadd.f32 %v4863, %v5238
  %v5240 = vpop.f32.mrb[0].mxu0
  %5241 = vmatprep.mubr.bf16.mxu0 %v4743
  %5242 = vmatmul.mubr.bf16.gmra.mrb[0].mxu0 %v4742
  %v5243 = vpop.f32.mrb[0].mxu0
  %v5244 = vadd.f32 %v4863, %v5243
  %v5245 = vpop.f32.mrb[0].mxu0
  %v5246 = vpop.f32.mrb[0].mxu0
  %v5247 = vadd.f32 %v4863, %v5246
  %v5248 = vpop.f32.mrb[0].mxu0
  %5249 = vmatprep.mubr.bf16.mxu0 %v4747
  %5250 = vmatmul.mubr.bf16.gmra.mrb[0].mxu0 %v4746
  %v5251 = vpop.f32.mrb[0].mxu0
  %v5252 = vadd.f32 %v4863, %v5251
  %v5253 = vpop.f32.mrb[0].mxu0
  %v5254 = vpop.f32.mrb[0].mxu0
  %v5255 = vadd.f32 %v4863, %v5254
  %v5256 = vpop.f32.mrb[0].mxu0
  %5257 = vmatprep.mubr.bf16.mxu0 %v4751
  %5258 = vmatmul.mubr.bf16.gmra.mrb[0].mxu0 %v4750
  %v5259 = vpop.f32.mrb[0].mxu0
  %v5260 = vadd.f32 %v4863, %v5259
  %v5261 = vpop.f32.mrb[0].mxu0
  %v5262 = vpop.f32.mrb[0].mxu0
  %v5263 = vadd.f32 %v4863, %v5262
  %v5264 = vpop.f32.mrb[0].mxu0
  %5265 = vmatprep.mubr.bf16.mxu0 %v4755
  %5266 = vmatmul.mubr.bf16.gmra.mrb[0].mxu0 %v4754
  %v5267 = vpop.f32.mrb[0].mxu0
  %v5268 = vadd.f32 %v4863, %v5267
  %v5269 = vpop.f32.mrb[0].mxu0
  %v5270 = vpop.f32.mrb[0].mxu0
  %v5271 = vadd.f32 %v4863, %v5270
  %v5272 = vpop.f32.mrb[0].mxu0
  %5273 = vmatprep.mubr.bf16.mxu0 %v4759
  %5274 = vmatmul.mubr.bf16.gmra.mrb[0].mxu0 %v4758
  %v5275 = vpop.f32.mrb[0].mxu0
  %v5276 = vadd.f32 %v4863, %v5275
  %v5277 = vpop.f32.mrb[0].mxu0
  %v5278 = vpop.f32.mrb[0].mxu0
  %v5279 = vadd.f32 %v4863, %v5278
  %v5280 = vpop.f32.mrb[0].mxu0
  %5281 = vmatprep.mubr.bf16.mxu0 %v4763
  %5282 = vmatmul.mubr.bf16.gmra.mrb[0].mxu0 %v4762
  %v5283 = vpop.f32.mrb[0].mxu0
  %v5284 = vadd.f32 %v4863, %v5283
  %v5285 = vpop.f32.mrb[0].mxu0
  %v5286 = vpop.f32.mrb[0].mxu0
  %v5287 = vadd.f32 %v4863, %v5286
  %v5288 = vpop.f32.mrb[0].mxu0
  %5289 = vmatprep.mubr.bf16.mxu0 %v4767
  %5290 = vmatmul.mubr.bf16.gmra.mrb[0].mxu0 %v4766
  %v5291 = vpop.f32.mrb[0].mxu0
  %v5292 = vadd.f32 %v4863, %v5291
  %v5293 = vpop.f32.mrb[0].mxu0
  %v5294 = vpop.f32.mrb[0].mxu0
  %v5295 = vadd.f32 %v4863, %v5294
  %v5296 = vpop.f32.mrb[0].mxu0
  %5297 = vmatprep.mubr.bf16.mxu0 %v4771
  %5298 = vmatmul.mubr.bf16.gmra.mrb[0].mxu0 %v4770
  %v5299 = vpop.f32.mrb[0].mxu0
  %v5300 = vadd.f32 %v4863, %v5299
  %v5301 = vpop.f32.mrb[0].mxu0
  %v5302 = vpop.f32.mrb[0].mxu0
  %v5303 = vadd.f32 %v4863, %v5302
  %v5304 = vpop.f32.mrb[0].mxu0
  %5305 = vmatprep.mubr.bf16.mxu0 %v4775
  %5306 = vmatmul.mubr.bf16.gmra.mrb[0].mxu0 %v4774
  %v5307 = vpop.f32.mrb[0].mxu0
  %v5308 = vadd.f32 %v4863, %v5307
  %v5309 = vpop.f32.mrb[0].mxu0
  %v5310 = vpop.f32.mrb[0].mxu0
  %v5311 = vadd.f32 %v4863, %v5310
  %v5312 = vpop.f32.mrb[0].mxu0
  %5313 = vmatprep.mubr.bf16.mxu0 %v4779
  %5314 = vmatmul.mubr.bf16.gmra.mrb[0].mxu0 %v4778
  %v5315 = vpop.f32.mrb[0].mxu0
  %v5316 = vadd.f32 %v4863, %v5315
  %v5317 = vpop.f32.mrb[0].mxu0
  %v5318 = vpop.f32.mrb[0].mxu0
  %v5319 = vadd.f32 %v4863, %v5318
  %v5320 = vpop.f32.mrb[0].mxu0
  %5321 = vmatprep.mubr.bf16.mxu0 %v4783
  %5322 = vmatmul.mubr.bf16.gmra.mrb[0].mxu0 %v4782
  %v5323 = vpop.f32.mrb[0].mxu0
  %v5324 = vadd.f32 %v4863, %v5323
  %v5325 = vpop.f32.mrb[0].mxu0
  %v5326 = vpop.f32.mrb[0].mxu0
  %v5327 = vadd.f32 %v4863, %v5326
  %v5328 = vpop.f32.mrb[0].mxu0
  %5329 = vmatprep.mubr.bf16.mxu0 %v4787
  %5330 = vmatmul.mubr.bf16.gmra.mrb[0].mxu0 %v4786
  %v5331 = vpop.f32.mrb[0].mxu0
  %v5332 = vadd.f32 %v4863, %v5331
  %v5333 = vpop.f32.mrb[0].mxu0
  %v5334 = vpop.f32.mrb[0].mxu0
  %v5335 = vadd.f32 %v4863, %v5334
  %v5336 = vpop.f32.mrb[0].mxu0
  %5337 = vmatprep.mubr.bf16.mxu0 %v4791
  %5338 = vmatmul.mubr.bf16.gmra.mrb[0].mxu0 %v4790
  %v5339 = vpop.f32.mrb[0].mxu0
  %v5340 = vadd.f32 %v4863, %v5339
  %v5341 = vpop.f32.mrb[0].mxu0
  %v5342 = vpop.f32.mrb[0].mxu0
  %v5343 = vadd.f32 %v4863, %v5342
  %v5344 = vpop.f32.mrb[0].mxu0
  %5345 = vdwg.mxu0
  %5346 = vmatprep.subr.bf16.mxu0 0
  %5347 = vmatpush1.bf16.msra.mxu0 %v5009
  %5348 = vmatprep.subr.bf16.mxu0 0
  %5349 = vmatpush1.bf16.msra.mxu0 %v5010
  %5350 = vmatprep.subr.bf16.mxu0 0
  %5351 = vmatpush1.bf16.msra.mxu0 %v5011
  %5352 = vmatprep.subr.bf16.mxu0 0
  %5353 = vmatpush1.bf16.msra.mxu0 %v5012
  %5354 = vmatprep.subr.bf16.mxu0 0
  %5355 = vmatpush1.bf16.msra.mxu0 %v5013
  %5356 = vmatprep.subr.bf16.mxu0 0
  %5357 = vmatpush1.bf16.msra.mxu0 %v5014
  %5358 = vmatprep.subr.bf16.mxu0 0
  %5359 = vmatpush1.bf16.msra.mxu0 %v5015
  %5360 = vmatprep.subr.bf16.mxu0 0
  %5361 = vmatpush1.bf16.msra.mxu0 %v5016
  %5362 = vmatprep.subr.bf16.mxu0 0
  %5363 = vmatpush1.bf16.msra.mxu0 %v5017
  %5364 = vmatprep.subr.bf16.mxu0 0
  %5365 = vmatpush1.bf16.msra.mxu0 %v5018
  %5366 = vmatprep.subr.bf16.mxu0 0
  %5367 = vmatpush1.bf16.msra.mxu0 %v5019
  %5368 = vmatprep.subr.bf16.mxu0 0
  %5369 = vmatpush1.bf16.msra.mxu0 %v5020
  %5370 = vmatprep.subr.bf16.mxu0 0
  %5371 = vmatpush1.bf16.msra.mxu0 %v5021
  %5372 = vmatprep.subr.bf16.mxu0 0
  %5373 = vmatpush1.bf16.msra.mxu0 %v5022
  %5374 = vmatprep.subr.bf16.mxu0 0
  %5375 = vmatpush1.bf16.msra.mxu0 %v5023
  %5376 = vmatprep.subr.bf16.mxu0 0
  %5377 = vmatpush1.bf16.msra.mxu0 %v5024
  %5378 = vmatprep.mubr.bf16.mxu0 %v4669
  %5379 = vmatmul.mubr.bf16.gmra.mrb[0].mxu0 %v4668
  %v5380 = vpop.f32.mrb[0].mxu0
  %v5381 = vadd.f32 %v5092, %v5380
  %v5382 = vpop.f32.mrb[0].mxu0
  %v5383 = vpop.f32.mrb[0].mxu0
  %v5384 = vadd.f32 %v5095, %v5383
  %v5385 = vpop.f32.mrb[0].mxu0
  %5386 = vmatprep.mubr.bf16.mxu0 %v4673
  %5387 = vmatmul.mubr.bf16.gmra.mrb[0].mxu0 %v4672
  %v5388 = vpop.f32.mrb[0].mxu0
  %v5389 = vadd.f32 %v5100, %v5388
  %v5390 = vpop.f32.mrb[0].mxu0
  %v5391 = vpop.f32.mrb[0].mxu0
  %v5392 = vadd.f32 %v5103, %v5391
  %v5393 = vpop.f32.mrb[0].mxu0
  %5394 = vmatprep.mubr.bf16.mxu0 %v4677
  %5395 = vmatmul.mubr.bf16.gmra.mrb[0].mxu0 %v4676
  %v5396 = vpop.f32.mrb[0].mxu0
  %v5397 = vadd.f32 %v5108, %v5396
  %v5398 = vpop.f32.mrb[0].mxu0
  %v5399 = vpop.f32.mrb[0].mxu0
  %v5400 = vadd.f32 %v5111, %v5399
  %v5401 = vpop.f32.mrb[0].mxu0
  %5402 = vmatprep.mubr.bf16.mxu0 %v4681
  %5403 = vmatmul.mubr.bf16.gmra.mrb[0].mxu0 %v4680
  %v5404 = vpop.f32.mrb[0].mxu0
  %v5405 = vadd.f32 %v5116, %v5404
  %v5406 = vpop.f32.mrb[0].mxu0
  %v5407 = vpop.f32.mrb[0].mxu0
  %v5408 = vadd.f32 %v5119, %v5407
  %v5409 = vpop.f32.mrb[0].mxu0
  %5410 = vmatprep.mubr.bf16.mxu0 %v4685
  %5411 = vmatmul.mubr.bf16.gmra.mrb[0].mxu0 %v4684
  %v5412 = vpop.f32.mrb[0].mxu0
  %v5413 = vadd.f32 %v5124, %v5412
  %v5414 = vpop.f32.mrb[0].mxu0
  %v5415 = vpop.f32.mrb[0].mxu0
  %v5416 = vadd.f32 %v5127, %v5415
  %v5417 = vpop.f32.mrb[0].mxu0
  %5418 = vmatprep.mubr.bf16.mxu0 %v4689
  %5419 = vmatmul.mubr.bf16.gmra.mrb[0].mxu0 %v4688
  %v5420 = vpop.f32.mrb[0].mxu0
  %v5421 = vadd.f32 %v5132, %v5420
  %v5422 = vpop.f32.mrb[0].mxu0
  %v5423 = vpop.f32.mrb[0].mxu0
  %v5424 = vadd.f32 %v5135, %v5423
  %v5425 = vpop.f32.mrb[0].mxu0
  %5426 = vmatprep.mubr.bf16.mxu0 %v4693
  %5427 = vmatmul.mubr.bf16.gmra.mrb[0].mxu0 %v4692
  %v5428 = vpop.f32.mrb[0].mxu0
  %v5429 = vadd.f32 %v5140, %v5428
  %v5430 = vpop.f32.mrb[0].mxu0
  %v5431 = vpop.f32.mrb[0].mxu0
  %v5432 = vadd.f32 %v5143, %v5431
  %v5433 = vpop.f32.mrb[0].mxu0
  %5434 = vmatprep.mubr.bf16.mxu0 %v4697
  %5435 = vmatmul.mubr.bf16.gmra.mrb[0].mxu0 %v4696
  %v5436 = vpop.f32.mrb[0].mxu0
  %v5437 = vadd.f32 %v5148, %v5436
  %v5438 = vpop.f32.mrb[0].mxu0
  %v5439 = vpop.f32.mrb[0].mxu0
  %v5440 = vadd.f32 %v5151, %v5439
  %v5441 = vpop.f32.mrb[0].mxu0
  %5442 = vmatprep.mubr.bf16.mxu0 %v4701
  %5443 = vmatmul.mubr.bf16.gmra.mrb[0].mxu0 %v4700
  %v5444 = vpop.f32.mrb[0].mxu0
  %v5445 = vadd.f32 %v5156, %v5444
  %v5446 = vpop.f32.mrb[0].mxu0
  %v5447 = vpop.f32.mrb[0].mxu0
  %v5448 = vadd.f32 %v5159, %v5447
  %v5449 = vpop.f32.mrb[0].mxu0
  %5450 = vmatprep.mubr.bf16.mxu0 %v4705
  %5451 = vmatmul.mubr.bf16.gmra.mrb[0].mxu0 %v4704
  %v5452 = vpop.f32.mrb[0].mxu0
  %v5453 = vadd.f32 %v5164, %v5452
  %v5454 = vpop.f32.mrb[0].mxu0
  %v5455 = vpop.f32.mrb[0].mxu0
  %v5456 = vadd.f32 %v5167, %v5455
  %v5457 = vpop.f32.mrb[0].mxu0
  %5458 = vmatprep.mubr.bf16.mxu0 %v4709
  %5459 = vmatmul.mubr.bf16.gmra.mrb[0].mxu0 %v4708
  %v5460 = vpop.f32.mrb[0].mxu0
  %v5461 = vadd.f32 %v5172, %v5460
  %v5462 = vpop.f32.mrb[0].mxu0
  %v5463 = vpop.f32.mrb[0].mxu0
  %v5464 = vadd.f32 %v5175, %v5463
  %v5465 = vpop.f32.mrb[0].mxu0
  %5466 = vmatprep.mubr.bf16.mxu0 %v4713
  %5467 = vmatmul.mubr.bf16.gmra.mrb[0].mxu0 %v4712
  %v5468 = vpop.f32.mrb[0].mxu0
  %v5469 = vadd.f32 %v5180, %v5468
  %v5470 = vpop.f32.mrb[0].mxu0
  %v5471 = vpop.f32.mrb[0].mxu0
  %v5472 = vadd.f32 %v5183, %v5471
  %v5473 = vpop.f32.mrb[0].mxu0
  %5474 = vmatprep.mubr.bf16.mxu0 %v4717
  %5475 = vmatmul.mubr.bf16.gmra.mrb[0].mxu0 %v4716
  %v5476 = vpop.f32.mrb[0].mxu0
  %v5477 = vadd.f32 %v5188, %v5476
  %v5478 = vpop.f32.mrb[0].mxu0
  %v5479 = vpop.f32.mrb[0].mxu0
  %v5480 = vadd.f32 %v5191, %v5479
  %v5481 = vpop.f32.mrb[0].mxu0
  %5482 = vmatprep.mubr.bf16.mxu0 %v4721
  %5483 = vmatmul.mubr.bf16.gmra.mrb[0].mxu0 %v4720
  %v5484 = vpop.f32.mrb[0].mxu0
  %v5485 = vadd.f32 %v5196, %v5484
  %v5486 = vpop.f32.mrb[0].mxu0
  %v5487 = vpop.f32.mrb[0].mxu0
  %v5488 = vadd.f32 %v5199, %v5487
  %v5489 = vpop.f32.mrb[0].mxu0
  %5490 = vmatprep.mubr.bf16.mxu0 %v4725
  %5491 = vmatmul.mubr.bf16.gmra.mrb[0].mxu0 %v4724
  %v5492 = vpop.f32.mrb[0].mxu0
  %v5493 = vadd.f32 %v5204, %v5492
  %v5494 = vpop.f32.mrb[0].mxu0
  %v5495 = vpop.f32.mrb[0].mxu0
  %v5496 = vadd.f32 %v5207, %v5495
  %v5497 = vpop.f32.mrb[0].mxu0
  %5498 = vmatprep.mubr.bf16.mxu0 %v4729
  %5499 = vmatmul.mubr.bf16.gmra.mrb[0].mxu0 %v4728
  %v5500 = vpop.f32.mrb[0].mxu0
  %v5501 = vadd.f32 %v5212, %v5500
  %v5502 = vpop.f32.mrb[0].mxu0
  %v5503 = vpop.f32.mrb[0].mxu0
  %v5504 = vadd.f32 %v5215, %v5503
  %v5505 = vpop.f32.mrb[0].mxu0
  %5506 = vmatprep.mubr.bf16.mxu0 %v4733
  %5507 = vmatmul.mubr.bf16.gmra.mrb[0].mxu0 %v4732
  %v5508 = vpop.f32.mrb[0].mxu0
  %v5509 = vadd.f32 %v5220, %v5508
  %v5510 = vpop.f32.mrb[0].mxu0
  %v5511 = vpop.f32.mrb[0].mxu0
  %v5512 = vadd.f32 %v5223, %v5511
  %v5513 = vpop.f32.mrb[0].mxu0
  %5514 = vmatprep.mubr.bf16.mxu0 %v4737
  %5515 = vmatmul.mubr.bf16.gmra.mrb[0].mxu0 %v4736
  %v5516 = vpop.f32.mrb[0].mxu0
  %v5517 = vadd.f32 %v5228, %v5516
  %v5518 = vpop.f32.mrb[0].mxu0
  %v5519 = vpop.f32.mrb[0].mxu0
  %v5520 = vadd.f32 %v5231, %v5519
  %v5521 = vpop.f32.mrb[0].mxu0
  %5522 = vmatprep.mubr.bf16.mxu0 %v4741
  %5523 = vmatmul.mubr.bf16.gmra.mrb[0].mxu0 %v4740
  %v5524 = vpop.f32.mrb[0].mxu0
  %v5525 = vadd.f32 %v5236, %v5524
  %v5526 = vpop.f32.mrb[0].mxu0
  %v5527 = vpop.f32.mrb[0].mxu0
  %v5528 = vadd.f32 %v5239, %v5527
  %v5529 = vpop.f32.mrb[0].mxu0
  %5530 = vmatprep.mubr.bf16.mxu0 %v4745
  %5531 = vmatmul.mubr.bf16.gmra.mrb[0].mxu0 %v4744
  %v5532 = vpop.f32.mrb[0].mxu0
  %v5533 = vadd.f32 %v5244, %v5532
  %v5534 = vpop.f32.mrb[0].mxu0
  %v5535 = vpop.f32.mrb[0].mxu0
  %v5536 = vadd.f32 %v5247, %v5535
  %v5537 = vpop.f32.mrb[0].mxu0
  %5538 = vmatprep.mubr.bf16.mxu0 %v4749
  %5539 = vmatmul.mubr.bf16.gmra.mrb[0].mxu0 %v4748
  %v5540 = vpop.f32.mrb[0].mxu0
  %v5541 = vadd.f32 %v5252, %v5540
  %v5542 = vpop.f32.mrb[0].mxu0
  %v5543 = vpop.f32.mrb[0].mxu0
  %v5544 = vadd.f32 %v5255, %v5543
  %v5545 = vpop.f32.mrb[0].mxu0
  %5546 = vmatprep.mubr.bf16.mxu0 %v4753
  %5547 = vmatmul.mubr.bf16.gmra.mrb[0].mxu0 %v4752
  %v5548 = vpop.f32.mrb[0].mxu0
  %v5549 = vadd.f32 %v5260, %v5548
  %v5550 = vpop.f32.mrb[0].mxu0
  %v5551 = vpop.f32.mrb[0].mxu0
  %v5552 = vadd.f32 %v5263, %v5551
  %v5553 = vpop.f32.mrb[0].mxu0
  %5554 = vmatprep.mubr.bf16.mxu0 %v4757
  %5555 = vmatmul.mubr.bf16.gmra.mrb[0].mxu0 %v4756
  %v5556 = vpop.f32.mrb[0].mxu0
  %v5557 = vadd.f32 %v5268, %v5556
  %v5558 = vpop.f32.mrb[0].mxu0
  %v5559 = vpop.f32.mrb[0].mxu0
  %v5560 = vadd.f32 %v5271, %v5559
  %v5561 = vpop.f32.mrb[0].mxu0
  %5562 = vmatprep.mubr.bf16.mxu0 %v4761
  %5563 = vmatmul.mubr.bf16.gmra.mrb[0].mxu0 %v4760
  %v5564 = vpop.f32.mrb[0].mxu0
  %v5565 = vadd.f32 %v5276, %v5564
  %v5566 = vpop.f32.mrb[0].mxu0
  %v5567 = vpop.f32.mrb[0].mxu0
  %v5568 = vadd.f32 %v5279, %v5567
  %v5569 = vpop.f32.mrb[0].mxu0
  %5570 = vmatprep.mubr.bf16.mxu0 %v4765
  %5571 = vmatmul.mubr.bf16.gmra.mrb[0].mxu0 %v4764
  %v5572 = vpop.f32.mrb[0].mxu0
  %v5573 = vadd.f32 %v5284, %v5572
  %v5574 = vpop.f32.mrb[0].mxu0
  %v5575 = vpop.f32.mrb[0].mxu0
  %v5576 = vadd.f32 %v5287, %v5575
  %v5577 = vpop.f32.mrb[0].mxu0
  %5578 = vmatprep.mubr.bf16.mxu0 %v4769
  %5579 = vmatmul.mubr.bf16.gmra.mrb[0].mxu0 %v4768
  %v5580 = vpop.f32.mrb[0].mxu0
  %v5581 = vadd.f32 %v5292, %v5580
  %v5582 = vpop.f32.mrb[0].mxu0
  %v5583 = vpop.f32.mrb[0].mxu0
  %v5584 = vadd.f32 %v5295, %v5583
  %v5585 = vpop.f32.mrb[0].mxu0
  %5586 = vmatprep.mubr.bf16.mxu0 %v4773
  %5587 = vmatmul.mubr.bf16.gmra.mrb[0].mxu0 %v4772
  %v5588 = vpop.f32.mrb[0].mxu0
  %v5589 = vadd.f32 %v5300, %v5588
  %v5590 = vpop.f32.mrb[0].mxu0
  %v5591 = vpop.f32.mrb[0].mxu0
  %v5592 = vadd.f32 %v5303, %v5591
  %v5593 = vpop.f32.mrb[0].mxu0
  %5594 = vmatprep.mubr.bf16.mxu0 %v4777
  %5595 = vmatmul.mubr.bf16.gmra.mrb[0].mxu0 %v4776
  %v5596 = vpop.f32.mrb[0].mxu0
  %v5597 = vadd.f32 %v5308, %v5596
  %v5598 = vpop.f32.mrb[0].mxu0
  %v5599 = vpop.f32.mrb[0].mxu0
  %v5600 = vadd.f32 %v5311, %v5599
  %v5601 = vpop.f32.mrb[0].mxu0
  %5602 = vmatprep.mubr.bf16.mxu0 %v4781
  %5603 = vmatmul.mubr.bf16.gmra.mrb[0].mxu0 %v4780
  %v5604 = vpop.f32.mrb[0].mxu0
  %v5605 = vadd.f32 %v5316, %v5604
  %v5606 = vpop.f32.mrb[0].mxu0
  %v5607 = vpop.f32.mrb[0].mxu0
  %v5608 = vadd.f32 %v5319, %v5607
  %v5609 = vpop.f32.mrb[0].mxu0
  %5610 = vmatprep.mubr.bf16.mxu0 %v4785
  %5611 = vmatmul.mubr.bf16.gmra.mrb[0].mxu0 %v4784
  %v5612 = vpop.f32.mrb[0].mxu0
  %v5613 = vadd.f32 %v5324, %v5612
  %v5614 = vpop.f32.mrb[0].mxu0
  %v5615 = vpop.f32.mrb[0].mxu0
  %v5616 = vadd.f32 %v5327, %v5615
  %v5617 = vpop.f32.mrb[0].mxu0
  %5618 = vmatprep.mubr.bf16.mxu0 %v4789
  %5619 = vmatmul.mubr.bf16.gmra.mrb[0].mxu0 %v4788
  %v5620 = vpop.f32.mrb[0].mxu0
  %v5621 = vadd.f32 %v5332, %v5620
  %v5622 = vpop.f32.mrb[0].mxu0
  %v5623 = vpop.f32.mrb[0].mxu0
  %v5624 = vadd.f32 %v5335, %v5623
  %v5625 = vpop.f32.mrb[0].mxu0
  %5626 = vmatprep.mubr.bf16.mxu0 %v4793
  %5627 = vmatmul.mubr.bf16.gmra.mrb[0].mxu0 %v4792
  %v5628 = vpop.f32.mrb[0].mxu0
  %v5629 = vadd.f32 %v5340, %v5628
  %v5630 = vpop.f32.mrb[0].mxu0
  %v5631 = vpop.f32.mrb[0].mxu0
  %v5632 = vadd.f32 %v5343, %v5631
  %v5633 = vpop.f32.mrb[0].mxu0
  %5634 = vdwg.mxu0
  %5635 = vst [vmem:[%s9] sm:$0xff] %v5381
  %5636 = vst [vmem:[%s9 + $0x8] sm:$0xff] %v5384
  %5637 = vst [vmem:[%s9 + $0x10] sm:$0xff] %v5389
  %5638 = vst [vmem:[%s9 + $0x18] sm:$0xff] %v5392
  %5639 = vst [vmem:[%s9 + $0x20] sm:$0xff] %v5397
  %5640 = vst [vmem:[%s9 + $0x28] sm:$0xff] %v5400
  %5641 = vst [vmem:[%s9 + $0x30] sm:$0xff] %v5405
  %5642 = vst [vmem:[%s9 + $0x38] sm:$0xff] %v5408
  %5643 = vst [vmem:[%s9 + $0x40] sm:$0xff] %v5413
  %5644 = vst [vmem:[%s9 + $0x48] sm:$0xff] %v5416
  %5645 = vst [vmem:[%s9 + $0x50] sm:$0xff] %v5421
  %5646 = vst [vmem:[%s9 + $0x58] sm:$0xff] %v5424
  %5647 = vst [vmem:[%s9 + $0x60] sm:$0xff] %v5429
  %5648 = vst [vmem:[%s9 + $0x68] sm:$0xff] %v5432
  %5649 = vst [vmem:[%s9 + $0x70] sm:$0xff] %v5437
  %5650 = vst [vmem:[%s9 + $0x78] sm:$0xff] %v5440
  %5651 = vst [vmem:[%s9 + $0x80] sm:$0xff] %v5445
  %5652 = vst [vmem:[%s9 + $0x88] sm:$0xff] %v5448
  %5653 = vst [vmem:[%s9 + $0x90] sm:$0xff] %v5453
  %5654 = vst [vmem:[%s9 + $0x98] sm:$0xff] %v5456
  %5655 = vst [vmem:[%s9 + $0xa0] sm:$0xff] %v5461
  %5656 = vst [vmem:[%s9 + $0xa8] sm:$0xff] %v5464
  %5657 = vst [vmem:[%s9 + $0xb0] sm:$0xff] %v5469
  %5658 = vst [vmem:[%s9 + $0xb8] sm:$0xff] %v5472
  %5659 = vst [vmem:[%s9 + $0xc0] sm:$0xff] %v5477
  %5660 = vst [vmem:[%s9 + $0xc8] sm:$0xff] %v5480
  %5661 = vst [vmem:[%s9 + $0xd0] sm:$0xff] %v5485
  %5662 = vst [vmem:[%s9 + $0xd8] sm:$0xff] %v5488
  %5663 = vst [vmem:[%s9 + $0xe0] sm:$0xff] %v5493
  %5664 = vst [vmem:[%s9 + $0xe8] sm:$0xff] %v5496
  %5665 = vst [vmem:[%s9 + $0xf0] sm:$0xff] %v5501
  %5666 = vst [vmem:[%s9 + $0xf8] sm:$0xff] %v5504
  %5667 = vst [vmem:[%s9 + $0x100] sm:$0xff] %v5509
  %5668 = vst [vmem:[%s9 + $0x108] sm:$0xff] %v5512
  %5669 = vst [vmem:[%s9 + $0x110] sm:$0xff] %v5517
  %5670 = vst [vmem:[%s9 + $0x118] sm:$0xff] %v5520
  %5671 = vst [vmem:[%s9 + $0x120] sm:$0xff] %v5525
  %5672 = vst [vmem:[%s9 + $0x128] sm:$0xff] %v5528
  %5673 = vst [vmem:[%s9 + $0x130] sm:$0xff] %v5533
  %5674 = vst [vmem:[%s9 + $0x138] sm:$0xff] %v5536
  %5675 = vst [vmem:[%s9 + $0x140] sm:$0xff] %v5541
  %5676 = vst [vmem:[%s9 + $0x148] sm:$0xff] %v5544
  %5677 = vst [vmem:[%s9 + $0x150] sm:$0xff] %v5549
  %5678 = vst [vmem:[%s9 + $0x158] sm:$0xff] %v5552
  %5679 = vst [vmem:[%s9 + $0x160] sm:$0xff] %v5557
  %5680 = vst [vmem:[%s9 + $0x168] sm:$0xff] %v5560
  %5681 = vst [vmem:[%s9 + $0x170] sm:$0xff] %v5565
  %5682 = vst [vmem:[%s9 + $0x178] sm:$0xff] %v5568
  %5683 = vst [vmem:[%s9 + $0x180] sm:$0xff] %v5573
  %5684 = vst [vmem:[%s9 + $0x188] sm:$0xff] %v5576
  %5685 = vst [vmem:[%s9 + $0x190] sm:$0xff] %v5581
  %5686 = vst [vmem:[%s9 + $0x198] sm:$0xff] %v5584
  %5687 = vst [vmem:[%s9 + $0x1a0] sm:$0xff] %v5589
  %5688 = vst [vmem:[%s9 + $0x1a8] sm:$0xff] %v5592
  %5689 = vst [vmem:[%s9 + $0x1b0] sm:$0xff] %v5597
  %5690 = vst [vmem:[%s9 + $0x1b8] sm:$0xff] %v5600
  %5691 = vst [vmem:[%s9 + $0x1c0] sm:$0xff] %v5605
  %5692 = vst [vmem:[%s9 + $0x1c8] sm:$0xff] %v5608
  %5693 = vst [vmem:[%s9 + $0x1d0] sm:$0xff] %v5613
  %5694 = vst [vmem:[%s9 + $0x1d8] sm:$0xff] %v5616
  %5695 = vst [vmem:[%s9 + $0x1e0] sm:$0xff] %v5621
  %5696 = vst [vmem:[%s9 + $0x1e8] sm:$0xff] %v5624
  %5697 = vst [vmem:[%s9 + $0x1f0] sm:$0xff] %v5629
  %5698 = vst [vmem:[%s9 + $0x1f8] sm:$0xff] %v5632
  // Predicated region
  $region38: #{_generator_forward_impl.1} parent=0 // pred_check
    _
  $region39: #{_generator_forward_impl.1} parent=0 // pred_check_branch
    %5700 = sbr.rel (0) target = $region41
  $region40: #{_generator_forward_impl.1} parent=0 // pred_region
    _
  $region41: #{_generator_forward_impl.1} parent=0 // pred_fallthru
    _
  // Predicated region
  $region42: #{_generator_forward_impl.1} parent=0 // pred_check
    _
  $region43: #{_generator_forward_impl.1} parent=0 // pred_check_branch
    %5702 = sbr.rel (0) target = $region45
  $region44: #{_generator_forward_impl.1} parent=0 // pred_region
    _
  $region45: #{_generator_forward_impl.1} parent=0 // pred_fallthru
    _

</llo_original>
